<compile_context>
chip_gen: v7x
topology: tpu7x:2x2x1
jax: 0.10.0
libtpu: 0.0.40
codegen_flags: <defaults>
</compile_context>

<pallas_src>
import functools

import jax
import jax.numpy as jnp
from jax import lax
from jax.experimental import pallas as pl
from jax.experimental.pallas import tpu as pltpu


def _round_up(v, m):
    return ((v + m - 1) // m) * m


@functools.partial(jax.jit, static_argnames=("row_tile_cap",))
def tudui_forward(x_nchw, weight_oihw, bias, *, row_tile_cap=256):
    """Forward pass of Tudui: Conv2d(3, 6, kernel_size=3, stride=1, padding=0).

    x_nchw:      (N, 3, H, W)  float32 (PyTorch NCHW layout)
    weight_oihw: (6, 3, 3, 3)  float32 (PyTorch OIHW layout)
    bias:        (6,)          float32
    returns:     (N, 6, H-2, W-2) float32 in NCHW layout
    """
    N, Cin, H, W = x_nchw.shape
    Cout, _, KH, KW = weight_oihw.shape
    OH, OW = H - KH + 1, W - KW + 1

    # --- output-row tile selection --------------------------------------
    cap = max(8, (row_tile_cap // 8) * 8)          # enforce multiple of 8
    if N == 1 and OH > 8:
        # keep >= 2 steps along a "parallel" grid axis for v7x megacore
        cap = min(cap, _round_up(pl.cdiv(OH, 2), 8))
    TH = min(cap, _round_up(OH, 8))                # round UP, not down
    n_row_blocks = pl.cdiv(OH, TH)
    th_blocks = TH // 8                            # halo stride in 8-row blocks
    nsub = TH // 8                                 # 8-row sub-tiles per block
    last_halo_block = max(pl.cdiv(H, 8) - 1, 0)    # clamp target for the halo

    # Weights / bias as flat scalar tables for SMEM residency.
    w_flat = weight_oihw.reshape(-1)               # (Cout*Cin*KH*KW,)
    b_flat = bias.reshape(-1)                      # (Cout,)

    def conv_kernel(xa_ref, xb_ref, w_ref, b_ref, o_ref, tail_ref):
        # xa_ref  : (1, Cin, TH, W)  main input rows of this output block
        # xb_ref  : (1, Cin, 8,  W)  next 8 input rows (2-row halo, clamped)
        # w_ref   : (Cout*Cin*KH*KW,) SMEM scalar weights
        # b_ref   : (Cout,)           SMEM scalar bias
        # o_ref   : (1, Cout, TH, OW) NCHW output block (W on lanes)
        # tail_ref: (Cin, 16, W)      scratch: last 8 main rows + 8 halo rows
        tail_ref[:, :8, :] = xa_ref[0, :, TH - 8:, :]
        tail_ref[:, 8:, :] = xb_ref[0]

        # Hoist every weight / bias scalar SMEM read out of the tap loops.
        w = [[[[w_ref[((co * Cin + ci) * KH + kh) * KW + kw]
                for kw in range(KW)]
               for kh in range(KH)]
              for ci in range(Cin)]
             for co in range(Cout)]
        b = [b_ref[co] for co in range(Cout)]

        def macs(load_patch):
            # 162 broadcast-scalar MACs on the VPU for one 8-row sub-tile;
            # co innermost so each patch is reused from vregs 6x.
            accs = [jnp.full((8, OW), b[co], jnp.float32) for co in range(Cout)]
            for ci in range(Cin):
                for kh in range(KH):
                    for kw in range(KW):
                        patch = load_patch(ci, kh, kw)        # (8, OW)
                        for co in range(Cout):
                            accs[co] = accs[co] + w[co][ci][kh][kw] * patch
            return accs

        # Bulk sub-tiles: their 10-row input window lies entirely in xa_ref.
        if nsub > 1:
            @pl.loop(0, nsub - 1)
            def _(t):
                r0 = pl.multiple_of(t * 8, 8)
                accs = macs(lambda ci, kh, kw:
                            xa_ref[0, ci, pl.ds(r0 + kh, 8), kw:kw + OW])
                for co in range(Cout):
                    o_ref[0, co, pl.ds(r0, 8), :] = accs[co].astype(o_ref.dtype)

        # Last sub-tile: bottom 2 output rows need the halo -> read tail_ref.
        accs = macs(lambda ci, kh, kw: tail_ref[ci, kh:kh + 8, kw:kw + OW])
        for co in range(Cout):
            o_ref[0, co, TH - 8:TH, :] = accs[co].astype(o_ref.dtype)

    in_specs = [
        # Main TH input rows of this block (last block may be partial: masked).
        pl.BlockSpec((1, Cin, TH, W), lambda n, j: (n, 0, j, 0)),
        # Next 8 rows (2-row halo); clamped so the block never starts past the
        # last in-bounds 8-row block (no-op whenever the halo is truly needed).
        pl.BlockSpec((1, Cin, 8, W),
                     lambda n, j: (n, 0,
                                   jnp.minimum((j + 1) * th_blocks,
                                               last_halo_block), 0)),
        # Weights / bias: whole arrays resident in SMEM (no per-step refetch).
        pl.BlockSpec(memory_space=pltpu.MemorySpace.SMEM),
        pl.BlockSpec(memory_space=pltpu.MemorySpace.SMEM),
    ]
    out_spec = pl.BlockSpec((1, Cout, TH, OW), lambda n, j: (n, 0, j, 0))

    # VMEM budget for the blocks actually used (double-buffered in/out + scratch).
    lane_w, lane_ow = _round_up(W, 128), _round_up(OW, 128)
    block_bytes = 4 * (
        2 * Cin * TH * lane_w        # main input block, double-buffered
        + 2 * Cin * 8 * lane_w       # halo block, double-buffered
        + 2 * Cout * TH * lane_ow    # output block, double-buffered
        + Cin * 16 * lane_w          # boundary scratch window
    )
    vmem_limit = int(min(64 * 1024 * 1024, max(4 * 1024 * 1024, 2 * block_bytes)))

    cost = pl.CostEstimate(
        flops=2 * N * OH * OW * KH * KW * Cin * Cout,
        transcendentals=0,
        bytes_accessed=4 * (N * Cin * n_row_blocks * (TH + 8) * W   # main + halo
                            + N * Cout * OH * OW
                            + Cout * Cin * KH * KW + Cout),
    )

    return pl.pallas_call(
        conv_kernel,
        out_shape=jax.ShapeDtypeStruct((N, Cout, OH, OW), jnp.float32),
        grid=(N, n_row_blocks),
        in_specs=in_specs,
        out_specs=out_spec,
        scratch_shapes=[pltpu.VMEM((Cin, 16, W), jnp.float32)],
        compiler_params=pltpu.CompilerParams(
            dimension_semantics=("parallel", "parallel"),
            vmem_limit_bytes=vmem_limit,
        ),
        cost_estimate=cost,
    )(x_nchw, x_nchw, w_flat, b_flat)


def init_params(key):
    """Deterministic init matching PyTorch Conv2d default shapes/ranges."""
    Cout, Cin, KH, KW = 6, 3, 3, 3
    fan_in = Cin * KH * KW
    bound = 1.0 / jnp.sqrt(jnp.float32(fan_in))
    k_w, k_b = jax.random.split(key)
    weight = jax.random.uniform(k_w, (Cout, Cin, KH, KW), jnp.float32,
                                minval=-bound, maxval=bound)
    bias = jax.random.uniform(k_b, (Cout,), jnp.float32,
                              minval=-bound, maxval=bound)
    return weight, bias


if __name__ == "__main__":
    key = jax.random.PRNGKey(0)
    k_x, k_p = jax.random.split(key)

    # Small NCHW input consistent with Conv2d(in_channels=3, ...)
    x = jax.random.normal(k_x, (2, 3, 16, 16), jnp.float32)
    weight, bias = init_params(k_p)

    out = tudui_forward(x, weight, bias)
    out = jax.block_until_ready(out)

    # Sanity-check against the pure-JAX reference convolution.
    ref = lax.conv_general_dilated(
        x, weight, window_strides=(1, 1), padding="VALID",
        dimension_numbers=("NCHW", "OIHW", "NCHW"),
    ) + bias.reshape(1, -1, 1, 1)
    assert out.shape == (2, 6, 14, 14), out.shape
    assert jnp.allclose(out, ref, atol=1e-4, rtol=1e-4), \
        float(jnp.max(jnp.abs(out - ref)))

    print("KERNEL_OK")
</pallas_src>

<mosaic_0001>
module attributes {stable_mosaic.version = 11 : i64} {
  func.func @conv_kernel(%arg0: i32, %arg1: i32, %arg2: memref<1x3x16x16xf32, #tpu.memory_space<vmem>>, %arg3: memref<1x3x8x16xf32, #tpu.memory_space<vmem>>, %arg4: memref<162xf32, #tpu.memory_space<smem>>, %arg5: memref<6xf32, #tpu.memory_space<smem>>, %arg6: memref<1x6x16x14xf32, #tpu.memory_space<vmem>>, %arg7: memref<3x16x16xf32, #tpu.memory_space<vmem>>) attributes {dimension_semantics = [#tpu.dimension_semantics<parallel>, #tpu.dimension_semantics<parallel>], iteration_bounds = array<i64: 2, 1>, scalar_prefetch = 0 : i64, scratch_operands = 1 : i64, tpu.core_type = #tpu.core_type<tc>, window_params = [{transform_indices = @transform_0, window_bounds = array<i64: 1, 3, 16, 16>}, {transform_indices = @transform_1, window_bounds = array<i64: 1, 3, 8, 16>}, {transform_indices = @transform_2, window_bounds = array<i64: 162>}, {transform_indices = @transform_3, window_bounds = array<i64: 6>}, {transform_indices = @transform_4, window_bounds = array<i64: 1, 6, 16, 14>}]} {
    %c0 = arith.constant 0 : index
    %c0_0 = arith.constant 0 : index
    %c8 = arith.constant 8 : index
    %c0_1 = arith.constant 0 : index
    %0 = vector.load %arg2[%c0, %c0_0, %c8, %c0_1] : memref<1x3x16x16xf32, #tpu.memory_space<vmem>>, vector<1x3x8x16xf32>
    %1 = vector.shape_cast %0 : vector<1x3x8x16xf32> to vector<3x8x16xf32>
    %c0_2 = arith.constant 0 : index
    %c0_3 = arith.constant 0 : index
    %c0_4 = arith.constant 0 : index
    %2 = vector.load %arg7[%c0_2, %c0_3, %c0_4] : memref<3x16x16xf32, #tpu.memory_space<vmem>>, vector<3x8x16xf32>
    tpu.vector_store %arg7[%c0_2, %c0_3, %c0_4], %1 {strides = array<i32>} : memref<3x16x16xf32, #tpu.memory_space<vmem>>, vector<3x8x16xf32>,
    %c0_5 = arith.constant 0 : index
    %c0_6 = arith.constant 0 : index
    %c0_7 = arith.constant 0 : index
    %c0_8 = arith.constant 0 : index
    %3 = vector.load %arg3[%c0_5, %c0_6, %c0_7, %c0_8] : memref<1x3x8x16xf32, #tpu.memory_space<vmem>>, vector<1x3x8x16xf32>
    %4 = vector.shape_cast %3 : vector<1x3x8x16xf32> to vector<3x8x16xf32>
    %c0_9 = arith.constant 0 : index
    %c8_10 = arith.constant 8 : index
    %c0_11 = arith.constant 0 : index
    %5 = vector.load %arg7[%c0_9, %c8_10, %c0_11] : memref<3x16x16xf32, #tpu.memory_space<vmem>>, vector<3x8x16xf32>
    tpu.vector_store %arg7[%c0_9, %c8_10, %c0_11], %4 {strides = array<i32>} : memref<3x16x16xf32, #tpu.memory_space<vmem>>, vector<3x8x16xf32>,
    %c0_12 = arith.constant 0 : index
    %6 = memref.load %arg4[%c0_12] : memref<162xf32, #tpu.memory_space<smem>>
    %c1 = arith.constant 1 : index
    %7 = memref.load %arg4[%c1] : memref<162xf32, #tpu.memory_space<smem>>
    %c2 = arith.constant 2 : index
    %8 = memref.load %arg4[%c2] : memref<162xf32, #tpu.memory_space<smem>>
    %c3 = arith.constant 3 : index
    %9 = memref.load %arg4[%c3] : memref<162xf32, #tpu.memory_space<smem>>
    %c4 = arith.constant 4 : index
    %10 = memref.load %arg4[%c4] : memref<162xf32, #tpu.memory_space<smem>>
    %c5 = arith.constant 5 : index
    %11 = memref.load %arg4[%c5] : memref<162xf32, #tpu.memory_space<smem>>
    %c6 = arith.constant 6 : index
    %12 = memref.load %arg4[%c6] : memref<162xf32, #tpu.memory_space<smem>>
    %c7 = arith.constant 7 : index
    %13 = memref.load %arg4[%c7] : memref<162xf32, #tpu.memory_space<smem>>
    %c8_13 = arith.constant 8 : index
    %14 = memref.load %arg4[%c8_13] : memref<162xf32, #tpu.memory_space<smem>>
    %c9 = arith.constant 9 : index
    %15 = memref.load %arg4[%c9] : memref<162xf32, #tpu.memory_space<smem>>
    %c10 = arith.constant 10 : index
    %16 = memref.load %arg4[%c10] : memref<162xf32, #tpu.memory_space<smem>>
    %c11 = arith.constant 11 : index
    %17 = memref.load %arg4[%c11] : memref<162xf32, #tpu.memory_space<smem>>
    %c12 = arith.constant 12 : index
    %18 = memref.load %arg4[%c12] : memref<162xf32, #tpu.memory_space<smem>>
    %c13 = arith.constant 13 : index
    %19 = memref.load %arg4[%c13] : memref<162xf32, #tpu.memory_space<smem>>
    %c14 = arith.constant 14 : index
    %20 = memref.load %arg4[%c14] : memref<162xf32, #tpu.memory_space<smem>>
    %c15 = arith.constant 15 : index
    %21 = memref.load %arg4[%c15] : memref<162xf32, #tpu.memory_space<smem>>
    %c16 = arith.constant 16 : index
    %22 = memref.load %arg4[%c16] : memref<162xf32, #tpu.memory_space<smem>>
    %c17 = arith.constant 17 : index
    %23 = memref.load %arg4[%c17] : memref<162xf32, #tpu.memory_space<smem>>
    %c18 = arith.constant 18 : index
    %24 = memref.load %arg4[%c18] : memref<162xf32, #tpu.memory_space<smem>>
    %c19 = arith.constant 19 : index
    %25 = memref.load %arg4[%c19] : memref<162xf32, #tpu.memory_space<smem>>
    %c20 = arith.constant 20 : index
    %26 = memref.load %arg4[%c20] : memref<162xf32, #tpu.memory_space<smem>>
    %c21 = arith.constant 21 : index
    %27 = memref.load %arg4[%c21] : memref<162xf32, #tpu.memory_space<smem>>
    %c22 = arith.constant 22 : index
    %28 = memref.load %arg4[%c22] : memref<162xf32, #tpu.memory_space<smem>>
    %c23 = arith.constant 23 : index
    %29 = memref.load %arg4[%c23] : memref<162xf32, #tpu.memory_space<smem>>
    %c24 = arith.constant 24 : index
    %30 = memref.load %arg4[%c24] : memref<162xf32, #tpu.memory_space<smem>>
    %c25 = arith.constant 25 : index
    %31 = memref.load %arg4[%c25] : memref<162xf32, #tpu.memory_space<smem>>
    %c26 = arith.constant 26 : index
    %32 = memref.load %arg4[%c26] : memref<162xf32, #tpu.memory_space<smem>>
    %c27 = arith.constant 27 : index
    %33 = memref.load %arg4[%c27] : memref<162xf32, #tpu.memory_space<smem>>
    %c28 = arith.constant 28 : index
    %34 = memref.load %arg4[%c28] : memref<162xf32, #tpu.memory_space<smem>>
    %c29 = arith.constant 29 : index
    %35 = memref.load %arg4[%c29] : memref<162xf32, #tpu.memory_space<smem>>
    %c30 = arith.constant 30 : index
    %36 = memref.load %arg4[%c30] : memref<162xf32, #tpu.memory_space<smem>>
    %c31 = arith.constant 31 : index
    %37 = memref.load %arg4[%c31] : memref<162xf32, #tpu.memory_space<smem>>
    %c32 = arith.constant 32 : index
    %38 = memref.load %arg4[%c32] : memref<162xf32, #tpu.memory_space<smem>>
    %c33 = arith.constant 33 : index
    %39 = memref.load %arg4[%c33] : memref<162xf32, #tpu.memory_space<smem>>
    %c34 = arith.constant 34 : index
    %40 = memref.load %arg4[%c34] : memref<162xf32, #tpu.memory_space<smem>>
    %c35 = arith.constant 35 : index
    %41 = memref.load %arg4[%c35] : memref<162xf32, #tpu.memory_space<smem>>
    %c36 = arith.constant 36 : index
    %42 = memref.load %arg4[%c36] : memref<162xf32, #tpu.memory_space<smem>>
    %c37 = arith.constant 37 : index
    %43 = memref.load %arg4[%c37] : memref<162xf32, #tpu.memory_space<smem>>
    %c38 = arith.constant 38 : index
    %44 = memref.load %arg4[%c38] : memref<162xf32, #tpu.memory_space<smem>>
    %c39 = arith.constant 39 : index
    %45 = memref.load %arg4[%c39] : memref<162xf32, #tpu.memory_space<smem>>
    %c40 = arith.constant 40 : index
    %46 = memref.load %arg4[%c40] : memref<162xf32, #tpu.memory_space<smem>>
    %c41 = arith.constant 41 : index
    %47 = memref.load %arg4[%c41] : memref<162xf32, #tpu.memory_space<smem>>
    %c42 = arith.constant 42 : index
    %48 = memref.load %arg4[%c42] : memref<162xf32, #tpu.memory_space<smem>>
    %c43 = arith.constant 43 : index
    %49 = memref.load %arg4[%c43] : memref<162xf32, #tpu.memory_space<smem>>
    %c44 = arith.constant 44 : index
    %50 = memref.load %arg4[%c44] : memref<162xf32, #tpu.memory_space<smem>>
    %c45 = arith.constant 45 : index
    %51 = memref.load %arg4[%c45] : memref<162xf32, #tpu.memory_space<smem>>
    %c46 = arith.constant 46 : index
    %52 = memref.load %arg4[%c46] : memref<162xf32, #tpu.memory_space<smem>>
    %c47 = arith.constant 47 : index
    %53 = memref.load %arg4[%c47] : memref<162xf32, #tpu.memory_space<smem>>
    %c48 = arith.constant 48 : index
    %54 = memref.load %arg4[%c48] : memref<162xf32, #tpu.memory_space<smem>>
    %c49 = arith.constant 49 : index
    %55 = memref.load %arg4[%c49] : memref<162xf32, #tpu.memory_space<smem>>
    %c50 = arith.constant 50 : index
    %56 = memref.load %arg4[%c50] : memref<162xf32, #tpu.memory_space<smem>>
    %c51 = arith.constant 51 : index
    %57 = memref.load %arg4[%c51] : memref<162xf32, #tpu.memory_space<smem>>
    %c52 = arith.constant 52 : index
    %58 = memref.load %arg4[%c52] : memref<162xf32, #tpu.memory_space<smem>>
    %c53 = arith.constant 53 : index
    %59 = memref.load %arg4[%c53] : memref<162xf32, #tpu.memory_space<smem>>
    %c54 = arith.constant 54 : index
    %60 = memref.load %arg4[%c54] : memref<162xf32, #tpu.memory_space<smem>>
    %c55 = arith.constant 55 : index
    %61 = memref.load %arg4[%c55] : memref<162xf32, #tpu.memory_space<smem>>
    %c56 = arith.constant 56 : index
    %62 = memref.load %arg4[%c56] : memref<162xf32, #tpu.memory_space<smem>>
    %c57 = arith.constant 57 : index
    %63 = memref.load %arg4[%c57] : memref<162xf32, #tpu.memory_space<smem>>
    %c58 = arith.constant 58 : index
    %64 = memref.load %arg4[%c58] : memref<162xf32, #tpu.memory_space<smem>>
    %c59 = arith.constant 59 : index
    %65 = memref.load %arg4[%c59] : memref<162xf32, #tpu.memory_space<smem>>
    %c60 = arith.constant 60 : index
    %66 = memref.load %arg4[%c60] : memref<162xf32, #tpu.memory_space<smem>>
    %c61 = arith.constant 61 : index
    %67 = memref.load %arg4[%c61] : memref<162xf32, #tpu.memory_space<smem>>
    %c62 = arith.constant 62 : index
    %68 = memref.load %arg4[%c62] : memref<162xf32, #tpu.memory_space<smem>>
    %c63 = arith.constant 63 : index
    %69 = memref.load %arg4[%c63] : memref<162xf32, #tpu.memory_space<smem>>
    %c64 = arith.constant 64 : index
    %70 = memref.load %arg4[%c64] : memref<162xf32, #tpu.memory_space<smem>>
    %c65 = arith.constant 65 : index
    %71 = memref.load %arg4[%c65] : memref<162xf32, #tpu.memory_space<smem>>
    %c66 = arith.constant 66 : index
    %72 = memref.load %arg4[%c66] : memref<162xf32, #tpu.memory_space<smem>>
    %c67 = arith.constant 67 : index
    %73 = memref.load %arg4[%c67] : memref<162xf32, #tpu.memory_space<smem>>
    %c68 = arith.constant 68 : index
    %74 = memref.load %arg4[%c68] : memref<162xf32, #tpu.memory_space<smem>>
    %c69 = arith.constant 69 : index
    %75 = memref.load %arg4[%c69] : memref<162xf32, #tpu.memory_space<smem>>
    %c70 = arith.constant 70 : index
    %76 = memref.load %arg4[%c70] : memref<162xf32, #tpu.memory_space<smem>>
    %c71 = arith.constant 71 : index
    %77 = memref.load %arg4[%c71] : memref<162xf32, #tpu.memory_space<smem>>
    %c72 = arith.constant 72 : index
    %78 = memref.load %arg4[%c72] : memref<162xf32, #tpu.memory_space<smem>>
    %c73 = arith.constant 73 : index
    %79 = memref.load %arg4[%c73] : memref<162xf32, #tpu.memory_space<smem>>
    %c74 = arith.constant 74 : index
    %80 = memref.load %arg4[%c74] : memref<162xf32, #tpu.memory_space<smem>>
    %c75 = arith.constant 75 : index
    %81 = memref.load %arg4[%c75] : memref<162xf32, #tpu.memory_space<smem>>
    %c76 = arith.constant 76 : index
    %82 = memref.load %arg4[%c76] : memref<162xf32, #tpu.memory_space<smem>>
    %c77 = arith.constant 77 : index
    %83 = memref.load %arg4[%c77] : memref<162xf32, #tpu.memory_space<smem>>
    %c78 = arith.constant 78 : index
    %84 = memref.load %arg4[%c78] : memref<162xf32, #tpu.memory_space<smem>>
    %c79 = arith.constant 79 : index
    %85 = memref.load %arg4[%c79] : memref<162xf32, #tpu.memory_space<smem>>
    %c80 = arith.constant 80 : index
    %86 = memref.load %arg4[%c80] : memref<162xf32, #tpu.memory_space<smem>>
    %c81 = arith.constant 81 : index
    %87 = memref.load %arg4[%c81] : memref<162xf32, #tpu.memory_space<smem>>
    %c82 = arith.constant 82 : index
    %88 = memref.load %arg4[%c82] : memref<162xf32, #tpu.memory_space<smem>>
    %c83 = arith.constant 83 : index
    %89 = memref.load %arg4[%c83] : memref<162xf32, #tpu.memory_space<smem>>
    %c84 = arith.constant 84 : index
    %90 = memref.load %arg4[%c84] : memref<162xf32, #tpu.memory_space<smem>>
    %c85 = arith.constant 85 : index
    %91 = memref.load %arg4[%c85] : memref<162xf32, #tpu.memory_space<smem>>
    %c86 = arith.constant 86 : index
    %92 = memref.load %arg4[%c86] : memref<162xf32, #tpu.memory_space<smem>>
    %c87 = arith.constant 87 : index
    %93 = memref.load %arg4[%c87] : memref<162xf32, #tpu.memory_space<smem>>
    %c88 = arith.constant 88 : index
    %94 = memref.load %arg4[%c88] : memref<162xf32, #tpu.memory_space<smem>>
    %c89 = arith.constant 89 : index
    %95 = memref.load %arg4[%c89] : memref<162xf32, #tpu.memory_space<smem>>
    %c90 = arith.constant 90 : index
    %96 = memref.load %arg4[%c90] : memref<162xf32, #tpu.memory_space<smem>>
    %c91 = arith.constant 91 : index
    %97 = memref.load %arg4[%c91] : memref<162xf32, #tpu.memory_space<smem>>
    %c92 = arith.constant 92 : index
    %98 = memref.load %arg4[%c92] : memref<162xf32, #tpu.memory_space<smem>>
    %c93 = arith.constant 93 : index
    %99 = memref.load %arg4[%c93] : memref<162xf32, #tpu.memory_space<smem>>
    %c94 = arith.constant 94 : index
    %100 = memref.load %arg4[%c94] : memref<162xf32, #tpu.memory_space<smem>>
    %c95 = arith.constant 95 : index
    %101 = memref.load %arg4[%c95] : memref<162xf32, #tpu.memory_space<smem>>
    %c96 = arith.constant 96 : index
    %102 = memref.load %arg4[%c96] : memref<162xf32, #tpu.memory_space<smem>>
    %c97 = arith.constant 97 : index
    %103 = memref.load %arg4[%c97] : memref<162xf32, #tpu.memory_space<smem>>
    %c98 = arith.constant 98 : index
    %104 = memref.load %arg4[%c98] : memref<162xf32, #tpu.memory_space<smem>>
    %c99 = arith.constant 99 : index
    %105 = memref.load %arg4[%c99] : memref<162xf32, #tpu.memory_space<smem>>
    %c100 = arith.constant 100 : index
    %106 = memref.load %arg4[%c100] : memref<162xf32, #tpu.memory_space<smem>>
    %c101 = arith.constant 101 : index
    %107 = memref.load %arg4[%c101] : memref<162xf32, #tpu.memory_space<smem>>
    %c102 = arith.constant 102 : index
    %108 = memref.load %arg4[%c102] : memref<162xf32, #tpu.memory_space<smem>>
    %c103 = arith.constant 103 : index
    %109 = memref.load %arg4[%c103] : memref<162xf32, #tpu.memory_space<smem>>
    %c104 = arith.constant 104 : index
    %110 = memref.load %arg4[%c104] : memref<162xf32, #tpu.memory_space<smem>>
    %c105 = arith.constant 105 : index
    %111 = memref.load %arg4[%c105] : memref<162xf32, #tpu.memory_space<smem>>
    %c106 = arith.constant 106 : index
    %112 = memref.load %arg4[%c106] : memref<162xf32, #tpu.memory_space<smem>>
    %c107 = arith.constant 107 : index
    %113 = memref.load %arg4[%c107] : memref<162xf32, #tpu.memory_space<smem>>
    %c108 = arith.constant 108 : index
    %114 = memref.load %arg4[%c108] : memref<162xf32, #tpu.memory_space<smem>>
    %c109 = arith.constant 109 : index
    %115 = memref.load %arg4[%c109] : memref<162xf32, #tpu.memory_space<smem>>
    %c110 = arith.constant 110 : index
    %116 = memref.load %arg4[%c110] : memref<162xf32, #tpu.memory_space<smem>>
    %c111 = arith.constant 111 : index
    %117 = memref.load %arg4[%c111] : memref<162xf32, #tpu.memory_space<smem>>
    %c112 = arith.constant 112 : index
    %118 = memref.load %arg4[%c112] : memref<162xf32, #tpu.memory_space<smem>>
    %c113 = arith.constant 113 : index
    %119 = memref.load %arg4[%c113] : memref<162xf32, #tpu.memory_space<smem>>
    %c114 = arith.constant 114 : index
    %120 = memref.load %arg4[%c114] : memref<162xf32, #tpu.memory_space<smem>>
    %c115 = arith.constant 115 : index
    %121 = memref.load %arg4[%c115] : memref<162xf32, #tpu.memory_space<smem>>
    %c116 = arith.constant 116 : index
    %122 = memref.load %arg4[%c116] : memref<162xf32, #tpu.memory_space<smem>>
    %c117 = arith.constant 117 : index
    %123 = memref.load %arg4[%c117] : memref<162xf32, #tpu.memory_space<smem>>
    %c118 = arith.constant 118 : index
    %124 = memref.load %arg4[%c118] : memref<162xf32, #tpu.memory_space<smem>>
    %c119 = arith.constant 119 : index
    %125 = memref.load %arg4[%c119] : memref<162xf32, #tpu.memory_space<smem>>
    %c120 = arith.constant 120 : index
    %126 = memref.load %arg4[%c120] : memref<162xf32, #tpu.memory_space<smem>>
    %c121 = arith.constant 121 : index
    %127 = memref.load %arg4[%c121] : memref<162xf32, #tpu.memory_space<smem>>
    %c122 = arith.constant 122 : index
    %128 = memref.load %arg4[%c122] : memref<162xf32, #tpu.memory_space<smem>>
    %c123 = arith.constant 123 : index
    %129 = memref.load %arg4[%c123] : memref<162xf32, #tpu.memory_space<smem>>
    %c124 = arith.constant 124 : index
    %130 = memref.load %arg4[%c124] : memref<162xf32, #tpu.memory_space<smem>>
    %c125 = arith.constant 125 : index
    %131 = memref.load %arg4[%c125] : memref<162xf32, #tpu.memory_space<smem>>
    %c126 = arith.constant 126 : index
    %132 = memref.load %arg4[%c126] : memref<162xf32, #tpu.memory_space<smem>>
    %c127 = arith.constant 127 : index
    %133 = memref.load %arg4[%c127] : memref<162xf32, #tpu.memory_space<smem>>
    %c128 = arith.constant 128 : index
    %134 = memref.load %arg4[%c128] : memref<162xf32, #tpu.memory_space<smem>>
    %c129 = arith.constant 129 : index
    %135 = memref.load %arg4[%c129] : memref<162xf32, #tpu.memory_space<smem>>
    %c130 = arith.constant 130 : index
    %136 = memref.load %arg4[%c130] : memref<162xf32, #tpu.memory_space<smem>>
    %c131 = arith.constant 131 : index
    %137 = memref.load %arg4[%c131] : memref<162xf32, #tpu.memory_space<smem>>
    %c132 = arith.constant 132 : index
    %138 = memref.load %arg4[%c132] : memref<162xf32, #tpu.memory_space<smem>>
    %c133 = arith.constant 133 : index
    %139 = memref.load %arg4[%c133] : memref<162xf32, #tpu.memory_space<smem>>
    %c134 = arith.constant 134 : index
    %140 = memref.load %arg4[%c134] : memref<162xf32, #tpu.memory_space<smem>>
    %c135 = arith.constant 135 : index
    %141 = memref.load %arg4[%c135] : memref<162xf32, #tpu.memory_space<smem>>
    %c136 = arith.constant 136 : index
    %142 = memref.load %arg4[%c136] : memref<162xf32, #tpu.memory_space<smem>>
    %c137 = arith.constant 137 : index
    %143 = memref.load %arg4[%c137] : memref<162xf32, #tpu.memory_space<smem>>
    %c138 = arith.constant 138 : index
    %144 = memref.load %arg4[%c138] : memref<162xf32, #tpu.memory_space<smem>>
    %c139 = arith.constant 139 : index
    %145 = memref.load %arg4[%c139] : memref<162xf32, #tpu.memory_space<smem>>
    %c140 = arith.constant 140 : index
    %146 = memref.load %arg4[%c140] : memref<162xf32, #tpu.memory_space<smem>>
    %c141 = arith.constant 141 : index
    %147 = memref.load %arg4[%c141] : memref<162xf32, #tpu.memory_space<smem>>
    %c142 = arith.constant 142 : index
    %148 = memref.load %arg4[%c142] : memref<162xf32, #tpu.memory_space<smem>>
    %c143 = arith.constant 143 : index
    %149 = memref.load %arg4[%c143] : memref<162xf32, #tpu.memory_space<smem>>
    %c144 = arith.constant 144 : index
    %150 = memref.load %arg4[%c144] : memref<162xf32, #tpu.memory_space<smem>>
    %c145 = arith.constant 145 : index
    %151 = memref.load %arg4[%c145] : memref<162xf32, #tpu.memory_space<smem>>
    %c146 = arith.constant 146 : index
    %152 = memref.load %arg4[%c146] : memref<162xf32, #tpu.memory_space<smem>>
    %c147 = arith.constant 147 : index
    %153 = memref.load %arg4[%c147] : memref<162xf32, #tpu.memory_space<smem>>
    %c148 = arith.constant 148 : index
    %154 = memref.load %arg4[%c148] : memref<162xf32, #tpu.memory_space<smem>>
    %c149 = arith.constant 149 : index
    %155 = memref.load %arg4[%c149] : memref<162xf32, #tpu.memory_space<smem>>
    %c150 = arith.constant 150 : index
    %156 = memref.load %arg4[%c150] : memref<162xf32, #tpu.memory_space<smem>>
    %c151 = arith.constant 151 : index
    %157 = memref.load %arg4[%c151] : memref<162xf32, #tpu.memory_space<smem>>
    %c152 = arith.constant 152 : index
    %158 = memref.load %arg4[%c152] : memref<162xf32, #tpu.memory_space<smem>>
    %c153 = arith.constant 153 : index
    %159 = memref.load %arg4[%c153] : memref<162xf32, #tpu.memory_space<smem>>
    %c154 = arith.constant 154 : index
    %160 = memref.load %arg4[%c154] : memref<162xf32, #tpu.memory_space<smem>>
    %c155 = arith.constant 155 : index
    %161 = memref.load %arg4[%c155] : memref<162xf32, #tpu.memory_space<smem>>
    %c156 = arith.constant 156 : index
    %162 = memref.load %arg4[%c156] : memref<162xf32, #tpu.memory_space<smem>>
    %c157 = arith.constant 157 : index
    %163 = memref.load %arg4[%c157] : memref<162xf32, #tpu.memory_space<smem>>
    %c158 = arith.constant 158 : index
    %164 = memref.load %arg4[%c158] : memref<162xf32, #tpu.memory_space<smem>>
    %c159 = arith.constant 159 : index
    %165 = memref.load %arg4[%c159] : memref<162xf32, #tpu.memory_space<smem>>
    %c160 = arith.constant 160 : index
    %166 = memref.load %arg4[%c160] : memref<162xf32, #tpu.memory_space<smem>>
    %c161 = arith.constant 161 : index
    %167 = memref.load %arg4[%c161] : memref<162xf32, #tpu.memory_space<smem>>
    %c0_14 = arith.constant 0 : index
    %168 = memref.load %arg5[%c0_14] : memref<6xf32, #tpu.memory_space<smem>>
    %c1_15 = arith.constant 1 : index
    %169 = memref.load %arg5[%c1_15] : memref<6xf32, #tpu.memory_space<smem>>
    %c2_16 = arith.constant 2 : index
    %170 = memref.load %arg5[%c2_16] : memref<6xf32, #tpu.memory_space<smem>>
    %c3_17 = arith.constant 3 : index
    %171 = memref.load %arg5[%c3_17] : memref<6xf32, #tpu.memory_space<smem>>
    %c4_18 = arith.constant 4 : index
    %172 = memref.load %arg5[%c4_18] : memref<6xf32, #tpu.memory_space<smem>>
    %c5_19 = arith.constant 5 : index
    %173 = memref.load %arg5[%c5_19] : memref<6xf32, #tpu.memory_space<smem>>
    %c0_i32 = arith.constant 0 : i32
    %c1_i32 = arith.constant 1 : i32
    %174 = arith.muli %c0_i32, %c1_i32 : i32
    %c0_i32_20 = arith.constant 0 : i32
    %175 = arith.addi %c0_i32_20, %174 : i32
    %c8_i32 = arith.constant 8 : i32
    %176 = arith.muli %175, %c8_i32 : i32
    %177 = tpu.assume_multiple %176, 8 : i32
    %178 = vector.broadcast %168 : f32 to vector<8x14xf32>
    %179 = vector.broadcast %169 : f32 to vector<8x14xf32>
    %180 = vector.broadcast %170 : f32 to vector<8x14xf32>
    %181 = vector.broadcast %171 : f32 to vector<8x14xf32>
    %182 = vector.broadcast %172 : f32 to vector<8x14xf32>
    %183 = vector.broadcast %173 : f32 to vector<8x14xf32>
    %c0_i32_21 = arith.constant 0 : i32
    %184 = arith.addi %177, %c0_i32_21 : i32
    %c0_22 = arith.constant 0 : index
    %c0_23 = arith.constant 0 : index
    %185 = arith.index_cast %184 : i32 to index
    %c0_24 = arith.constant 0 : index
    %186 = vector.load %arg2[%c0_22, %c0_23, %185, %c0_24] : memref<1x3x16x16xf32, #tpu.memory_space<vmem>>, vector<1x1x8x14xf32>
    %187 = vector.shape_cast %186 : vector<1x1x8x14xf32> to vector<8x14xf32>
    %188 = vector.broadcast %6 : f32 to vector<8x14xf32>
    %189 = arith.mulf %188, %187 : vector<8x14xf32>
    %190 = arith.addf %178, %189 : vector<8x14xf32>
    %191 = vector.broadcast %33 : f32 to vector<8x14xf32>
    %192 = arith.mulf %191, %187 : vector<8x14xf32>
    %193 = arith.addf %179, %192 : vector<8x14xf32>
    %194 = vector.broadcast %60 : f32 to vector<8x14xf32>
    %195 = arith.mulf %194, %187 : vector<8x14xf32>
    %196 = arith.addf %180, %195 : vector<8x14xf32>
    %197 = vector.broadcast %87 : f32 to vector<8x14xf32>
    %198 = arith.mulf %197, %187 : vector<8x14xf32>
    %199 = arith.addf %181, %198 : vector<8x14xf32>
    %200 = vector.broadcast %114 : f32 to vector<8x14xf32>
    %201 = arith.mulf %200, %187 : vector<8x14xf32>
    %202 = arith.addf %182, %201 : vector<8x14xf32>
    %203 = vector.broadcast %141 : f32 to vector<8x14xf32>
    %204 = arith.mulf %203, %187 : vector<8x14xf32>
    %205 = arith.addf %183, %204 : vector<8x14xf32>
    %c0_i32_25 = arith.constant 0 : i32
    %206 = arith.addi %177, %c0_i32_25 : i32
    %c0_26 = arith.constant 0 : index
    %c0_27 = arith.constant 0 : index
    %207 = arith.index_cast %206 : i32 to index
    %c1_28 = arith.constant 1 : index
    %208 = vector.load %arg2[%c0_26, %c0_27, %207, %c1_28] : memref<1x3x16x16xf32, #tpu.memory_space<vmem>>, vector<1x1x8x14xf32>
    %209 = vector.shape_cast %208 : vector<1x1x8x14xf32> to vector<8x14xf32>
    %210 = vector.broadcast %7 : f32 to vector<8x14xf32>
    %211 = arith.mulf %210, %209 : vector<8x14xf32>
    %212 = arith.addf %190, %211 : vector<8x14xf32>
    %213 = vector.broadcast %34 : f32 to vector<8x14xf32>
    %214 = arith.mulf %213, %209 : vector<8x14xf32>
    %215 = arith.addf %193, %214 : vector<8x14xf32>
    %216 = vector.broadcast %61 : f32 to vector<8x14xf32>
    %217 = arith.mulf %216, %209 : vector<8x14xf32>
    %218 = arith.addf %196, %217 : vector<8x14xf32>
    %219 = vector.broadcast %88 : f32 to vector<8x14xf32>
    %220 = arith.mulf %219, %209 : vector<8x14xf32>
    %221 = arith.addf %199, %220 : vector<8x14xf32>
    %222 = vector.broadcast %115 : f32 to vector<8x14xf32>
    %223 = arith.mulf %222, %209 : vector<8x14xf32>
    %224 = arith.addf %202, %223 : vector<8x14xf32>
    %225 = vector.broadcast %142 : f32 to vector<8x14xf32>
    %226 = arith.mulf %225, %209 : vector<8x14xf32>
    %227 = arith.addf %205, %226 : vector<8x14xf32>
    %c0_i32_29 = arith.constant 0 : i32
    %228 = arith.addi %177, %c0_i32_29 : i32
    %c0_30 = arith.constant 0 : index
    %c0_31 = arith.constant 0 : index
    %229 = arith.index_cast %228 : i32 to index
    %c2_32 = arith.constant 2 : index
    %230 = vector.load %arg2[%c0_30, %c0_31, %229, %c2_32] : memref<1x3x16x16xf32, #tpu.memory_space<vmem>>, vector<1x1x8x14xf32>
    %231 = vector.shape_cast %230 : vector<1x1x8x14xf32> to vector<8x14xf32>
    %232 = vector.broadcast %8 : f32 to vector<8x14xf32>
    %233 = arith.mulf %232, %231 : vector<8x14xf32>
    %234 = arith.addf %212, %233 : vector<8x14xf32>
    %235 = vector.broadcast %35 : f32 to vector<8x14xf32>
    %236 = arith.mulf %235, %231 : vector<8x14xf32>
    %237 = arith.addf %215, %236 : vector<8x14xf32>
    %238 = vector.broadcast %62 : f32 to vector<8x14xf32>
    %239 = arith.mulf %238, %231 : vector<8x14xf32>
    %240 = arith.addf %218, %239 : vector<8x14xf32>
    %241 = vector.broadcast %89 : f32 to vector<8x14xf32>
    %242 = arith.mulf %241, %231 : vector<8x14xf32>
    %243 = arith.addf %221, %242 : vector<8x14xf32>
    %244 = vector.broadcast %116 : f32 to vector<8x14xf32>
    %245 = arith.mulf %244, %231 : vector<8x14xf32>
    %246 = arith.addf %224, %245 : vector<8x14xf32>
    %247 = vector.broadcast %143 : f32 to vector<8x14xf32>
    %248 = arith.mulf %247, %231 : vector<8x14xf32>
    %249 = arith.addf %227, %248 : vector<8x14xf32>
    %c1_i32_33 = arith.constant 1 : i32
    %250 = arith.addi %177, %c1_i32_33 : i32
    %c0_34 = arith.constant 0 : index
    %c0_35 = arith.constant 0 : index
    %251 = arith.index_cast %250 : i32 to index
    %c0_36 = arith.constant 0 : index
    %252 = vector.load %arg2[%c0_34, %c0_35, %251, %c0_36] : memref<1x3x16x16xf32, #tpu.memory_space<vmem>>, vector<1x1x8x14xf32>
    %253 = vector.shape_cast %252 : vector<1x1x8x14xf32> to vector<8x14xf32>
    %254 = vector.broadcast %9 : f32 to vector<8x14xf32>
    %255 = arith.mulf %254, %253 : vector<8x14xf32>
    %256 = arith.addf %234, %255 : vector<8x14xf32>
    %257 = vector.broadcast %36 : f32 to vector<8x14xf32>
    %258 = arith.mulf %257, %253 : vector<8x14xf32>
    %259 = arith.addf %237, %258 : vector<8x14xf32>
    %260 = vector.broadcast %63 : f32 to vector<8x14xf32>
    %261 = arith.mulf %260, %253 : vector<8x14xf32>
    %262 = arith.addf %240, %261 : vector<8x14xf32>
    %263 = vector.broadcast %90 : f32 to vector<8x14xf32>
    %264 = arith.mulf %263, %253 : vector<8x14xf32>
    %265 = arith.addf %243, %264 : vector<8x14xf32>
    %266 = vector.broadcast %117 : f32 to vector<8x14xf32>
    %267 = arith.mulf %266, %253 : vector<8x14xf32>
    %268 = arith.addf %246, %267 : vector<8x14xf32>
    %269 = vector.broadcast %144 : f32 to vector<8x14xf32>
    %270 = arith.mulf %269, %253 : vector<8x14xf32>
    %271 = arith.addf %249, %270 : vector<8x14xf32>
    %c1_i32_37 = arith.constant 1 : i32
    %272 = arith.addi %177, %c1_i32_37 : i32
    %c0_38 = arith.constant 0 : index
    %c0_39 = arith.constant 0 : index
    %273 = arith.index_cast %272 : i32 to index
    %c1_40 = arith.constant 1 : index
    %274 = vector.load %arg2[%c0_38, %c0_39, %273, %c1_40] : memref<1x3x16x16xf32, #tpu.memory_space<vmem>>, vector<1x1x8x14xf32>
    %275 = vector.shape_cast %274 : vector<1x1x8x14xf32> to vector<8x14xf32>
    %276 = vector.broadcast %10 : f32 to vector<8x14xf32>
    %277 = arith.mulf %276, %275 : vector<8x14xf32>
    %278 = arith.addf %256, %277 : vector<8x14xf32>
    %279 = vector.broadcast %37 : f32 to vector<8x14xf32>
    %280 = arith.mulf %279, %275 : vector<8x14xf32>
    %281 = arith.addf %259, %280 : vector<8x14xf32>
    %282 = vector.broadcast %64 : f32 to vector<8x14xf32>
    %283 = arith.mulf %282, %275 : vector<8x14xf32>
    %284 = arith.addf %262, %283 : vector<8x14xf32>
    %285 = vector.broadcast %91 : f32 to vector<8x14xf32>
    %286 = arith.mulf %285, %275 : vector<8x14xf32>
    %287 = arith.addf %265, %286 : vector<8x14xf32>
    %288 = vector.broadcast %118 : f32 to vector<8x14xf32>
    %289 = arith.mulf %288, %275 : vector<8x14xf32>
    %290 = arith.addf %268, %289 : vector<8x14xf32>
    %291 = vector.broadcast %145 : f32 to vector<8x14xf32>
    %292 = arith.mulf %291, %275 : vector<8x14xf32>
    %293 = arith.addf %271, %292 : vector<8x14xf32>
    %c1_i32_41 = arith.constant 1 : i32
    %294 = arith.addi %177, %c1_i32_41 : i32
    %c0_42 = arith.constant 0 : index
    %c0_43 = arith.constant 0 : index
    %295 = arith.index_cast %294 : i32 to index
    %c2_44 = arith.constant 2 : index
    %296 = vector.load %arg2[%c0_42, %c0_43, %295, %c2_44] : memref<1x3x16x16xf32, #tpu.memory_space<vmem>>, vector<1x1x8x14xf32>
    %297 = vector.shape_cast %296 : vector<1x1x8x14xf32> to vector<8x14xf32>
    %298 = vector.broadcast %11 : f32 to vector<8x14xf32>
    %299 = arith.mulf %298, %297 : vector<8x14xf32>
    %300 = arith.addf %278, %299 : vector<8x14xf32>
    %301 = vector.broadcast %38 : f32 to vector<8x14xf32>
    %302 = arith.mulf %301, %297 : vector<8x14xf32>
    %303 = arith.addf %281, %302 : vector<8x14xf32>
    %304 = vector.broadcast %65 : f32 to vector<8x14xf32>
    %305 = arith.mulf %304, %297 : vector<8x14xf32>
    %306 = arith.addf %284, %305 : vector<8x14xf32>
    %307 = vector.broadcast %92 : f32 to vector<8x14xf32>
    %308 = arith.mulf %307, %297 : vector<8x14xf32>
    %309 = arith.addf %287, %308 : vector<8x14xf32>
    %310 = vector.broadcast %119 : f32 to vector<8x14xf32>
    %311 = arith.mulf %310, %297 : vector<8x14xf32>
    %312 = arith.addf %290, %311 : vector<8x14xf32>
    %313 = vector.broadcast %146 : f32 to vector<8x14xf32>
    %314 = arith.mulf %313, %297 : vector<8x14xf32>
    %315 = arith.addf %293, %314 : vector<8x14xf32>
    %c2_i32 = arith.constant 2 : i32
    %316 = arith.addi %177, %c2_i32 : i32
    %c0_45 = arith.constant 0 : index
    %c0_46 = arith.constant 0 : index
    %317 = arith.index_cast %316 : i32 to index
    %c0_47 = arith.constant 0 : index
    %318 = vector.load %arg2[%c0_45, %c0_46, %317, %c0_47] : memref<1x3x16x16xf32, #tpu.memory_space<vmem>>, vector<1x1x8x14xf32>
    %319 = vector.shape_cast %318 : vector<1x1x8x14xf32> to vector<8x14xf32>
    %320 = vector.broadcast %12 : f32 to vector<8x14xf32>
    %321 = arith.mulf %320, %319 : vector<8x14xf32>
    %322 = arith.addf %300, %321 : vector<8x14xf32>
    %323 = vector.broadcast %39 : f32 to vector<8x14xf32>
    %324 = arith.mulf %323, %319 : vector<8x14xf32>
    %325 = arith.addf %303, %324 : vector<8x14xf32>
    %326 = vector.broadcast %66 : f32 to vector<8x14xf32>
    %327 = arith.mulf %326, %319 : vector<8x14xf32>
    %328 = arith.addf %306, %327 : vector<8x14xf32>
    %329 = vector.broadcast %93 : f32 to vector<8x14xf32>
    %330 = arith.mulf %329, %319 : vector<8x14xf32>
    %331 = arith.addf %309, %330 : vector<8x14xf32>
    %332 = vector.broadcast %120 : f32 to vector<8x14xf32>
    %333 = arith.mulf %332, %319 : vector<8x14xf32>
    %334 = arith.addf %312, %333 : vector<8x14xf32>
    %335 = vector.broadcast %147 : f32 to vector<8x14xf32>
    %336 = arith.mulf %335, %319 : vector<8x14xf32>
    %337 = arith.addf %315, %336 : vector<8x14xf32>
    %c2_i32_48 = arith.constant 2 : i32
    %338 = arith.addi %177, %c2_i32_48 : i32
    %c0_49 = arith.constant 0 : index
    %c0_50 = arith.constant 0 : index
    %339 = arith.index_cast %338 : i32 to index
    %c1_51 = arith.constant 1 : index
    %340 = vector.load %arg2[%c0_49, %c0_50, %339, %c1_51] : memref<1x3x16x16xf32, #tpu.memory_space<vmem>>, vector<1x1x8x14xf32>
    %341 = vector.shape_cast %340 : vector<1x1x8x14xf32> to vector<8x14xf32>
    %342 = vector.broadcast %13 : f32 to vector<8x14xf32>
    %343 = arith.mulf %342, %341 : vector<8x14xf32>
    %344 = arith.addf %322, %343 : vector<8x14xf32>
    %345 = vector.broadcast %40 : f32 to vector<8x14xf32>
    %346 = arith.mulf %345, %341 : vector<8x14xf32>
    %347 = arith.addf %325, %346 : vector<8x14xf32>
    %348 = vector.broadcast %67 : f32 to vector<8x14xf32>
    %349 = arith.mulf %348, %341 : vector<8x14xf32>
    %350 = arith.addf %328, %349 : vector<8x14xf32>
    %351 = vector.broadcast %94 : f32 to vector<8x14xf32>
    %352 = arith.mulf %351, %341 : vector<8x14xf32>
    %353 = arith.addf %331, %352 : vector<8x14xf32>
    %354 = vector.broadcast %121 : f32 to vector<8x14xf32>
    %355 = arith.mulf %354, %341 : vector<8x14xf32>
    %356 = arith.addf %334, %355 : vector<8x14xf32>
    %357 = vector.broadcast %148 : f32 to vector<8x14xf32>
    %358 = arith.mulf %357, %341 : vector<8x14xf32>
    %359 = arith.addf %337, %358 : vector<8x14xf32>
    %c2_i32_52 = arith.constant 2 : i32
    %360 = arith.addi %177, %c2_i32_52 : i32
    %c0_53 = arith.constant 0 : index
    %c0_54 = arith.constant 0 : index
    %361 = arith.index_cast %360 : i32 to index
    %c2_55 = arith.constant 2 : index
    %362 = vector.load %arg2[%c0_53, %c0_54, %361, %c2_55] : memref<1x3x16x16xf32, #tpu.memory_space<vmem>>, vector<1x1x8x14xf32>
    %363 = vector.shape_cast %362 : vector<1x1x8x14xf32> to vector<8x14xf32>
    %364 = vector.broadcast %14 : f32 to vector<8x14xf32>
    %365 = arith.mulf %364, %363 : vector<8x14xf32>
    %366 = arith.addf %344, %365 : vector<8x14xf32>
    %367 = vector.broadcast %41 : f32 to vector<8x14xf32>
    %368 = arith.mulf %367, %363 : vector<8x14xf32>
    %369 = arith.addf %347, %368 : vector<8x14xf32>
    %370 = vector.broadcast %68 : f32 to vector<8x14xf32>
    %371 = arith.mulf %370, %363 : vector<8x14xf32>
    %372 = arith.addf %350, %371 : vector<8x14xf32>
    %373 = vector.broadcast %95 : f32 to vector<8x14xf32>
    %374 = arith.mulf %373, %363 : vector<8x14xf32>
    %375 = arith.addf %353, %374 : vector<8x14xf32>
    %376 = vector.broadcast %122 : f32 to vector<8x14xf32>
    %377 = arith.mulf %376, %363 : vector<8x14xf32>
    %378 = arith.addf %356, %377 : vector<8x14xf32>
    %379 = vector.broadcast %149 : f32 to vector<8x14xf32>
    %380 = arith.mulf %379, %363 : vector<8x14xf32>
    %381 = arith.addf %359, %380 : vector<8x14xf32>
    %c0_i32_56 = arith.constant 0 : i32
    %382 = arith.addi %177, %c0_i32_56 : i32
    %c0_57 = arith.constant 0 : index
    %c1_58 = arith.constant 1 : index
    %383 = arith.index_cast %382 : i32 to index
    %c0_59 = arith.constant 0 : index
    %384 = vector.load %arg2[%c0_57, %c1_58, %383, %c0_59] : memref<1x3x16x16xf32, #tpu.memory_space<vmem>>, vector<1x1x8x14xf32>
    %385 = vector.shape_cast %384 : vector<1x1x8x14xf32> to vector<8x14xf32>
    %386 = vector.broadcast %15 : f32 to vector<8x14xf32>
    %387 = arith.mulf %386, %385 : vector<8x14xf32>
    %388 = arith.addf %366, %387 : vector<8x14xf32>
    %389 = vector.broadcast %42 : f32 to vector<8x14xf32>
    %390 = arith.mulf %389, %385 : vector<8x14xf32>
    %391 = arith.addf %369, %390 : vector<8x14xf32>
    %392 = vector.broadcast %69 : f32 to vector<8x14xf32>
    %393 = arith.mulf %392, %385 : vector<8x14xf32>
    %394 = arith.addf %372, %393 : vector<8x14xf32>
    %395 = vector.broadcast %96 : f32 to vector<8x14xf32>
    %396 = arith.mulf %395, %385 : vector<8x14xf32>
    %397 = arith.addf %375, %396 : vector<8x14xf32>
    %398 = vector.broadcast %123 : f32 to vector<8x14xf32>
    %399 = arith.mulf %398, %385 : vector<8x14xf32>
    %400 = arith.addf %378, %399 : vector<8x14xf32>
    %401 = vector.broadcast %150 : f32 to vector<8x14xf32>
    %402 = arith.mulf %401, %385 : vector<8x14xf32>
    %403 = arith.addf %381, %402 : vector<8x14xf32>
    %c0_i32_60 = arith.constant 0 : i32
    %404 = arith.addi %177, %c0_i32_60 : i32
    %c0_61 = arith.constant 0 : index
    %c1_62 = arith.constant 1 : index
    %405 = arith.index_cast %404 : i32 to index
    %c1_63 = arith.constant 1 : index
    %406 = vector.load %arg2[%c0_61, %c1_62, %405, %c1_63] : memref<1x3x16x16xf32, #tpu.memory_space<vmem>>, vector<1x1x8x14xf32>
    %407 = vector.shape_cast %406 : vector<1x1x8x14xf32> to vector<8x14xf32>
    %408 = vector.broadcast %16 : f32 to vector<8x14xf32>
    %409 = arith.mulf %408, %407 : vector<8x14xf32>
    %410 = arith.addf %388, %409 : vector<8x14xf32>
    %411 = vector.broadcast %43 : f32 to vector<8x14xf32>
    %412 = arith.mulf %411, %407 : vector<8x14xf32>
    %413 = arith.addf %391, %412 : vector<8x14xf32>
    %414 = vector.broadcast %70 : f32 to vector<8x14xf32>
    %415 = arith.mulf %414, %407 : vector<8x14xf32>
    %416 = arith.addf %394, %415 : vector<8x14xf32>
    %417 = vector.broadcast %97 : f32 to vector<8x14xf32>
    %418 = arith.mulf %417, %407 : vector<8x14xf32>
    %419 = arith.addf %397, %418 : vector<8x14xf32>
    %420 = vector.broadcast %124 : f32 to vector<8x14xf32>
    %421 = arith.mulf %420, %407 : vector<8x14xf32>
    %422 = arith.addf %400, %421 : vector<8x14xf32>
    %423 = vector.broadcast %151 : f32 to vector<8x14xf32>
    %424 = arith.mulf %423, %407 : vector<8x14xf32>
    %425 = arith.addf %403, %424 : vector<8x14xf32>
    %c0_i32_64 = arith.constant 0 : i32
    %426 = arith.addi %177, %c0_i32_64 : i32
    %c0_65 = arith.constant 0 : index
    %c1_66 = arith.constant 1 : index
    %427 = arith.index_cast %426 : i32 to index
    %c2_67 = arith.constant 2 : index
    %428 = vector.load %arg2[%c0_65, %c1_66, %427, %c2_67] : memref<1x3x16x16xf32, #tpu.memory_space<vmem>>, vector<1x1x8x14xf32>
    %429 = vector.shape_cast %428 : vector<1x1x8x14xf32> to vector<8x14xf32>
    %430 = vector.broadcast %17 : f32 to vector<8x14xf32>
    %431 = arith.mulf %430, %429 : vector<8x14xf32>
    %432 = arith.addf %410, %431 : vector<8x14xf32>
    %433 = vector.broadcast %44 : f32 to vector<8x14xf32>
    %434 = arith.mulf %433, %429 : vector<8x14xf32>
    %435 = arith.addf %413, %434 : vector<8x14xf32>
    %436 = vector.broadcast %71 : f32 to vector<8x14xf32>
    %437 = arith.mulf %436, %429 : vector<8x14xf32>
    %438 = arith.addf %416, %437 : vector<8x14xf32>
    %439 = vector.broadcast %98 : f32 to vector<8x14xf32>
    %440 = arith.mulf %439, %429 : vector<8x14xf32>
    %441 = arith.addf %419, %440 : vector<8x14xf32>
    %442 = vector.broadcast %125 : f32 to vector<8x14xf32>
    %443 = arith.mulf %442, %429 : vector<8x14xf32>
    %444 = arith.addf %422, %443 : vector<8x14xf32>
    %445 = vector.broadcast %152 : f32 to vector<8x14xf32>
    %446 = arith.mulf %445, %429 : vector<8x14xf32>
    %447 = arith.addf %425, %446 : vector<8x14xf32>
    %c1_i32_68 = arith.constant 1 : i32
    %448 = arith.addi %177, %c1_i32_68 : i32
    %c0_69 = arith.constant 0 : index
    %c1_70 = arith.constant 1 : index
    %449 = arith.index_cast %448 : i32 to index
    %c0_71 = arith.constant 0 : index
    %450 = vector.load %arg2[%c0_69, %c1_70, %449, %c0_71] : memref<1x3x16x16xf32, #tpu.memory_space<vmem>>, vector<1x1x8x14xf32>
    %451 = vector.shape_cast %450 : vector<1x1x8x14xf32> to vector<8x14xf32>
    %452 = vector.broadcast %18 : f32 to vector<8x14xf32>
    %453 = arith.mulf %452, %451 : vector<8x14xf32>
    %454 = arith.addf %432, %453 : vector<8x14xf32>
    %455 = vector.broadcast %45 : f32 to vector<8x14xf32>
    %456 = arith.mulf %455, %451 : vector<8x14xf32>
    %457 = arith.addf %435, %456 : vector<8x14xf32>
    %458 = vector.broadcast %72 : f32 to vector<8x14xf32>
    %459 = arith.mulf %458, %451 : vector<8x14xf32>
    %460 = arith.addf %438, %459 : vector<8x14xf32>
    %461 = vector.broadcast %99 : f32 to vector<8x14xf32>
    %462 = arith.mulf %461, %451 : vector<8x14xf32>
    %463 = arith.addf %441, %462 : vector<8x14xf32>
    %464 = vector.broadcast %126 : f32 to vector<8x14xf32>
    %465 = arith.mulf %464, %451 : vector<8x14xf32>
    %466 = arith.addf %444, %465 : vector<8x14xf32>
    %467 = vector.broadcast %153 : f32 to vector<8x14xf32>
    %468 = arith.mulf %467, %451 : vector<8x14xf32>
    %469 = arith.addf %447, %468 : vector<8x14xf32>
    %c1_i32_72 = arith.constant 1 : i32
    %470 = arith.addi %177, %c1_i32_72 : i32
    %c0_73 = arith.constant 0 : index
    %c1_74 = arith.constant 1 : index
    %471 = arith.index_cast %470 : i32 to index
    %c1_75 = arith.constant 1 : index
    %472 = vector.load %arg2[%c0_73, %c1_74, %471, %c1_75] : memref<1x3x16x16xf32, #tpu.memory_space<vmem>>, vector<1x1x8x14xf32>
    %473 = vector.shape_cast %472 : vector<1x1x8x14xf32> to vector<8x14xf32>
    %474 = vector.broadcast %19 : f32 to vector<8x14xf32>
    %475 = arith.mulf %474, %473 : vector<8x14xf32>
    %476 = arith.addf %454, %475 : vector<8x14xf32>
    %477 = vector.broadcast %46 : f32 to vector<8x14xf32>
    %478 = arith.mulf %477, %473 : vector<8x14xf32>
    %479 = arith.addf %457, %478 : vector<8x14xf32>
    %480 = vector.broadcast %73 : f32 to vector<8x14xf32>
    %481 = arith.mulf %480, %473 : vector<8x14xf32>
    %482 = arith.addf %460, %481 : vector<8x14xf32>
    %483 = vector.broadcast %100 : f32 to vector<8x14xf32>
    %484 = arith.mulf %483, %473 : vector<8x14xf32>
    %485 = arith.addf %463, %484 : vector<8x14xf32>
    %486 = vector.broadcast %127 : f32 to vector<8x14xf32>
    %487 = arith.mulf %486, %473 : vector<8x14xf32>
    %488 = arith.addf %466, %487 : vector<8x14xf32>
    %489 = vector.broadcast %154 : f32 to vector<8x14xf32>
    %490 = arith.mulf %489, %473 : vector<8x14xf32>
    %491 = arith.addf %469, %490 : vector<8x14xf32>
    %c1_i32_76 = arith.constant 1 : i32
    %492 = arith.addi %177, %c1_i32_76 : i32
    %c0_77 = arith.constant 0 : index
    %c1_78 = arith.constant 1 : index
    %493 = arith.index_cast %492 : i32 to index
    %c2_79 = arith.constant 2 : index
    %494 = vector.load %arg2[%c0_77, %c1_78, %493, %c2_79] : memref<1x3x16x16xf32, #tpu.memory_space<vmem>>, vector<1x1x8x14xf32>
    %495 = vector.shape_cast %494 : vector<1x1x8x14xf32> to vector<8x14xf32>
    %496 = vector.broadcast %20 : f32 to vector<8x14xf32>
    %497 = arith.mulf %496, %495 : vector<8x14xf32>
    %498 = arith.addf %476, %497 : vector<8x14xf32>
    %499 = vector.broadcast %47 : f32 to vector<8x14xf32>
    %500 = arith.mulf %499, %495 : vector<8x14xf32>
    %501 = arith.addf %479, %500 : vector<8x14xf32>
    %502 = vector.broadcast %74 : f32 to vector<8x14xf32>
    %503 = arith.mulf %502, %495 : vector<8x14xf32>
    %504 = arith.addf %482, %503 : vector<8x14xf32>
    %505 = vector.broadcast %101 : f32 to vector<8x14xf32>
    %506 = arith.mulf %505, %495 : vector<8x14xf32>
    %507 = arith.addf %485, %506 : vector<8x14xf32>
    %508 = vector.broadcast %128 : f32 to vector<8x14xf32>
    %509 = arith.mulf %508, %495 : vector<8x14xf32>
    %510 = arith.addf %488, %509 : vector<8x14xf32>
    %511 = vector.broadcast %155 : f32 to vector<8x14xf32>
    %512 = arith.mulf %511, %495 : vector<8x14xf32>
    %513 = arith.addf %491, %512 : vector<8x14xf32>
    %c2_i32_80 = arith.constant 2 : i32
    %514 = arith.addi %177, %c2_i32_80 : i32
    %c0_81 = arith.constant 0 : index
    %c1_82 = arith.constant 1 : index
    %515 = arith.index_cast %514 : i32 to index
    %c0_83 = arith.constant 0 : index
    %516 = vector.load %arg2[%c0_81, %c1_82, %515, %c0_83] : memref<1x3x16x16xf32, #tpu.memory_space<vmem>>, vector<1x1x8x14xf32>
    %517 = vector.shape_cast %516 : vector<1x1x8x14xf32> to vector<8x14xf32>
    %518 = vector.broadcast %21 : f32 to vector<8x14xf32>
    %519 = arith.mulf %518, %517 : vector<8x14xf32>
    %520 = arith.addf %498, %519 : vector<8x14xf32>
    %521 = vector.broadcast %48 : f32 to vector<8x14xf32>
    %522 = arith.mulf %521, %517 : vector<8x14xf32>
    %523 = arith.addf %501, %522 : vector<8x14xf32>
    %524 = vector.broadcast %75 : f32 to vector<8x14xf32>
    %525 = arith.mulf %524, %517 : vector<8x14xf32>
    %526 = arith.addf %504, %525 : vector<8x14xf32>
    %527 = vector.broadcast %102 : f32 to vector<8x14xf32>
    %528 = arith.mulf %527, %517 : vector<8x14xf32>
    %529 = arith.addf %507, %528 : vector<8x14xf32>
    %530 = vector.broadcast %129 : f32 to vector<8x14xf32>
    %531 = arith.mulf %530, %517 : vector<8x14xf32>
    %532 = arith.addf %510, %531 : vector<8x14xf32>
    %533 = vector.broadcast %156 : f32 to vector<8x14xf32>
    %534 = arith.mulf %533, %517 : vector<8x14xf32>
    %535 = arith.addf %513, %534 : vector<8x14xf32>
    %c2_i32_84 = arith.constant 2 : i32
    %536 = arith.addi %177, %c2_i32_84 : i32
    %c0_85 = arith.constant 0 : index
    %c1_86 = arith.constant 1 : index
    %537 = arith.index_cast %536 : i32 to index
    %c1_87 = arith.constant 1 : index
    %538 = vector.load %arg2[%c0_85, %c1_86, %537, %c1_87] : memref<1x3x16x16xf32, #tpu.memory_space<vmem>>, vector<1x1x8x14xf32>
    %539 = vector.shape_cast %538 : vector<1x1x8x14xf32> to vector<8x14xf32>
    %540 = vector.broadcast %22 : f32 to vector<8x14xf32>
    %541 = arith.mulf %540, %539 : vector<8x14xf32>
    %542 = arith.addf %520, %541 : vector<8x14xf32>
    %543 = vector.broadcast %49 : f32 to vector<8x14xf32>
    %544 = arith.mulf %543, %539 : vector<8x14xf32>
    %545 = arith.addf %523, %544 : vector<8x14xf32>
    %546 = vector.broadcast %76 : f32 to vector<8x14xf32>
    %547 = arith.mulf %546, %539 : vector<8x14xf32>
    %548 = arith.addf %526, %547 : vector<8x14xf32>
    %549 = vector.broadcast %103 : f32 to vector<8x14xf32>
    %550 = arith.mulf %549, %539 : vector<8x14xf32>
    %551 = arith.addf %529, %550 : vector<8x14xf32>
    %552 = vector.broadcast %130 : f32 to vector<8x14xf32>
    %553 = arith.mulf %552, %539 : vector<8x14xf32>
    %554 = arith.addf %532, %553 : vector<8x14xf32>
    %555 = vector.broadcast %157 : f32 to vector<8x14xf32>
    %556 = arith.mulf %555, %539 : vector<8x14xf32>
    %557 = arith.addf %535, %556 : vector<8x14xf32>
    %c2_i32_88 = arith.constant 2 : i32
    %558 = arith.addi %177, %c2_i32_88 : i32
    %c0_89 = arith.constant 0 : index
    %c1_90 = arith.constant 1 : index
    %559 = arith.index_cast %558 : i32 to index
    %c2_91 = arith.constant 2 : index
    %560 = vector.load %arg2[%c0_89, %c1_90, %559, %c2_91] : memref<1x3x16x16xf32, #tpu.memory_space<vmem>>, vector<1x1x8x14xf32>
    %561 = vector.shape_cast %560 : vector<1x1x8x14xf32> to vector<8x14xf32>
    %562 = vector.broadcast %23 : f32 to vector<8x14xf32>
    %563 = arith.mulf %562, %561 : vector<8x14xf32>
    %564 = arith.addf %542, %563 : vector<8x14xf32>
    %565 = vector.broadcast %50 : f32 to vector<8x14xf32>
    %566 = arith.mulf %565, %561 : vector<8x14xf32>
    %567 = arith.addf %545, %566 : vector<8x14xf32>
    %568 = vector.broadcast %77 : f32 to vector<8x14xf32>
    %569 = arith.mulf %568, %561 : vector<8x14xf32>
    %570 = arith.addf %548, %569 : vector<8x14xf32>
    %571 = vector.broadcast %104 : f32 to vector<8x14xf32>
    %572 = arith.mulf %571, %561 : vector<8x14xf32>
    %573 = arith.addf %551, %572 : vector<8x14xf32>
    %574 = vector.broadcast %131 : f32 to vector<8x14xf32>
    %575 = arith.mulf %574, %561 : vector<8x14xf32>
    %576 = arith.addf %554, %575 : vector<8x14xf32>
    %577 = vector.broadcast %158 : f32 to vector<8x14xf32>
    %578 = arith.mulf %577, %561 : vector<8x14xf32>
    %579 = arith.addf %557, %578 : vector<8x14xf32>
    %c0_i32_92 = arith.constant 0 : i32
    %580 = arith.addi %177, %c0_i32_92 : i32
    %c0_93 = arith.constant 0 : index
    %c2_94 = arith.constant 2 : index
    %581 = arith.index_cast %580 : i32 to index
    %c0_95 = arith.constant 0 : index
    %582 = vector.load %arg2[%c0_93, %c2_94, %581, %c0_95] : memref<1x3x16x16xf32, #tpu.memory_space<vmem>>, vector<1x1x8x14xf32>
    %583 = vector.shape_cast %582 : vector<1x1x8x14xf32> to vector<8x14xf32>
    %584 = vector.broadcast %24 : f32 to vector<8x14xf32>
    %585 = arith.mulf %584, %583 : vector<8x14xf32>
    %586 = arith.addf %564, %585 : vector<8x14xf32>
    %587 = vector.broadcast %51 : f32 to vector<8x14xf32>
    %588 = arith.mulf %587, %583 : vector<8x14xf32>
    %589 = arith.addf %567, %588 : vector<8x14xf32>
    %590 = vector.broadcast %78 : f32 to vector<8x14xf32>
    %591 = arith.mulf %590, %583 : vector<8x14xf32>
    %592 = arith.addf %570, %591 : vector<8x14xf32>
    %593 = vector.broadcast %105 : f32 to vector<8x14xf32>
    %594 = arith.mulf %593, %583 : vector<8x14xf32>
    %595 = arith.addf %573, %594 : vector<8x14xf32>
    %596 = vector.broadcast %132 : f32 to vector<8x14xf32>
    %597 = arith.mulf %596, %583 : vector<8x14xf32>
    %598 = arith.addf %576, %597 : vector<8x14xf32>
    %599 = vector.broadcast %159 : f32 to vector<8x14xf32>
    %600 = arith.mulf %599, %583 : vector<8x14xf32>
    %601 = arith.addf %579, %600 : vector<8x14xf32>
    %c0_i32_96 = arith.constant 0 : i32
    %602 = arith.addi %177, %c0_i32_96 : i32
    %c0_97 = arith.constant 0 : index
    %c2_98 = arith.constant 2 : index
    %603 = arith.index_cast %602 : i32 to index
    %c1_99 = arith.constant 1 : index
    %604 = vector.load %arg2[%c0_97, %c2_98, %603, %c1_99] : memref<1x3x16x16xf32, #tpu.memory_space<vmem>>, vector<1x1x8x14xf32>
    %605 = vector.shape_cast %604 : vector<1x1x8x14xf32> to vector<8x14xf32>
    %606 = vector.broadcast %25 : f32 to vector<8x14xf32>
    %607 = arith.mulf %606, %605 : vector<8x14xf32>
    %608 = arith.addf %586, %607 : vector<8x14xf32>
    %609 = vector.broadcast %52 : f32 to vector<8x14xf32>
    %610 = arith.mulf %609, %605 : vector<8x14xf32>
    %611 = arith.addf %589, %610 : vector<8x14xf32>
    %612 = vector.broadcast %79 : f32 to vector<8x14xf32>
    %613 = arith.mulf %612, %605 : vector<8x14xf32>
    %614 = arith.addf %592, %613 : vector<8x14xf32>
    %615 = vector.broadcast %106 : f32 to vector<8x14xf32>
    %616 = arith.mulf %615, %605 : vector<8x14xf32>
    %617 = arith.addf %595, %616 : vector<8x14xf32>
    %618 = vector.broadcast %133 : f32 to vector<8x14xf32>
    %619 = arith.mulf %618, %605 : vector<8x14xf32>
    %620 = arith.addf %598, %619 : vector<8x14xf32>
    %621 = vector.broadcast %160 : f32 to vector<8x14xf32>
    %622 = arith.mulf %621, %605 : vector<8x14xf32>
    %623 = arith.addf %601, %622 : vector<8x14xf32>
    %c0_i32_100 = arith.constant 0 : i32
    %624 = arith.addi %177, %c0_i32_100 : i32
    %c0_101 = arith.constant 0 : index
    %c2_102 = arith.constant 2 : index
    %625 = arith.index_cast %624 : i32 to index
    %c2_103 = arith.constant 2 : index
    %626 = vector.load %arg2[%c0_101, %c2_102, %625, %c2_103] : memref<1x3x16x16xf32, #tpu.memory_space<vmem>>, vector<1x1x8x14xf32>
    %627 = vector.shape_cast %626 : vector<1x1x8x14xf32> to vector<8x14xf32>
    %628 = vector.broadcast %26 : f32 to vector<8x14xf32>
    %629 = arith.mulf %628, %627 : vector<8x14xf32>
    %630 = arith.addf %608, %629 : vector<8x14xf32>
    %631 = vector.broadcast %53 : f32 to vector<8x14xf32>
    %632 = arith.mulf %631, %627 : vector<8x14xf32>
    %633 = arith.addf %611, %632 : vector<8x14xf32>
    %634 = vector.broadcast %80 : f32 to vector<8x14xf32>
    %635 = arith.mulf %634, %627 : vector<8x14xf32>
    %636 = arith.addf %614, %635 : vector<8x14xf32>
    %637 = vector.broadcast %107 : f32 to vector<8x14xf32>
    %638 = arith.mulf %637, %627 : vector<8x14xf32>
    %639 = arith.addf %617, %638 : vector<8x14xf32>
    %640 = vector.broadcast %134 : f32 to vector<8x14xf32>
    %641 = arith.mulf %640, %627 : vector<8x14xf32>
    %642 = arith.addf %620, %641 : vector<8x14xf32>
    %643 = vector.broadcast %161 : f32 to vector<8x14xf32>
    %644 = arith.mulf %643, %627 : vector<8x14xf32>
    %645 = arith.addf %623, %644 : vector<8x14xf32>
    %c1_i32_104 = arith.constant 1 : i32
    %646 = arith.addi %177, %c1_i32_104 : i32
    %c0_105 = arith.constant 0 : index
    %c2_106 = arith.constant 2 : index
    %647 = arith.index_cast %646 : i32 to index
    %c0_107 = arith.constant 0 : index
    %648 = vector.load %arg2[%c0_105, %c2_106, %647, %c0_107] : memref<1x3x16x16xf32, #tpu.memory_space<vmem>>, vector<1x1x8x14xf32>
    %649 = vector.shape_cast %648 : vector<1x1x8x14xf32> to vector<8x14xf32>
    %650 = vector.broadcast %27 : f32 to vector<8x14xf32>
    %651 = arith.mulf %650, %649 : vector<8x14xf32>
    %652 = arith.addf %630, %651 : vector<8x14xf32>
    %653 = vector.broadcast %54 : f32 to vector<8x14xf32>
    %654 = arith.mulf %653, %649 : vector<8x14xf32>
    %655 = arith.addf %633, %654 : vector<8x14xf32>
    %656 = vector.broadcast %81 : f32 to vector<8x14xf32>
    %657 = arith.mulf %656, %649 : vector<8x14xf32>
    %658 = arith.addf %636, %657 : vector<8x14xf32>
    %659 = vector.broadcast %108 : f32 to vector<8x14xf32>
    %660 = arith.mulf %659, %649 : vector<8x14xf32>
    %661 = arith.addf %639, %660 : vector<8x14xf32>
    %662 = vector.broadcast %135 : f32 to vector<8x14xf32>
    %663 = arith.mulf %662, %649 : vector<8x14xf32>
    %664 = arith.addf %642, %663 : vector<8x14xf32>
    %665 = vector.broadcast %162 : f32 to vector<8x14xf32>
    %666 = arith.mulf %665, %649 : vector<8x14xf32>
    %667 = arith.addf %645, %666 : vector<8x14xf32>
    %c1_i32_108 = arith.constant 1 : i32
    %668 = arith.addi %177, %c1_i32_108 : i32
    %c0_109 = arith.constant 0 : index
    %c2_110 = arith.constant 2 : index
    %669 = arith.index_cast %668 : i32 to index
    %c1_111 = arith.constant 1 : index
    %670 = vector.load %arg2[%c0_109, %c2_110, %669, %c1_111] : memref<1x3x16x16xf32, #tpu.memory_space<vmem>>, vector<1x1x8x14xf32>
    %671 = vector.shape_cast %670 : vector<1x1x8x14xf32> to vector<8x14xf32>
    %672 = vector.broadcast %28 : f32 to vector<8x14xf32>
    %673 = arith.mulf %672, %671 : vector<8x14xf32>
    %674 = arith.addf %652, %673 : vector<8x14xf32>
    %675 = vector.broadcast %55 : f32 to vector<8x14xf32>
    %676 = arith.mulf %675, %671 : vector<8x14xf32>
    %677 = arith.addf %655, %676 : vector<8x14xf32>
    %678 = vector.broadcast %82 : f32 to vector<8x14xf32>
    %679 = arith.mulf %678, %671 : vector<8x14xf32>
    %680 = arith.addf %658, %679 : vector<8x14xf32>
    %681 = vector.broadcast %109 : f32 to vector<8x14xf32>
    %682 = arith.mulf %681, %671 : vector<8x14xf32>
    %683 = arith.addf %661, %682 : vector<8x14xf32>
    %684 = vector.broadcast %136 : f32 to vector<8x14xf32>
    %685 = arith.mulf %684, %671 : vector<8x14xf32>
    %686 = arith.addf %664, %685 : vector<8x14xf32>
    %687 = vector.broadcast %163 : f32 to vector<8x14xf32>
    %688 = arith.mulf %687, %671 : vector<8x14xf32>
    %689 = arith.addf %667, %688 : vector<8x14xf32>
    %c1_i32_112 = arith.constant 1 : i32
    %690 = arith.addi %177, %c1_i32_112 : i32
    %c0_113 = arith.constant 0 : index
    %c2_114 = arith.constant 2 : index
    %691 = arith.index_cast %690 : i32 to index
    %c2_115 = arith.constant 2 : index
    %692 = vector.load %arg2[%c0_113, %c2_114, %691, %c2_115] : memref<1x3x16x16xf32, #tpu.memory_space<vmem>>, vector<1x1x8x14xf32>
    %693 = vector.shape_cast %692 : vector<1x1x8x14xf32> to vector<8x14xf32>
    %694 = vector.broadcast %29 : f32 to vector<8x14xf32>
    %695 = arith.mulf %694, %693 : vector<8x14xf32>
    %696 = arith.addf %674, %695 : vector<8x14xf32>
    %697 = vector.broadcast %56 : f32 to vector<8x14xf32>
    %698 = arith.mulf %697, %693 : vector<8x14xf32>
    %699 = arith.addf %677, %698 : vector<8x14xf32>
    %700 = vector.broadcast %83 : f32 to vector<8x14xf32>
    %701 = arith.mulf %700, %693 : vector<8x14xf32>
    %702 = arith.addf %680, %701 : vector<8x14xf32>
    %703 = vector.broadcast %110 : f32 to vector<8x14xf32>
    %704 = arith.mulf %703, %693 : vector<8x14xf32>
    %705 = arith.addf %683, %704 : vector<8x14xf32>
    %706 = vector.broadcast %137 : f32 to vector<8x14xf32>
    %707 = arith.mulf %706, %693 : vector<8x14xf32>
    %708 = arith.addf %686, %707 : vector<8x14xf32>
    %709 = vector.broadcast %164 : f32 to vector<8x14xf32>
    %710 = arith.mulf %709, %693 : vector<8x14xf32>
    %711 = arith.addf %689, %710 : vector<8x14xf32>
    %c2_i32_116 = arith.constant 2 : i32
    %712 = arith.addi %177, %c2_i32_116 : i32
    %c0_117 = arith.constant 0 : index
    %c2_118 = arith.constant 2 : index
    %713 = arith.index_cast %712 : i32 to index
    %c0_119 = arith.constant 0 : index
    %714 = vector.load %arg2[%c0_117, %c2_118, %713, %c0_119] : memref<1x3x16x16xf32, #tpu.memory_space<vmem>>, vector<1x1x8x14xf32>
    %715 = vector.shape_cast %714 : vector<1x1x8x14xf32> to vector<8x14xf32>
    %716 = vector.broadcast %30 : f32 to vector<8x14xf32>
    %717 = arith.mulf %716, %715 : vector<8x14xf32>
    %718 = arith.addf %696, %717 : vector<8x14xf32>
    %719 = vector.broadcast %57 : f32 to vector<8x14xf32>
    %720 = arith.mulf %719, %715 : vector<8x14xf32>
    %721 = arith.addf %699, %720 : vector<8x14xf32>
    %722 = vector.broadcast %84 : f32 to vector<8x14xf32>
    %723 = arith.mulf %722, %715 : vector<8x14xf32>
    %724 = arith.addf %702, %723 : vector<8x14xf32>
    %725 = vector.broadcast %111 : f32 to vector<8x14xf32>
    %726 = arith.mulf %725, %715 : vector<8x14xf32>
    %727 = arith.addf %705, %726 : vector<8x14xf32>
    %728 = vector.broadcast %138 : f32 to vector<8x14xf32>
    %729 = arith.mulf %728, %715 : vector<8x14xf32>
    %730 = arith.addf %708, %729 : vector<8x14xf32>
    %731 = vector.broadcast %165 : f32 to vector<8x14xf32>
    %732 = arith.mulf %731, %715 : vector<8x14xf32>
    %733 = arith.addf %711, %732 : vector<8x14xf32>
    %c2_i32_120 = arith.constant 2 : i32
    %734 = arith.addi %177, %c2_i32_120 : i32
    %c0_121 = arith.constant 0 : index
    %c2_122 = arith.constant 2 : index
    %735 = arith.index_cast %734 : i32 to index
    %c1_123 = arith.constant 1 : index
    %736 = vector.load %arg2[%c0_121, %c2_122, %735, %c1_123] : memref<1x3x16x16xf32, #tpu.memory_space<vmem>>, vector<1x1x8x14xf32>
    %737 = vector.shape_cast %736 : vector<1x1x8x14xf32> to vector<8x14xf32>
    %738 = vector.broadcast %31 : f32 to vector<8x14xf32>
    %739 = arith.mulf %738, %737 : vector<8x14xf32>
    %740 = arith.addf %718, %739 : vector<8x14xf32>
    %741 = vector.broadcast %58 : f32 to vector<8x14xf32>
    %742 = arith.mulf %741, %737 : vector<8x14xf32>
    %743 = arith.addf %721, %742 : vector<8x14xf32>
    %744 = vector.broadcast %85 : f32 to vector<8x14xf32>
    %745 = arith.mulf %744, %737 : vector<8x14xf32>
    %746 = arith.addf %724, %745 : vector<8x14xf32>
    %747 = vector.broadcast %112 : f32 to vector<8x14xf32>
    %748 = arith.mulf %747, %737 : vector<8x14xf32>
    %749 = arith.addf %727, %748 : vector<8x14xf32>
    %750 = vector.broadcast %139 : f32 to vector<8x14xf32>
    %751 = arith.mulf %750, %737 : vector<8x14xf32>
    %752 = arith.addf %730, %751 : vector<8x14xf32>
    %753 = vector.broadcast %166 : f32 to vector<8x14xf32>
    %754 = arith.mulf %753, %737 : vector<8x14xf32>
    %755 = arith.addf %733, %754 : vector<8x14xf32>
    %c2_i32_124 = arith.constant 2 : i32
    %756 = arith.addi %177, %c2_i32_124 : i32
    %c0_125 = arith.constant 0 : index
    %c2_126 = arith.constant 2 : index
    %757 = arith.index_cast %756 : i32 to index
    %c2_127 = arith.constant 2 : index
    %758 = vector.load %arg2[%c0_125, %c2_126, %757, %c2_127] : memref<1x3x16x16xf32, #tpu.memory_space<vmem>>, vector<1x1x8x14xf32>
    %759 = vector.shape_cast %758 : vector<1x1x8x14xf32> to vector<8x14xf32>
    %760 = vector.broadcast %32 : f32 to vector<8x14xf32>
    %761 = arith.mulf %760, %759 : vector<8x14xf32>
    %762 = arith.addf %740, %761 : vector<8x14xf32>
    %763 = vector.broadcast %59 : f32 to vector<8x14xf32>
    %764 = arith.mulf %763, %759 : vector<8x14xf32>
    %765 = arith.addf %743, %764 : vector<8x14xf32>
    %766 = vector.broadcast %86 : f32 to vector<8x14xf32>
    %767 = arith.mulf %766, %759 : vector<8x14xf32>
    %768 = arith.addf %746, %767 : vector<8x14xf32>
    %769 = vector.broadcast %113 : f32 to vector<8x14xf32>
    %770 = arith.mulf %769, %759 : vector<8x14xf32>
    %771 = arith.addf %749, %770 : vector<8x14xf32>
    %772 = vector.broadcast %140 : f32 to vector<8x14xf32>
    %773 = arith.mulf %772, %759 : vector<8x14xf32>
    %774 = arith.addf %752, %773 : vector<8x14xf32>
    %775 = vector.broadcast %167 : f32 to vector<8x14xf32>
    %776 = arith.mulf %775, %759 : vector<8x14xf32>
    %777 = arith.addf %755, %776 : vector<8x14xf32>
    %c0_128 = arith.constant 0 : index
    %c0_129 = arith.constant 0 : index
    %778 = arith.index_cast %177 : i32 to index
    %c0_130 = arith.constant 0 : index
    %779 = vector.load %arg6[%c0_128, %c0_129, %778, %c0_130] : memref<1x6x16x14xf32, #tpu.memory_space<vmem>>, vector<1x1x8x14xf32>
    %780 = vector.shape_cast %779 : vector<1x1x8x14xf32> to vector<8x14xf32>
    %781 = vector.shape_cast %762 : vector<8x14xf32> to vector<1x1x8x14xf32>
    tpu.vector_store %arg6[%c0_128, %c0_129, %778, %c0_130], %781 {strides = array<i32>} : memref<1x6x16x14xf32, #tpu.memory_space<vmem>>, vector<1x1x8x14xf32>,
    %c0_131 = arith.constant 0 : index
    %c1_132 = arith.constant 1 : index
    %782 = arith.index_cast %177 : i32 to index
    %c0_133 = arith.constant 0 : index
    %783 = vector.load %arg6[%c0_131, %c1_132, %782, %c0_133] : memref<1x6x16x14xf32, #tpu.memory_space<vmem>>, vector<1x1x8x14xf32>
    %784 = vector.shape_cast %783 : vector<1x1x8x14xf32> to vector<8x14xf32>
    %785 = vector.shape_cast %765 : vector<8x14xf32> to vector<1x1x8x14xf32>
    tpu.vector_store %arg6[%c0_131, %c1_132, %782, %c0_133], %785 {strides = array<i32>} : memref<1x6x16x14xf32, #tpu.memory_space<vmem>>, vector<1x1x8x14xf32>,
    %c0_134 = arith.constant 0 : index
    %c2_135 = arith.constant 2 : index
    %786 = arith.index_cast %177 : i32 to index
    %c0_136 = arith.constant 0 : index
    %787 = vector.load %arg6[%c0_134, %c2_135, %786, %c0_136] : memref<1x6x16x14xf32, #tpu.memory_space<vmem>>, vector<1x1x8x14xf32>
    %788 = vector.shape_cast %787 : vector<1x1x8x14xf32> to vector<8x14xf32>
    %789 = vector.shape_cast %768 : vector<8x14xf32> to vector<1x1x8x14xf32>
    tpu.vector_store %arg6[%c0_134, %c2_135, %786, %c0_136], %789 {strides = array<i32>} : memref<1x6x16x14xf32, #tpu.memory_space<vmem>>, vector<1x1x8x14xf32>,
    %c0_137 = arith.constant 0 : index
    %c3_138 = arith.constant 3 : index
    %790 = arith.index_cast %177 : i32 to index
    %c0_139 = arith.constant 0 : index
    %791 = vector.load %arg6[%c0_137, %c3_138, %790, %c0_139] : memref<1x6x16x14xf32, #tpu.memory_space<vmem>>, vector<1x1x8x14xf32>
    %792 = vector.shape_cast %791 : vector<1x1x8x14xf32> to vector<8x14xf32>
    %793 = vector.shape_cast %771 : vector<8x14xf32> to vector<1x1x8x14xf32>
    tpu.vector_store %arg6[%c0_137, %c3_138, %790, %c0_139], %793 {strides = array<i32>} : memref<1x6x16x14xf32, #tpu.memory_space<vmem>>, vector<1x1x8x14xf32>,
    %c0_140 = arith.constant 0 : index
    %c4_141 = arith.constant 4 : index
    %794 = arith.index_cast %177 : i32 to index
    %c0_142 = arith.constant 0 : index
    %795 = vector.load %arg6[%c0_140, %c4_141, %794, %c0_142] : memref<1x6x16x14xf32, #tpu.memory_space<vmem>>, vector<1x1x8x14xf32>
    %796 = vector.shape_cast %795 : vector<1x1x8x14xf32> to vector<8x14xf32>
    %797 = vector.shape_cast %774 : vector<8x14xf32> to vector<1x1x8x14xf32>
    tpu.vector_store %arg6[%c0_140, %c4_141, %794, %c0_142], %797 {strides = array<i32>} : memref<1x6x16x14xf32, #tpu.memory_space<vmem>>, vector<1x1x8x14xf32>,
    %c0_143 = arith.constant 0 : index
    %c5_144 = arith.constant 5 : index
    %798 = arith.index_cast %177 : i32 to index
    %c0_145 = arith.constant 0 : index
    %799 = vector.load %arg6[%c0_143, %c5_144, %798, %c0_145] : memref<1x6x16x14xf32, #tpu.memory_space<vmem>>, vector<1x1x8x14xf32>
    %800 = vector.shape_cast %799 : vector<1x1x8x14xf32> to vector<8x14xf32>
    %801 = vector.shape_cast %777 : vector<8x14xf32> to vector<1x1x8x14xf32>
    tpu.vector_store %arg6[%c0_143, %c5_144, %798, %c0_145], %801 {strides = array<i32>} : memref<1x6x16x14xf32, #tpu.memory_space<vmem>>, vector<1x1x8x14xf32>,
    %c1_i32_146 = arith.constant 1 : i32
    %802 = vector.broadcast %168 : f32 to vector<8x14xf32>
    %803 = vector.broadcast %169 : f32 to vector<8x14xf32>
    %804 = vector.broadcast %170 : f32 to vector<8x14xf32>
    %805 = vector.broadcast %171 : f32 to vector<8x14xf32>
    %806 = vector.broadcast %172 : f32 to vector<8x14xf32>
    %807 = vector.broadcast %173 : f32 to vector<8x14xf32>
    %c0_147 = arith.constant 0 : index
    %c0_148 = arith.constant 0 : index
    %c0_149 = arith.constant 0 : index
    %808 = vector.load %arg7[%c0_147, %c0_148, %c0_149] : memref<3x16x16xf32, #tpu.memory_space<vmem>>, vector<1x8x14xf32>
    %809 = vector.shape_cast %808 : vector<1x8x14xf32> to vector<8x14xf32>
    %810 = vector.broadcast %6 : f32 to vector<8x14xf32>
    %811 = arith.mulf %810, %809 : vector<8x14xf32>
    %812 = arith.addf %802, %811 : vector<8x14xf32>
    %813 = vector.broadcast %33 : f32 to vector<8x14xf32>
    %814 = arith.mulf %813, %809 : vector<8x14xf32>
    %815 = arith.addf %803, %814 : vector<8x14xf32>
    %816 = vector.broadcast %60 : f32 to vector<8x14xf32>
    %817 = arith.mulf %816, %809 : vector<8x14xf32>
    %818 = arith.addf %804, %817 : vector<8x14xf32>
    %819 = vector.broadcast %87 : f32 to vector<8x14xf32>
    %820 = arith.mulf %819, %809 : vector<8x14xf32>
    %821 = arith.addf %805, %820 : vector<8x14xf32>
    %822 = vector.broadcast %114 : f32 to vector<8x14xf32>
    %823 = arith.mulf %822, %809 : vector<8x14xf32>
    %824 = arith.addf %806, %823 : vector<8x14xf32>
    %825 = vector.broadcast %141 : f32 to vector<8x14xf32>
    %826 = arith.mulf %825, %809 : vector<8x14xf32>
    %827 = arith.addf %807, %826 : vector<8x14xf32>
    %c0_150 = arith.constant 0 : index
    %c0_151 = arith.constant 0 : index
    %c1_152 = arith.constant 1 : index
    %828 = vector.load %arg7[%c0_150, %c0_151, %c1_152] : memref<3x16x16xf32, #tpu.memory_space<vmem>>, vector<1x8x14xf32>
    %829 = vector.shape_cast %828 : vector<1x8x14xf32> to vector<8x14xf32>
    %830 = vector.broadcast %7 : f32 to vector<8x14xf32>
    %831 = arith.mulf %830, %829 : vector<8x14xf32>
    %832 = arith.addf %812, %831 : vector<8x14xf32>
    %833 = vector.broadcast %34 : f32 to vector<8x14xf32>
    %834 = arith.mulf %833, %829 : vector<8x14xf32>
    %835 = arith.addf %815, %834 : vector<8x14xf32>
    %836 = vector.broadcast %61 : f32 to vector<8x14xf32>
    %837 = arith.mulf %836, %829 : vector<8x14xf32>
    %838 = arith.addf %818, %837 : vector<8x14xf32>
    %839 = vector.broadcast %88 : f32 to vector<8x14xf32>
    %840 = arith.mulf %839, %829 : vector<8x14xf32>
    %841 = arith.addf %821, %840 : vector<8x14xf32>
    %842 = vector.broadcast %115 : f32 to vector<8x14xf32>
    %843 = arith.mulf %842, %829 : vector<8x14xf32>
    %844 = arith.addf %824, %843 : vector<8x14xf32>
    %845 = vector.broadcast %142 : f32 to vector<8x14xf32>
    %846 = arith.mulf %845, %829 : vector<8x14xf32>
    %847 = arith.addf %827, %846 : vector<8x14xf32>
    %c0_153 = arith.constant 0 : index
    %c0_154 = arith.constant 0 : index
    %c2_155 = arith.constant 2 : index
    %848 = vector.load %arg7[%c0_153, %c0_154, %c2_155] : memref<3x16x16xf32, #tpu.memory_space<vmem>>, vector<1x8x14xf32>
    %849 = vector.shape_cast %848 : vector<1x8x14xf32> to vector<8x14xf32>
    %850 = vector.broadcast %8 : f32 to vector<8x14xf32>
    %851 = arith.mulf %850, %849 : vector<8x14xf32>
    %852 = arith.addf %832, %851 : vector<8x14xf32>
    %853 = vector.broadcast %35 : f32 to vector<8x14xf32>
    %854 = arith.mulf %853, %849 : vector<8x14xf32>
    %855 = arith.addf %835, %854 : vector<8x14xf32>
    %856 = vector.broadcast %62 : f32 to vector<8x14xf32>
    %857 = arith.mulf %856, %849 : vector<8x14xf32>
    %858 = arith.addf %838, %857 : vector<8x14xf32>
    %859 = vector.broadcast %89 : f32 to vector<8x14xf32>
    %860 = arith.mulf %859, %849 : vector<8x14xf32>
    %861 = arith.addf %841, %860 : vector<8x14xf32>
    %862 = vector.broadcast %116 : f32 to vector<8x14xf32>
    %863 = arith.mulf %862, %849 : vector<8x14xf32>
    %864 = arith.addf %844, %863 : vector<8x14xf32>
    %865 = vector.broadcast %143 : f32 to vector<8x14xf32>
    %866 = arith.mulf %865, %849 : vector<8x14xf32>
    %867 = arith.addf %847, %866 : vector<8x14xf32>
    %c0_156 = arith.constant 0 : index
    %c1_157 = arith.constant 1 : index
    %c0_158 = arith.constant 0 : index
    %868 = vector.load %arg7[%c0_156, %c1_157, %c0_158] : memref<3x16x16xf32, #tpu.memory_space<vmem>>, vector<1x8x14xf32>
    %869 = vector.shape_cast %868 : vector<1x8x14xf32> to vector<8x14xf32>
    %870 = vector.broadcast %9 : f32 to vector<8x14xf32>
    %871 = arith.mulf %870, %869 : vector<8x14xf32>
    %872 = arith.addf %852, %871 : vector<8x14xf32>
    %873 = vector.broadcast %36 : f32 to vector<8x14xf32>
    %874 = arith.mulf %873, %869 : vector<8x14xf32>
    %875 = arith.addf %855, %874 : vector<8x14xf32>
    %876 = vector.broadcast %63 : f32 to vector<8x14xf32>
    %877 = arith.mulf %876, %869 : vector<8x14xf32>
    %878 = arith.addf %858, %877 : vector<8x14xf32>
    %879 = vector.broadcast %90 : f32 to vector<8x14xf32>
    %880 = arith.mulf %879, %869 : vector<8x14xf32>
    %881 = arith.addf %861, %880 : vector<8x14xf32>
    %882 = vector.broadcast %117 : f32 to vector<8x14xf32>
    %883 = arith.mulf %882, %869 : vector<8x14xf32>
    %884 = arith.addf %864, %883 : vector<8x14xf32>
    %885 = vector.broadcast %144 : f32 to vector<8x14xf32>
    %886 = arith.mulf %885, %869 : vector<8x14xf32>
    %887 = arith.addf %867, %886 : vector<8x14xf32>
    %c0_159 = arith.constant 0 : index
    %c1_160 = arith.constant 1 : index
    %c1_161 = arith.constant 1 : index
    %888 = vector.load %arg7[%c0_159, %c1_160, %c1_161] : memref<3x16x16xf32, #tpu.memory_space<vmem>>, vector<1x8x14xf32>
    %889 = vector.shape_cast %888 : vector<1x8x14xf32> to vector<8x14xf32>
    %890 = vector.broadcast %10 : f32 to vector<8x14xf32>
    %891 = arith.mulf %890, %889 : vector<8x14xf32>
    %892 = arith.addf %872, %891 : vector<8x14xf32>
    %893 = vector.broadcast %37 : f32 to vector<8x14xf32>
    %894 = arith.mulf %893, %889 : vector<8x14xf32>
    %895 = arith.addf %875, %894 : vector<8x14xf32>
    %896 = vector.broadcast %64 : f32 to vector<8x14xf32>
    %897 = arith.mulf %896, %889 : vector<8x14xf32>
    %898 = arith.addf %878, %897 : vector<8x14xf32>
    %899 = vector.broadcast %91 : f32 to vector<8x14xf32>
    %900 = arith.mulf %899, %889 : vector<8x14xf32>
    %901 = arith.addf %881, %900 : vector<8x14xf32>
    %902 = vector.broadcast %118 : f32 to vector<8x14xf32>
    %903 = arith.mulf %902, %889 : vector<8x14xf32>
    %904 = arith.addf %884, %903 : vector<8x14xf32>
    %905 = vector.broadcast %145 : f32 to vector<8x14xf32>
    %906 = arith.mulf %905, %889 : vector<8x14xf32>
    %907 = arith.addf %887, %906 : vector<8x14xf32>
    %c0_162 = arith.constant 0 : index
    %c1_163 = arith.constant 1 : index
    %c2_164 = arith.constant 2 : index
    %908 = vector.load %arg7[%c0_162, %c1_163, %c2_164] : memref<3x16x16xf32, #tpu.memory_space<vmem>>, vector<1x8x14xf32>
    %909 = vector.shape_cast %908 : vector<1x8x14xf32> to vector<8x14xf32>
    %910 = vector.broadcast %11 : f32 to vector<8x14xf32>
    %911 = arith.mulf %910, %909 : vector<8x14xf32>
    %912 = arith.addf %892, %911 : vector<8x14xf32>
    %913 = vector.broadcast %38 : f32 to vector<8x14xf32>
    %914 = arith.mulf %913, %909 : vector<8x14xf32>
    %915 = arith.addf %895, %914 : vector<8x14xf32>
    %916 = vector.broadcast %65 : f32 to vector<8x14xf32>
    %917 = arith.mulf %916, %909 : vector<8x14xf32>
    %918 = arith.addf %898, %917 : vector<8x14xf32>
    %919 = vector.broadcast %92 : f32 to vector<8x14xf32>
    %920 = arith.mulf %919, %909 : vector<8x14xf32>
    %921 = arith.addf %901, %920 : vector<8x14xf32>
    %922 = vector.broadcast %119 : f32 to vector<8x14xf32>
    %923 = arith.mulf %922, %909 : vector<8x14xf32>
    %924 = arith.addf %904, %923 : vector<8x14xf32>
    %925 = vector.broadcast %146 : f32 to vector<8x14xf32>
    %926 = arith.mulf %925, %909 : vector<8x14xf32>
    %927 = arith.addf %907, %926 : vector<8x14xf32>
    %c0_165 = arith.constant 0 : index
    %c2_166 = arith.constant 2 : index
    %c0_167 = arith.constant 0 : index
    %928 = vector.load %arg7[%c0_165, %c2_166, %c0_167] : memref<3x16x16xf32, #tpu.memory_space<vmem>>, vector<1x8x14xf32>
    %929 = vector.shape_cast %928 : vector<1x8x14xf32> to vector<8x14xf32>
    %930 = vector.broadcast %12 : f32 to vector<8x14xf32>
    %931 = arith.mulf %930, %929 : vector<8x14xf32>
    %932 = arith.addf %912, %931 : vector<8x14xf32>
    %933 = vector.broadcast %39 : f32 to vector<8x14xf32>
    %934 = arith.mulf %933, %929 : vector<8x14xf32>
    %935 = arith.addf %915, %934 : vector<8x14xf32>
    %936 = vector.broadcast %66 : f32 to vector<8x14xf32>
    %937 = arith.mulf %936, %929 : vector<8x14xf32>
    %938 = arith.addf %918, %937 : vector<8x14xf32>
    %939 = vector.broadcast %93 : f32 to vector<8x14xf32>
    %940 = arith.mulf %939, %929 : vector<8x14xf32>
    %941 = arith.addf %921, %940 : vector<8x14xf32>
    %942 = vector.broadcast %120 : f32 to vector<8x14xf32>
    %943 = arith.mulf %942, %929 : vector<8x14xf32>
    %944 = arith.addf %924, %943 : vector<8x14xf32>
    %945 = vector.broadcast %147 : f32 to vector<8x14xf32>
    %946 = arith.mulf %945, %929 : vector<8x14xf32>
    %947 = arith.addf %927, %946 : vector<8x14xf32>
    %c0_168 = arith.constant 0 : index
    %c2_169 = arith.constant 2 : index
    %c1_170 = arith.constant 1 : index
    %948 = vector.load %arg7[%c0_168, %c2_169, %c1_170] : memref<3x16x16xf32, #tpu.memory_space<vmem>>, vector<1x8x14xf32>
    %949 = vector.shape_cast %948 : vector<1x8x14xf32> to vector<8x14xf32>
    %950 = vector.broadcast %13 : f32 to vector<8x14xf32>
    %951 = arith.mulf %950, %949 : vector<8x14xf32>
    %952 = arith.addf %932, %951 : vector<8x14xf32>
    %953 = vector.broadcast %40 : f32 to vector<8x14xf32>
    %954 = arith.mulf %953, %949 : vector<8x14xf32>
    %955 = arith.addf %935, %954 : vector<8x14xf32>
    %956 = vector.broadcast %67 : f32 to vector<8x14xf32>
    %957 = arith.mulf %956, %949 : vector<8x14xf32>
    %958 = arith.addf %938, %957 : vector<8x14xf32>
    %959 = vector.broadcast %94 : f32 to vector<8x14xf32>
    %960 = arith.mulf %959, %949 : vector<8x14xf32>
    %961 = arith.addf %941, %960 : vector<8x14xf32>
    %962 = vector.broadcast %121 : f32 to vector<8x14xf32>
    %963 = arith.mulf %962, %949 : vector<8x14xf32>
    %964 = arith.addf %944, %963 : vector<8x14xf32>
    %965 = vector.broadcast %148 : f32 to vector<8x14xf32>
    %966 = arith.mulf %965, %949 : vector<8x14xf32>
    %967 = arith.addf %947, %966 : vector<8x14xf32>
    %c0_171 = arith.constant 0 : index
    %c2_172 = arith.constant 2 : index
    %c2_173 = arith.constant 2 : index
    %968 = vector.load %arg7[%c0_171, %c2_172, %c2_173] : memref<3x16x16xf32, #tpu.memory_space<vmem>>, vector<1x8x14xf32>
    %969 = vector.shape_cast %968 : vector<1x8x14xf32> to vector<8x14xf32>
    %970 = vector.broadcast %14 : f32 to vector<8x14xf32>
    %971 = arith.mulf %970, %969 : vector<8x14xf32>
    %972 = arith.addf %952, %971 : vector<8x14xf32>
    %973 = vector.broadcast %41 : f32 to vector<8x14xf32>
    %974 = arith.mulf %973, %969 : vector<8x14xf32>
    %975 = arith.addf %955, %974 : vector<8x14xf32>
    %976 = vector.broadcast %68 : f32 to vector<8x14xf32>
    %977 = arith.mulf %976, %969 : vector<8x14xf32>
    %978 = arith.addf %958, %977 : vector<8x14xf32>
    %979 = vector.broadcast %95 : f32 to vector<8x14xf32>
    %980 = arith.mulf %979, %969 : vector<8x14xf32>
    %981 = arith.addf %961, %980 : vector<8x14xf32>
    %982 = vector.broadcast %122 : f32 to vector<8x14xf32>
    %983 = arith.mulf %982, %969 : vector<8x14xf32>
    %984 = arith.addf %964, %983 : vector<8x14xf32>
    %985 = vector.broadcast %149 : f32 to vector<8x14xf32>
    %986 = arith.mulf %985, %969 : vector<8x14xf32>
    %987 = arith.addf %967, %986 : vector<8x14xf32>
    %c1_174 = arith.constant 1 : index
    %c0_175 = arith.constant 0 : index
    %c0_176 = arith.constant 0 : index
    %988 = vector.load %arg7[%c1_174, %c0_175, %c0_176] : memref<3x16x16xf32, #tpu.memory_space<vmem>>, vector<1x8x14xf32>
    %989 = vector.shape_cast %988 : vector<1x8x14xf32> to vector<8x14xf32>
    %990 = vector.broadcast %15 : f32 to vector<8x14xf32>
    %991 = arith.mulf %990, %989 : vector<8x14xf32>
    %992 = arith.addf %972, %991 : vector<8x14xf32>
    %993 = vector.broadcast %42 : f32 to vector<8x14xf32>
    %994 = arith.mulf %993, %989 : vector<8x14xf32>
    %995 = arith.addf %975, %994 : vector<8x14xf32>
    %996 = vector.broadcast %69 : f32 to vector<8x14xf32>
    %997 = arith.mulf %996, %989 : vector<8x14xf32>
    %998 = arith.addf %978, %997 : vector<8x14xf32>
    %999 = vector.broadcast %96 : f32 to vector<8x14xf32>
    %1000 = arith.mulf %999, %989 : vector<8x14xf32>
    %1001 = arith.addf %981, %1000 : vector<8x14xf32>
    %1002 = vector.broadcast %123 : f32 to vector<8x14xf32>
    %1003 = arith.mulf %1002, %989 : vector<8x14xf32>
    %1004 = arith.addf %984, %1003 : vector<8x14xf32>
    %1005 = vector.broadcast %150 : f32 to vector<8x14xf32>
    %1006 = arith.mulf %1005, %989 : vector<8x14xf32>
    %1007 = arith.addf %987, %1006 : vector<8x14xf32>
    %c1_177 = arith.constant 1 : index
    %c0_178 = arith.constant 0 : index
    %c1_179 = arith.constant 1 : index
    %1008 = vector.load %arg7[%c1_177, %c0_178, %c1_179] : memref<3x16x16xf32, #tpu.memory_space<vmem>>, vector<1x8x14xf32>
    %1009 = vector.shape_cast %1008 : vector<1x8x14xf32> to vector<8x14xf32>
    %1010 = vector.broadcast %16 : f32 to vector<8x14xf32>
    %1011 = arith.mulf %1010, %1009 : vector<8x14xf32>
    %1012 = arith.addf %992, %1011 : vector<8x14xf32>
    %1013 = vector.broadcast %43 : f32 to vector<8x14xf32>
    %1014 = arith.mulf %1013, %1009 : vector<8x14xf32>
    %1015 = arith.addf %995, %1014 : vector<8x14xf32>
    %1016 = vector.broadcast %70 : f32 to vector<8x14xf32>
    %1017 = arith.mulf %1016, %1009 : vector<8x14xf32>
    %1018 = arith.addf %998, %1017 : vector<8x14xf32>
    %1019 = vector.broadcast %97 : f32 to vector<8x14xf32>
    %1020 = arith.mulf %1019, %1009 : vector<8x14xf32>
    %1021 = arith.addf %1001, %1020 : vector<8x14xf32>
    %1022 = vector.broadcast %124 : f32 to vector<8x14xf32>
    %1023 = arith.mulf %1022, %1009 : vector<8x14xf32>
    %1024 = arith.addf %1004, %1023 : vector<8x14xf32>
    %1025 = vector.broadcast %151 : f32 to vector<8x14xf32>
    %1026 = arith.mulf %1025, %1009 : vector<8x14xf32>
    %1027 = arith.addf %1007, %1026 : vector<8x14xf32>
    %c1_180 = arith.constant 1 : index
    %c0_181 = arith.constant 0 : index
    %c2_182 = arith.constant 2 : index
    %1028 = vector.load %arg7[%c1_180, %c0_181, %c2_182] : memref<3x16x16xf32, #tpu.memory_space<vmem>>, vector<1x8x14xf32>
    %1029 = vector.shape_cast %1028 : vector<1x8x14xf32> to vector<8x14xf32>
    %1030 = vector.broadcast %17 : f32 to vector<8x14xf32>
    %1031 = arith.mulf %1030, %1029 : vector<8x14xf32>
    %1032 = arith.addf %1012, %1031 : vector<8x14xf32>
    %1033 = vector.broadcast %44 : f32 to vector<8x14xf32>
    %1034 = arith.mulf %1033, %1029 : vector<8x14xf32>
    %1035 = arith.addf %1015, %1034 : vector<8x14xf32>
    %1036 = vector.broadcast %71 : f32 to vector<8x14xf32>
    %1037 = arith.mulf %1036, %1029 : vector<8x14xf32>
    %1038 = arith.addf %1018, %1037 : vector<8x14xf32>
    %1039 = vector.broadcast %98 : f32 to vector<8x14xf32>
    %1040 = arith.mulf %1039, %1029 : vector<8x14xf32>
    %1041 = arith.addf %1021, %1040 : vector<8x14xf32>
    %1042 = vector.broadcast %125 : f32 to vector<8x14xf32>
    %1043 = arith.mulf %1042, %1029 : vector<8x14xf32>
    %1044 = arith.addf %1024, %1043 : vector<8x14xf32>
    %1045 = vector.broadcast %152 : f32 to vector<8x14xf32>
    %1046 = arith.mulf %1045, %1029 : vector<8x14xf32>
    %1047 = arith.addf %1027, %1046 : vector<8x14xf32>
    %c1_183 = arith.constant 1 : index
    %c1_184 = arith.constant 1 : index
    %c0_185 = arith.constant 0 : index
    %1048 = vector.load %arg7[%c1_183, %c1_184, %c0_185] : memref<3x16x16xf32, #tpu.memory_space<vmem>>, vector<1x8x14xf32>
    %1049 = vector.shape_cast %1048 : vector<1x8x14xf32> to vector<8x14xf32>
    %1050 = vector.broadcast %18 : f32 to vector<8x14xf32>
    %1051 = arith.mulf %1050, %1049 : vector<8x14xf32>
    %1052 = arith.addf %1032, %1051 : vector<8x14xf32>
    %1053 = vector.broadcast %45 : f32 to vector<8x14xf32>
    %1054 = arith.mulf %1053, %1049 : vector<8x14xf32>
    %1055 = arith.addf %1035, %1054 : vector<8x14xf32>
    %1056 = vector.broadcast %72 : f32 to vector<8x14xf32>
    %1057 = arith.mulf %1056, %1049 : vector<8x14xf32>
    %1058 = arith.addf %1038, %1057 : vector<8x14xf32>
    %1059 = vector.broadcast %99 : f32 to vector<8x14xf32>
    %1060 = arith.mulf %1059, %1049 : vector<8x14xf32>
    %1061 = arith.addf %1041, %1060 : vector<8x14xf32>
    %1062 = vector.broadcast %126 : f32 to vector<8x14xf32>
    %1063 = arith.mulf %1062, %1049 : vector<8x14xf32>
    %1064 = arith.addf %1044, %1063 : vector<8x14xf32>
    %1065 = vector.broadcast %153 : f32 to vector<8x14xf32>
    %1066 = arith.mulf %1065, %1049 : vector<8x14xf32>
    %1067 = arith.addf %1047, %1066 : vector<8x14xf32>
    %c1_186 = arith.constant 1 : index
    %c1_187 = arith.constant 1 : index
    %c1_188 = arith.constant 1 : index
    %1068 = vector.load %arg7[%c1_186, %c1_187, %c1_188] : memref<3x16x16xf32, #tpu.memory_space<vmem>>, vector<1x8x14xf32>
    %1069 = vector.shape_cast %1068 : vector<1x8x14xf32> to vector<8x14xf32>
    %1070 = vector.broadcast %19 : f32 to vector<8x14xf32>
    %1071 = arith.mulf %1070, %1069 : vector<8x14xf32>
    %1072 = arith.addf %1052, %1071 : vector<8x14xf32>
    %1073 = vector.broadcast %46 : f32 to vector<8x14xf32>
    %1074 = arith.mulf %1073, %1069 : vector<8x14xf32>
    %1075 = arith.addf %1055, %1074 : vector<8x14xf32>
    %1076 = vector.broadcast %73 : f32 to vector<8x14xf32>
    %1077 = arith.mulf %1076, %1069 : vector<8x14xf32>
    %1078 = arith.addf %1058, %1077 : vector<8x14xf32>
    %1079 = vector.broadcast %100 : f32 to vector<8x14xf32>
    %1080 = arith.mulf %1079, %1069 : vector<8x14xf32>
    %1081 = arith.addf %1061, %1080 : vector<8x14xf32>
    %1082 = vector.broadcast %127 : f32 to vector<8x14xf32>
    %1083 = arith.mulf %1082, %1069 : vector<8x14xf32>
    %1084 = arith.addf %1064, %1083 : vector<8x14xf32>
    %1085 = vector.broadcast %154 : f32 to vector<8x14xf32>
    %1086 = arith.mulf %1085, %1069 : vector<8x14xf32>
    %1087 = arith.addf %1067, %1086 : vector<8x14xf32>
    %c1_189 = arith.constant 1 : index
    %c1_190 = arith.constant 1 : index
    %c2_191 = arith.constant 2 : index
    %1088 = vector.load %arg7[%c1_189, %c1_190, %c2_191] : memref<3x16x16xf32, #tpu.memory_space<vmem>>, vector<1x8x14xf32>
    %1089 = vector.shape_cast %1088 : vector<1x8x14xf32> to vector<8x14xf32>
    %1090 = vector.broadcast %20 : f32 to vector<8x14xf32>
    %1091 = arith.mulf %1090, %1089 : vector<8x14xf32>
    %1092 = arith.addf %1072, %1091 : vector<8x14xf32>
    %1093 = vector.broadcast %47 : f32 to vector<8x14xf32>
    %1094 = arith.mulf %1093, %1089 : vector<8x14xf32>
    %1095 = arith.addf %1075, %1094 : vector<8x14xf32>
    %1096 = vector.broadcast %74 : f32 to vector<8x14xf32>
    %1097 = arith.mulf %1096, %1089 : vector<8x14xf32>
    %1098 = arith.addf %1078, %1097 : vector<8x14xf32>
    %1099 = vector.broadcast %101 : f32 to vector<8x14xf32>
    %1100 = arith.mulf %1099, %1089 : vector<8x14xf32>
    %1101 = arith.addf %1081, %1100 : vector<8x14xf32>
    %1102 = vector.broadcast %128 : f32 to vector<8x14xf32>
    %1103 = arith.mulf %1102, %1089 : vector<8x14xf32>
    %1104 = arith.addf %1084, %1103 : vector<8x14xf32>
    %1105 = vector.broadcast %155 : f32 to vector<8x14xf32>
    %1106 = arith.mulf %1105, %1089 : vector<8x14xf32>
    %1107 = arith.addf %1087, %1106 : vector<8x14xf32>
    %c1_192 = arith.constant 1 : index
    %c2_193 = arith.constant 2 : index
    %c0_194 = arith.constant 0 : index
    %1108 = vector.load %arg7[%c1_192, %c2_193, %c0_194] : memref<3x16x16xf32, #tpu.memory_space<vmem>>, vector<1x8x14xf32>
    %1109 = vector.shape_cast %1108 : vector<1x8x14xf32> to vector<8x14xf32>
    %1110 = vector.broadcast %21 : f32 to vector<8x14xf32>
    %1111 = arith.mulf %1110, %1109 : vector<8x14xf32>
    %1112 = arith.addf %1092, %1111 : vector<8x14xf32>
    %1113 = vector.broadcast %48 : f32 to vector<8x14xf32>
    %1114 = arith.mulf %1113, %1109 : vector<8x14xf32>
    %1115 = arith.addf %1095, %1114 : vector<8x14xf32>
    %1116 = vector.broadcast %75 : f32 to vector<8x14xf32>
    %1117 = arith.mulf %1116, %1109 : vector<8x14xf32>
    %1118 = arith.addf %1098, %1117 : vector<8x14xf32>
    %1119 = vector.broadcast %102 : f32 to vector<8x14xf32>
    %1120 = arith.mulf %1119, %1109 : vector<8x14xf32>
    %1121 = arith.addf %1101, %1120 : vector<8x14xf32>
    %1122 = vector.broadcast %129 : f32 to vector<8x14xf32>
    %1123 = arith.mulf %1122, %1109 : vector<8x14xf32>
    %1124 = arith.addf %1104, %1123 : vector<8x14xf32>
    %1125 = vector.broadcast %156 : f32 to vector<8x14xf32>
    %1126 = arith.mulf %1125, %1109 : vector<8x14xf32>
    %1127 = arith.addf %1107, %1126 : vector<8x14xf32>
    %c1_195 = arith.constant 1 : index
    %c2_196 = arith.constant 2 : index
    %c1_197 = arith.constant 1 : index
    %1128 = vector.load %arg7[%c1_195, %c2_196, %c1_197] : memref<3x16x16xf32, #tpu.memory_space<vmem>>, vector<1x8x14xf32>
    %1129 = vector.shape_cast %1128 : vector<1x8x14xf32> to vector<8x14xf32>
    %1130 = vector.broadcast %22 : f32 to vector<8x14xf32>
    %1131 = arith.mulf %1130, %1129 : vector<8x14xf32>
    %1132 = arith.addf %1112, %1131 : vector<8x14xf32>
    %1133 = vector.broadcast %49 : f32 to vector<8x14xf32>
    %1134 = arith.mulf %1133, %1129 : vector<8x14xf32>
    %1135 = arith.addf %1115, %1134 : vector<8x14xf32>
    %1136 = vector.broadcast %76 : f32 to vector<8x14xf32>
    %1137 = arith.mulf %1136, %1129 : vector<8x14xf32>
    %1138 = arith.addf %1118, %1137 : vector<8x14xf32>
    %1139 = vector.broadcast %103 : f32 to vector<8x14xf32>
    %1140 = arith.mulf %1139, %1129 : vector<8x14xf32>
    %1141 = arith.addf %1121, %1140 : vector<8x14xf32>
    %1142 = vector.broadcast %130 : f32 to vector<8x14xf32>
    %1143 = arith.mulf %1142, %1129 : vector<8x14xf32>
    %1144 = arith.addf %1124, %1143 : vector<8x14xf32>
    %1145 = vector.broadcast %157 : f32 to vector<8x14xf32>
    %1146 = arith.mulf %1145, %1129 : vector<8x14xf32>
    %1147 = arith.addf %1127, %1146 : vector<8x14xf32>
    %c1_198 = arith.constant 1 : index
    %c2_199 = arith.constant 2 : index
    %c2_200 = arith.constant 2 : index
    %1148 = vector.load %arg7[%c1_198, %c2_199, %c2_200] : memref<3x16x16xf32, #tpu.memory_space<vmem>>, vector<1x8x14xf32>
    %1149 = vector.shape_cast %1148 : vector<1x8x14xf32> to vector<8x14xf32>
    %1150 = vector.broadcast %23 : f32 to vector<8x14xf32>
    %1151 = arith.mulf %1150, %1149 : vector<8x14xf32>
    %1152 = arith.addf %1132, %1151 : vector<8x14xf32>
    %1153 = vector.broadcast %50 : f32 to vector<8x14xf32>
    %1154 = arith.mulf %1153, %1149 : vector<8x14xf32>
    %1155 = arith.addf %1135, %1154 : vector<8x14xf32>
    %1156 = vector.broadcast %77 : f32 to vector<8x14xf32>
    %1157 = arith.mulf %1156, %1149 : vector<8x14xf32>
    %1158 = arith.addf %1138, %1157 : vector<8x14xf32>
    %1159 = vector.broadcast %104 : f32 to vector<8x14xf32>
    %1160 = arith.mulf %1159, %1149 : vector<8x14xf32>
    %1161 = arith.addf %1141, %1160 : vector<8x14xf32>
    %1162 = vector.broadcast %131 : f32 to vector<8x14xf32>
    %1163 = arith.mulf %1162, %1149 : vector<8x14xf32>
    %1164 = arith.addf %1144, %1163 : vector<8x14xf32>
    %1165 = vector.broadcast %158 : f32 to vector<8x14xf32>
    %1166 = arith.mulf %1165, %1149 : vector<8x14xf32>
    %1167 = arith.addf %1147, %1166 : vector<8x14xf32>
    %c2_201 = arith.constant 2 : index
    %c0_202 = arith.constant 0 : index
    %c0_203 = arith.constant 0 : index
    %1168 = vector.load %arg7[%c2_201, %c0_202, %c0_203] : memref<3x16x16xf32, #tpu.memory_space<vmem>>, vector<1x8x14xf32>
    %1169 = vector.shape_cast %1168 : vector<1x8x14xf32> to vector<8x14xf32>
    %1170 = vector.broadcast %24 : f32 to vector<8x14xf32>
    %1171 = arith.mulf %1170, %1169 : vector<8x14xf32>
    %1172 = arith.addf %1152, %1171 : vector<8x14xf32>
    %1173 = vector.broadcast %51 : f32 to vector<8x14xf32>
    %1174 = arith.mulf %1173, %1169 : vector<8x14xf32>
    %1175 = arith.addf %1155, %1174 : vector<8x14xf32>
    %1176 = vector.broadcast %78 : f32 to vector<8x14xf32>
    %1177 = arith.mulf %1176, %1169 : vector<8x14xf32>
    %1178 = arith.addf %1158, %1177 : vector<8x14xf32>
    %1179 = vector.broadcast %105 : f32 to vector<8x14xf32>
    %1180 = arith.mulf %1179, %1169 : vector<8x14xf32>
    %1181 = arith.addf %1161, %1180 : vector<8x14xf32>
    %1182 = vector.broadcast %132 : f32 to vector<8x14xf32>
    %1183 = arith.mulf %1182, %1169 : vector<8x14xf32>
    %1184 = arith.addf %1164, %1183 : vector<8x14xf32>
    %1185 = vector.broadcast %159 : f32 to vector<8x14xf32>
    %1186 = arith.mulf %1185, %1169 : vector<8x14xf32>
    %1187 = arith.addf %1167, %1186 : vector<8x14xf32>
    %c2_204 = arith.constant 2 : index
    %c0_205 = arith.constant 0 : index
    %c1_206 = arith.constant 1 : index
    %1188 = vector.load %arg7[%c2_204, %c0_205, %c1_206] : memref<3x16x16xf32, #tpu.memory_space<vmem>>, vector<1x8x14xf32>
    %1189 = vector.shape_cast %1188 : vector<1x8x14xf32> to vector<8x14xf32>
    %1190 = vector.broadcast %25 : f32 to vector<8x14xf32>
    %1191 = arith.mulf %1190, %1189 : vector<8x14xf32>
    %1192 = arith.addf %1172, %1191 : vector<8x14xf32>
    %1193 = vector.broadcast %52 : f32 to vector<8x14xf32>
    %1194 = arith.mulf %1193, %1189 : vector<8x14xf32>
    %1195 = arith.addf %1175, %1194 : vector<8x14xf32>
    %1196 = vector.broadcast %79 : f32 to vector<8x14xf32>
    %1197 = arith.mulf %1196, %1189 : vector<8x14xf32>
    %1198 = arith.addf %1178, %1197 : vector<8x14xf32>
    %1199 = vector.broadcast %106 : f32 to vector<8x14xf32>
    %1200 = arith.mulf %1199, %1189 : vector<8x14xf32>
    %1201 = arith.addf %1181, %1200 : vector<8x14xf32>
    %1202 = vector.broadcast %133 : f32 to vector<8x14xf32>
    %1203 = arith.mulf %1202, %1189 : vector<8x14xf32>
    %1204 = arith.addf %1184, %1203 : vector<8x14xf32>
    %1205 = vector.broadcast %160 : f32 to vector<8x14xf32>
    %1206 = arith.mulf %1205, %1189 : vector<8x14xf32>
    %1207 = arith.addf %1187, %1206 : vector<8x14xf32>
    %c2_207 = arith.constant 2 : index
    %c0_208 = arith.constant 0 : index
    %c2_209 = arith.constant 2 : index
    %1208 = vector.load %arg7[%c2_207, %c0_208, %c2_209] : memref<3x16x16xf32, #tpu.memory_space<vmem>>, vector<1x8x14xf32>
    %1209 = vector.shape_cast %1208 : vector<1x8x14xf32> to vector<8x14xf32>
    %1210 = vector.broadcast %26 : f32 to vector<8x14xf32>
    %1211 = arith.mulf %1210, %1209 : vector<8x14xf32>
    %1212 = arith.addf %1192, %1211 : vector<8x14xf32>
    %1213 = vector.broadcast %53 : f32 to vector<8x14xf32>
    %1214 = arith.mulf %1213, %1209 : vector<8x14xf32>
    %1215 = arith.addf %1195, %1214 : vector<8x14xf32>
    %1216 = vector.broadcast %80 : f32 to vector<8x14xf32>
    %1217 = arith.mulf %1216, %1209 : vector<8x14xf32>
    %1218 = arith.addf %1198, %1217 : vector<8x14xf32>
    %1219 = vector.broadcast %107 : f32 to vector<8x14xf32>
    %1220 = arith.mulf %1219, %1209 : vector<8x14xf32>
    %1221 = arith.addf %1201, %1220 : vector<8x14xf32>
    %1222 = vector.broadcast %134 : f32 to vector<8x14xf32>
    %1223 = arith.mulf %1222, %1209 : vector<8x14xf32>
    %1224 = arith.addf %1204, %1223 : vector<8x14xf32>
    %1225 = vector.broadcast %161 : f32 to vector<8x14xf32>
    %1226 = arith.mulf %1225, %1209 : vector<8x14xf32>
    %1227 = arith.addf %1207, %1226 : vector<8x14xf32>
    %c2_210 = arith.constant 2 : index
    %c1_211 = arith.constant 1 : index
    %c0_212 = arith.constant 0 : index
    %1228 = vector.load %arg7[%c2_210, %c1_211, %c0_212] : memref<3x16x16xf32, #tpu.memory_space<vmem>>, vector<1x8x14xf32>
    %1229 = vector.shape_cast %1228 : vector<1x8x14xf32> to vector<8x14xf32>
    %1230 = vector.broadcast %27 : f32 to vector<8x14xf32>
    %1231 = arith.mulf %1230, %1229 : vector<8x14xf32>
    %1232 = arith.addf %1212, %1231 : vector<8x14xf32>
    %1233 = vector.broadcast %54 : f32 to vector<8x14xf32>
    %1234 = arith.mulf %1233, %1229 : vector<8x14xf32>
    %1235 = arith.addf %1215, %1234 : vector<8x14xf32>
    %1236 = vector.broadcast %81 : f32 to vector<8x14xf32>
    %1237 = arith.mulf %1236, %1229 : vector<8x14xf32>
    %1238 = arith.addf %1218, %1237 : vector<8x14xf32>
    %1239 = vector.broadcast %108 : f32 to vector<8x14xf32>
    %1240 = arith.mulf %1239, %1229 : vector<8x14xf32>
    %1241 = arith.addf %1221, %1240 : vector<8x14xf32>
    %1242 = vector.broadcast %135 : f32 to vector<8x14xf32>
    %1243 = arith.mulf %1242, %1229 : vector<8x14xf32>
    %1244 = arith.addf %1224, %1243 : vector<8x14xf32>
    %1245 = vector.broadcast %162 : f32 to vector<8x14xf32>
    %1246 = arith.mulf %1245, %1229 : vector<8x14xf32>
    %1247 = arith.addf %1227, %1246 : vector<8x14xf32>
    %c2_213 = arith.constant 2 : index
    %c1_214 = arith.constant 1 : index
    %c1_215 = arith.constant 1 : index
    %1248 = vector.load %arg7[%c2_213, %c1_214, %c1_215] : memref<3x16x16xf32, #tpu.memory_space<vmem>>, vector<1x8x14xf32>
    %1249 = vector.shape_cast %1248 : vector<1x8x14xf32> to vector<8x14xf32>
    %1250 = vector.broadcast %28 : f32 to vector<8x14xf32>
    %1251 = arith.mulf %1250, %1249 : vector<8x14xf32>
    %1252 = arith.addf %1232, %1251 : vector<8x14xf32>
    %1253 = vector.broadcast %55 : f32 to vector<8x14xf32>
    %1254 = arith.mulf %1253, %1249 : vector<8x14xf32>
    %1255 = arith.addf %1235, %1254 : vector<8x14xf32>
    %1256 = vector.broadcast %82 : f32 to vector<8x14xf32>
    %1257 = arith.mulf %1256, %1249 : vector<8x14xf32>
    %1258 = arith.addf %1238, %1257 : vector<8x14xf32>
    %1259 = vector.broadcast %109 : f32 to vector<8x14xf32>
    %1260 = arith.mulf %1259, %1249 : vector<8x14xf32>
    %1261 = arith.addf %1241, %1260 : vector<8x14xf32>
    %1262 = vector.broadcast %136 : f32 to vector<8x14xf32>
    %1263 = arith.mulf %1262, %1249 : vector<8x14xf32>
    %1264 = arith.addf %1244, %1263 : vector<8x14xf32>
    %1265 = vector.broadcast %163 : f32 to vector<8x14xf32>
    %1266 = arith.mulf %1265, %1249 : vector<8x14xf32>
    %1267 = arith.addf %1247, %1266 : vector<8x14xf32>
    %c2_216 = arith.constant 2 : index
    %c1_217 = arith.constant 1 : index
    %c2_218 = arith.constant 2 : index
    %1268 = vector.load %arg7[%c2_216, %c1_217, %c2_218] : memref<3x16x16xf32, #tpu.memory_space<vmem>>, vector<1x8x14xf32>
    %1269 = vector.shape_cast %1268 : vector<1x8x14xf32> to vector<8x14xf32>
    %1270 = vector.broadcast %29 : f32 to vector<8x14xf32>
    %1271 = arith.mulf %1270, %1269 : vector<8x14xf32>
    %1272 = arith.addf %1252, %1271 : vector<8x14xf32>
    %1273 = vector.broadcast %56 : f32 to vector<8x14xf32>
    %1274 = arith.mulf %1273, %1269 : vector<8x14xf32>
    %1275 = arith.addf %1255, %1274 : vector<8x14xf32>
    %1276 = vector.broadcast %83 : f32 to vector<8x14xf32>
    %1277 = arith.mulf %1276, %1269 : vector<8x14xf32>
    %1278 = arith.addf %1258, %1277 : vector<8x14xf32>
    %1279 = vector.broadcast %110 : f32 to vector<8x14xf32>
    %1280 = arith.mulf %1279, %1269 : vector<8x14xf32>
    %1281 = arith.addf %1261, %1280 : vector<8x14xf32>
    %1282 = vector.broadcast %137 : f32 to vector<8x14xf32>
    %1283 = arith.mulf %1282, %1269 : vector<8x14xf32>
    %1284 = arith.addf %1264, %1283 : vector<8x14xf32>
    %1285 = vector.broadcast %164 : f32 to vector<8x14xf32>
    %1286 = arith.mulf %1285, %1269 : vector<8x14xf32>
    %1287 = arith.addf %1267, %1286 : vector<8x14xf32>
    %c2_219 = arith.constant 2 : index
    %c2_220 = arith.constant 2 : index
    %c0_221 = arith.constant 0 : index
    %1288 = vector.load %arg7[%c2_219, %c2_220, %c0_221] : memref<3x16x16xf32, #tpu.memory_space<vmem>>, vector<1x8x14xf32>
    %1289 = vector.shape_cast %1288 : vector<1x8x14xf32> to vector<8x14xf32>
    %1290 = vector.broadcast %30 : f32 to vector<8x14xf32>
    %1291 = arith.mulf %1290, %1289 : vector<8x14xf32>
    %1292 = arith.addf %1272, %1291 : vector<8x14xf32>
    %1293 = vector.broadcast %57 : f32 to vector<8x14xf32>
    %1294 = arith.mulf %1293, %1289 : vector<8x14xf32>
    %1295 = arith.addf %1275, %1294 : vector<8x14xf32>
    %1296 = vector.broadcast %84 : f32 to vector<8x14xf32>
    %1297 = arith.mulf %1296, %1289 : vector<8x14xf32>
    %1298 = arith.addf %1278, %1297 : vector<8x14xf32>
    %1299 = vector.broadcast %111 : f32 to vector<8x14xf32>
    %1300 = arith.mulf %1299, %1289 : vector<8x14xf32>
    %1301 = arith.addf %1281, %1300 : vector<8x14xf32>
    %1302 = vector.broadcast %138 : f32 to vector<8x14xf32>
    %1303 = arith.mulf %1302, %1289 : vector<8x14xf32>
    %1304 = arith.addf %1284, %1303 : vector<8x14xf32>
    %1305 = vector.broadcast %165 : f32 to vector<8x14xf32>
    %1306 = arith.mulf %1305, %1289 : vector<8x14xf32>
    %1307 = arith.addf %1287, %1306 : vector<8x14xf32>
    %c2_222 = arith.constant 2 : index
    %c2_223 = arith.constant 2 : index
    %c1_224 = arith.constant 1 : index
    %1308 = vector.load %arg7[%c2_222, %c2_223, %c1_224] : memref<3x16x16xf32, #tpu.memory_space<vmem>>, vector<1x8x14xf32>
    %1309 = vector.shape_cast %1308 : vector<1x8x14xf32> to vector<8x14xf32>
    %1310 = vector.broadcast %31 : f32 to vector<8x14xf32>
    %1311 = arith.mulf %1310, %1309 : vector<8x14xf32>
    %1312 = arith.addf %1292, %1311 : vector<8x14xf32>
    %1313 = vector.broadcast %58 : f32 to vector<8x14xf32>
    %1314 = arith.mulf %1313, %1309 : vector<8x14xf32>
    %1315 = arith.addf %1295, %1314 : vector<8x14xf32>
    %1316 = vector.broadcast %85 : f32 to vector<8x14xf32>
    %1317 = arith.mulf %1316, %1309 : vector<8x14xf32>
    %1318 = arith.addf %1298, %1317 : vector<8x14xf32>
    %1319 = vector.broadcast %112 : f32 to vector<8x14xf32>
    %1320 = arith.mulf %1319, %1309 : vector<8x14xf32>
    %1321 = arith.addf %1301, %1320 : vector<8x14xf32>
    %1322 = vector.broadcast %139 : f32 to vector<8x14xf32>
    %1323 = arith.mulf %1322, %1309 : vector<8x14xf32>
    %1324 = arith.addf %1304, %1323 : vector<8x14xf32>
    %1325 = vector.broadcast %166 : f32 to vector<8x14xf32>
    %1326 = arith.mulf %1325, %1309 : vector<8x14xf32>
    %1327 = arith.addf %1307, %1326 : vector<8x14xf32>
    %c2_225 = arith.constant 2 : index
    %c2_226 = arith.constant 2 : index
    %c2_227 = arith.constant 2 : index
    %1328 = vector.load %arg7[%c2_225, %c2_226, %c2_227] : memref<3x16x16xf32, #tpu.memory_space<vmem>>, vector<1x8x14xf32>
    %1329 = vector.shape_cast %1328 : vector<1x8x14xf32> to vector<8x14xf32>
    %1330 = vector.broadcast %32 : f32 to vector<8x14xf32>
    %1331 = arith.mulf %1330, %1329 : vector<8x14xf32>
    %1332 = arith.addf %1312, %1331 : vector<8x14xf32>
    %1333 = vector.broadcast %59 : f32 to vector<8x14xf32>
    %1334 = arith.mulf %1333, %1329 : vector<8x14xf32>
    %1335 = arith.addf %1315, %1334 : vector<8x14xf32>
    %1336 = vector.broadcast %86 : f32 to vector<8x14xf32>
    %1337 = arith.mulf %1336, %1329 : vector<8x14xf32>
    %1338 = arith.addf %1318, %1337 : vector<8x14xf32>
    %1339 = vector.broadcast %113 : f32 to vector<8x14xf32>
    %1340 = arith.mulf %1339, %1329 : vector<8x14xf32>
    %1341 = arith.addf %1321, %1340 : vector<8x14xf32>
    %1342 = vector.broadcast %140 : f32 to vector<8x14xf32>
    %1343 = arith.mulf %1342, %1329 : vector<8x14xf32>
    %1344 = arith.addf %1324, %1343 : vector<8x14xf32>
    %1345 = vector.broadcast %167 : f32 to vector<8x14xf32>
    %1346 = arith.mulf %1345, %1329 : vector<8x14xf32>
    %1347 = arith.addf %1327, %1346 : vector<8x14xf32>
    %c0_228 = arith.constant 0 : index
    %c0_229 = arith.constant 0 : index
    %c8_230 = arith.constant 8 : index
    %c0_231 = arith.constant 0 : index
    %1348 = vector.load %arg6[%c0_228, %c0_229, %c8_230, %c0_231] : memref<1x6x16x14xf32, #tpu.memory_space<vmem>>, vector<1x1x8x14xf32>
    %1349 = vector.shape_cast %1348 : vector<1x1x8x14xf32> to vector<8x14xf32>
    %1350 = vector.shape_cast %1332 : vector<8x14xf32> to vector<1x1x8x14xf32>
    tpu.vector_store %arg6[%c0_228, %c0_229, %c8_230, %c0_231], %1350 {strides = array<i32>} : memref<1x6x16x14xf32, #tpu.memory_space<vmem>>, vector<1x1x8x14xf32>,
    %c0_232 = arith.constant 0 : index
    %c1_233 = arith.constant 1 : index
    %c8_234 = arith.constant 8 : index
    %c0_235 = arith.constant 0 : index
    %1351 = vector.load %arg6[%c0_232, %c1_233, %c8_234, %c0_235] : memref<1x6x16x14xf32, #tpu.memory_space<vmem>>, vector<1x1x8x14xf32>
    %1352 = vector.shape_cast %1351 : vector<1x1x8x14xf32> to vector<8x14xf32>
    %1353 = vector.shape_cast %1335 : vector<8x14xf32> to vector<1x1x8x14xf32>
    tpu.vector_store %arg6[%c0_232, %c1_233, %c8_234, %c0_235], %1353 {strides = array<i32>} : memref<1x6x16x14xf32, #tpu.memory_space<vmem>>, vector<1x1x8x14xf32>,
    %c0_236 = arith.constant 0 : index
    %c2_237 = arith.constant 2 : index
    %c8_238 = arith.constant 8 : index
    %c0_239 = arith.constant 0 : index
    %1354 = vector.load %arg6[%c0_236, %c2_237, %c8_238, %c0_239] : memref<1x6x16x14xf32, #tpu.memory_space<vmem>>, vector<1x1x8x14xf32>
    %1355 = vector.shape_cast %1354 : vector<1x1x8x14xf32> to vector<8x14xf32>
    %1356 = vector.shape_cast %1338 : vector<8x14xf32> to vector<1x1x8x14xf32>
    tpu.vector_store %arg6[%c0_236, %c2_237, %c8_238, %c0_239], %1356 {strides = array<i32>} : memref<1x6x16x14xf32, #tpu.memory_space<vmem>>, vector<1x1x8x14xf32>,
    %c0_240 = arith.constant 0 : index
    %c3_241 = arith.constant 3 : index
    %c8_242 = arith.constant 8 : index
    %c0_243 = arith.constant 0 : index
    %1357 = vector.load %arg6[%c0_240, %c3_241, %c8_242, %c0_243] : memref<1x6x16x14xf32, #tpu.memory_space<vmem>>, vector<1x1x8x14xf32>
    %1358 = vector.shape_cast %1357 : vector<1x1x8x14xf32> to vector<8x14xf32>
    %1359 = vector.shape_cast %1341 : vector<8x14xf32> to vector<1x1x8x14xf32>
    tpu.vector_store %arg6[%c0_240, %c3_241, %c8_242, %c0_243], %1359 {strides = array<i32>} : memref<1x6x16x14xf32, #tpu.memory_space<vmem>>, vector<1x1x8x14xf32>,
    %c0_244 = arith.constant 0 : index
    %c4_245 = arith.constant 4 : index
    %c8_246 = arith.constant 8 : index
    %c0_247 = arith.constant 0 : index
    %1360 = vector.load %arg6[%c0_244, %c4_245, %c8_246, %c0_247] : memref<1x6x16x14xf32, #tpu.memory_space<vmem>>, vector<1x1x8x14xf32>
    %1361 = vector.shape_cast %1360 : vector<1x1x8x14xf32> to vector<8x14xf32>
    %1362 = vector.shape_cast %1344 : vector<8x14xf32> to vector<1x1x8x14xf32>
    tpu.vector_store %arg6[%c0_244, %c4_245, %c8_246, %c0_247], %1362 {strides = array<i32>} : memref<1x6x16x14xf32, #tpu.memory_space<vmem>>, vector<1x1x8x14xf32>,
    %c0_248 = arith.constant 0 : index
    %c5_249 = arith.constant 5 : index
    %c8_250 = arith.constant 8 : index
    %c0_251 = arith.constant 0 : index
    %1363 = vector.load %arg6[%c0_248, %c5_249, %c8_250, %c0_251] : memref<1x6x16x14xf32, #tpu.memory_space<vmem>>, vector<1x1x8x14xf32>
    %1364 = vector.shape_cast %1363 : vector<1x1x8x14xf32> to vector<8x14xf32>
    %1365 = vector.shape_cast %1347 : vector<8x14xf32> to vector<1x1x8x14xf32>
    tpu.vector_store %arg6[%c0_248, %c5_249, %c8_250, %c0_251], %1365 {strides = array<i32>} : memref<1x6x16x14xf32, #tpu.memory_space<vmem>>, vector<1x1x8x14xf32>,
    return
  }
  func.func @transform_0(%arg0: i32, %arg1: i32) -> (i32, i32, i32, i32) {
    %c0_i32 = arith.constant 0 : i32
    %c0_i32_0 = arith.constant 0 : i32
    %c0_i32_1 = arith.constant 0 : i32
    return %arg0, %c0_i32, %arg1, %c0_i32_0 : i32, i32, i32, i32
  }
  func.func @transform_1(%arg0: i32, %arg1: i32) -> (i32, i32, i32, i32) {
    %c1_i32 = arith.constant 1 : i32
    %0 = arith.addi %arg1, %c1_i32 : i32
    %c2_i32 = arith.constant 2 : i32
    %1 = arith.muli %0, %c2_i32 : i32
    %c1_i32_0 = arith.constant 1 : i32
    %2 = arith.minsi %1, %c1_i32_0 : i32
    %c0_i32 = arith.constant 0 : i32
    %c0_i32_1 = arith.constant 0 : i32
    %c0_i32_2 = arith.constant 0 : i32
    return %arg0, %c0_i32, %2, %c0_i32_1 : i32, i32, i32, i32
  }
  func.func @transform_2(%arg0: i32, %arg1: i32) -> i32 {
    %c0_i32 = arith.constant 0 : i32
    %c0_i32_0 = arith.constant 0 : i32
    return %c0_i32 : i32
  }
  func.func @transform_3(%arg0: i32, %arg1: i32) -> i32 {
    %c0_i32 = arith.constant 0 : i32
    %c0_i32_0 = arith.constant 0 : i32
    return %c0_i32 : i32
  }
  func.func @transform_4(%arg0: i32, %arg1: i32) -> (i32, i32, i32, i32) {
    %c0_i32 = arith.constant 0 : i32
    %c0_i32_0 = arith.constant 0 : i32
    %c0_i32_1 = arith.constant 0 : i32
    return %arg0, %c0_i32, %arg1, %c0_i32_0 : i32, i32, i32, i32
  }
}

</mosaic_0001>

<llo_original>
// kernel: tudui_forward.1
$region0: #{tudui_forward.1}
  #allocation0 [shape = 'u32[]', space=smem, size = 0x4, offset = 0x4, fixed_abs, tag = 'smem constant byte address 0x4 - core index']
  #allocation1 [shape = 'u32[144,128]{1,0:T(1,128)}', space=vmem, size = 0x12000, scoped, tag = 'internal scratch']
  #allocation2 [shape = 'f32[3,16,16]{2,1,0:T(8,128)}', space=vmem, size = 0x6000, scoped, tag = 'scratch operand']
  %s0 = inlined_call_operand.vmem [shape: f32[2,3,16,16], index: 0, kind: input, shape index: {}, may-alias: {0,1}]
  %s1 = inlined_call_operand.vmem [shape: f32[2,3,16,16], index: 1, kind: input, shape index: {}, may-alias: {0,1}]
  %s2 = inlined_call_operand.vmem [shape: f32[162], index: 2, kind: input, shape index: {}]
  %s3 = inlined_call_operand.vmem [shape: f32[6], index: 3, kind: input, shape index: {}]
  %s4 = inlined_call_operand.vmem [shape: f32[2,6,14,14], index: 4, kind: output, shape index: {}]
  %s5 = sld [smem:[#allocation0]]
  $region95: #{tudui_forward.1} parent=0
    _
  %s7 = ssub.s32 1, %s5
  %s8 = scalar_select 0, %s7, %s5
  $region1: #{tudui_forward.1} parent=0
    #allocation3 [shape = 'u8[24576]{0}', space=vmem, size = 0x6000, scoped, tag = 'input window, operand 1']
    #allocation4 [shape = 'u8[1024]{0}', space=smem, size = 0x400, scoped, tag = 'input window, operand 2, single buffered']
    #allocation5 [shape = 's32[2]{0}', space=sflag, size = 0x8, scoped, tag = 'scoped memory for tudui_forward.1']
    #allocation6 [shape = 'u8[512]{0}', space=smem, size = 0x200, scoped, tag = 'input window, operand 3, single buffered']
    #allocation7 [shape = 's32[1]{0}', space=sflag, size = 0x4, scoped, tag = 'scoped memory for tudui_forward.1']
    %9 = vsyncpa [#allocation5], 0
    %10 = vsyncpa [#allocation7], 0
    loop: start=0, step=1, limit=4
    $region2: #{tudui_forward.1} parent=1 // loop_pre_header
      _
    $region3: #{tudui_forward.1} parent=1 // loop_header
      %s12 = sphi 0, %s16
      %p13 = scmp.ge.s32.totalorder %s12, 4
      %s19 = sphi 0, %s31
      %s20 = sphi 0, %s27
      %s21 = sphi 0, %s19
      %s22 = sphi 0, %s20
      %s23 = sphi 0, %s21
      %s24 = sphi 0, %s22
      %s36 = sphi 0, %s38
      %s39 = sphi 0, %s36
      %s40 = sphi 0, %s39
      %s56 = sphi 0, %s40
      %s72 = sphi 0, %s74
      %s75 = sphi 0, %s72
      %s76 = sphi 0, %s75
      %s92 = sphi 0, %s76
      %s96 = sphi 0, %s96
      %s98 = sphi 0, %s96
      %s99 = sphi 0, %s98
      %s113 = sphi 0, %s99
      %s117 = sphi 0, %s117
      %s119 = sphi 0, %s117
      %s120 = sphi 0, %s119
      %s134 = sphi 0, %s120
      %s142 = sphi 0, %s144
      %s145 = sphi 0, %s142
      %s146 = sphi 0, %s145
      %s162 = sphi 0, %s146
    $region4: #{tudui_forward.1} parent=1 // loop_header_branch
      %15 = sbr.rel (%p13) target = $region8
    $region5: #{tudui_forward.1} parent=1 // loop_body
      %s17 = ssub.s32 %s12, 1
      %s18 = ssub.s32 %s12, 2
      %s25 = sadd.s32 1, %s20
      %p26 = scmp.ge.s32.totalorder %s25, 1
      %s27 = scalar_select %p26, 0, %s25
      %s28 = sadd.s32 1, %s19
      %s29 = scalar_select %p26, %s28, %s19
      %p30 = scmp.ge.s32.totalorder %s29, 2
      %s31 = scalar_select %p30, 0, %s29
      %s32 = ssub.s32 %s19, %s31
      %s33 = ssub.s32 %s20, %s27
      %s34 = sor.u32 %s32, %s33
      %p35 = scmp.eq.s32.totalorder %s34, 0
      %s37 = sadd.s32 %s36, 1
      %s38 = scalar_select %p35, %s36, %s37
      %p41 = pneg %p35
      %p42 = scmp.eq.s32.totalorder %s12, 1
      %p43 = por %p41, %p42
      %p44 = scmp.ne.s32.totalorder %s36, %s39
      %p45 = scmp.eq.s32.totalorder %s12, 0
      %p46 = por %p44, %p45
      %p47 = scmp.ne.s32.totalorder %s36, %s39
      %p48 = scmp.eq.s32.totalorder %s17, 1
      %p49 = por %p47, %p48
      %p50 = scmp.ne.s32.totalorder %s39, %s40
      %p51 = scmp.eq.s32.totalorder %s17, 0
      %p52 = por %p50, %p51
      %p53 = scmp.ne.s32.totalorder %s39, %s40
      %p54 = scmp.eq.s32.totalorder %s18, 1
      %p55 = por %p53, %p54
      %p57 = scmp.ne.s32.totalorder %s40, %s56
      %p58 = scmp.eq.s32.totalorder %s18, 0
      %p59 = por %p57, %p58
      %s60 = sadd.s32 %s20, 1
      %s61 = smul.u32 %s60, 2
      %p62 = scmp.lt.s32.totalorder %s61, 1
      %s63 = scalar_select %p62, %s61, 1
      %s64 = sadd.s32 %s27, 1
      %s65 = smul.u32 %s64, 2
      %p66 = scmp.lt.s32.totalorder %s65, 1
      %s67 = scalar_select %p66, %s65, 1
      %s68 = ssub.s32 %s19, %s31
      %s69 = ssub.s32 %s63, %s67
      %s70 = sor.u32 %s68, %s69
      %p71 = scmp.eq.s32.totalorder %s70, 0
      %s73 = sadd.s32 %s72, 1
      %s74 = scalar_select %p71, %s72, %s73
      %p77 = pneg %p71
      %p78 = scmp.eq.s32.totalorder %s12, 1
      %p79 = por %p77, %p78
      %p80 = scmp.ne.s32.totalorder %s72, %s75
      %p81 = scmp.eq.s32.totalorder %s12, 0
      %p82 = por %p80, %p81
      %p83 = scmp.ne.s32.totalorder %s72, %s75
      %p84 = scmp.eq.s32.totalorder %s17, 1
      %p85 = por %p83, %p84
      %p86 = scmp.ne.s32.totalorder %s75, %s76
      %p87 = scmp.eq.s32.totalorder %s17, 0
      %p88 = por %p86, %p87
      %p89 = scmp.ne.s32.totalorder %s75, %s76
      %p90 = scmp.eq.s32.totalorder %s18, 1
      %p91 = por %p89, %p90
      %p93 = scmp.ne.s32.totalorder %s76, %s92
      %p94 = scmp.eq.s32.totalorder %s18, 0
      %p95 = por %p93, %p94
      %s97 = sadd.s32 %s96, 1
      %p100 = scmp.eq.s32.totalorder %s12, 1
      %p101 = scmp.ne.s32.totalorder %s96, %s98
      %p102 = scmp.eq.s32.totalorder %s12, 0
      %p103 = por %p101, %p102
      %p104 = scmp.ne.s32.totalorder %s96, %s98
      %p105 = scmp.eq.s32.totalorder %s17, 1
      %p106 = por %p104, %p105
      %p107 = scmp.ne.s32.totalorder %s98, %s99
      %p108 = scmp.eq.s32.totalorder %s17, 0
      %p109 = por %p107, %p108
      %p110 = scmp.ne.s32.totalorder %s98, %s99
      %p111 = scmp.eq.s32.totalorder %s18, 1
      %p112 = por %p110, %p111
      %p114 = scmp.ne.s32.totalorder %s99, %s113
      %p115 = scmp.eq.s32.totalorder %s18, 0
      %p116 = por %p114, %p115
      %s118 = sadd.s32 %s117, 1
      %p121 = scmp.eq.s32.totalorder %s12, 1
      %p122 = scmp.ne.s32.totalorder %s117, %s119
      %p123 = scmp.eq.s32.totalorder %s12, 0
      %p124 = por %p122, %p123
      %p125 = scmp.ne.s32.totalorder %s117, %s119
      %p126 = scmp.eq.s32.totalorder %s17, 1
      %p127 = por %p125, %p126
      %p128 = scmp.ne.s32.totalorder %s119, %s120
      %p129 = scmp.eq.s32.totalorder %s17, 0
      %p130 = por %p128, %p129
      %p131 = scmp.ne.s32.totalorder %s119, %s120
      %p132 = scmp.eq.s32.totalorder %s18, 1
      %p133 = por %p131, %p132
      %p135 = scmp.ne.s32.totalorder %s120, %s134
      %p136 = scmp.eq.s32.totalorder %s18, 0
      %p137 = por %p135, %p136
      %s138 = ssub.s32 %s19, %s31
      %s139 = ssub.s32 %s20, %s27
      %s140 = sor.u32 %s138, %s139
      %p141 = scmp.eq.s32.totalorder %s140, 0
      %s143 = sadd.s32 %s142, 1
      %s144 = scalar_select %p141, %s142, %s143
      %p147 = pneg %p141
      %p148 = scmp.eq.s32.totalorder %s12, 1
      %p149 = por %p147, %p148
      %p150 = scmp.ne.s32.totalorder %s142, %s145
      %p151 = scmp.eq.s32.totalorder %s12, 0
      %p152 = por %p150, %p151
      %p153 = scmp.ne.s32.totalorder %s142, %s145
      %p154 = scmp.eq.s32.totalorder %s17, 1
      %p155 = por %p153, %p154
      %p156 = scmp.ne.s32.totalorder %s145, %s146
      %p157 = scmp.eq.s32.totalorder %s17, 0
      %p158 = por %p156, %p157
      %p159 = scmp.ne.s32.totalorder %s145, %s146
      %p160 = scmp.eq.s32.totalorder %s18, 1
      %p161 = por %p159, %p160
      %p163 = scmp.ne.s32.totalorder %s146, %s162
      %p164 = scmp.eq.s32.totalorder %s18, 0
      %p165 = por %p163, %p164
      %p166 = scmp.le.s32.totalorder 1, %s12
      %p167 = scmp.lt.s32.totalorder %s12, 3
      %p168 = pnand %p166, %p167
      %p169 = pneg %p168
      // Predicated region
      $region9: #{tudui_forward.1} parent=5 // pred_check
        _
      $region10: #{tudui_forward.1} parent=5 // pred_check_branch
        %171 = sbr.rel (%p168) target = $region12
      $region11: #{tudui_forward.1} parent=5 // pred_region
        %s172 = ssub.s32 %s12, 1
        // Predicated region
        $region13: #{tudui_forward.1} parent=11 // pred_check
          %p173 = pneg %p109
        $region14: #{tudui_forward.1} parent=11 // pred_check_branch
          %175 = sbr.rel (%p173) target = $region16
        $region15: #{tudui_forward.1} parent=11 // pred_region
          %s177 = ssub.s32 32, 32
          %178 = vsyncadd [#allocation5], %s177
          %s180 = sshll.u32 %s2, 4
          %s181 = int_to_ptr.vmem [resolvable:$true] %s180
          %183 = dma.vmem_to_smem %s181, 32, [#allocation4], [#allocation5]
        $region16: #{tudui_forward.1} parent=11 // pred_fallthru
          _
        // Predicated region
        $region17: #{tudui_forward.1} parent=11 // pred_check
          %p184 = pneg %p130
        $region18: #{tudui_forward.1} parent=11 // pred_check_branch
          %186 = sbr.rel (%p184) target = $region20
        $region19: #{tudui_forward.1} parent=11 // pred_region
          %s188 = ssub.s32 16, 16
          %189 = vsyncadd [#allocation7], %s188
          %s191 = sshll.u32 %s3, 4
          %s192 = int_to_ptr.vmem [resolvable:$true] %s191
          %194 = dma.vmem_to_smem %s192, 16, [#allocation6], [#allocation7]
        $region20: #{tudui_forward.1} parent=11 // pred_fallthru
          _
      $region12: #{tudui_forward.1} parent=5 // pred_fallthru
        _
      %p195 = scmp.lt.s32.totalorder %s12, 2
      // Predicated region
      $region21: #{tudui_forward.1} parent=5 // pred_check
        %p196 = pneg %p195
      $region22: #{tudui_forward.1} parent=5 // pred_check_branch
        %198 = sbr.rel (%p196) target = $region24
      $region23: #{tudui_forward.1} parent=5 // pred_region
        // Predicated region
        $region25: #{tudui_forward.1} parent=23 // pred_check
          %p199 = pneg %p46
        $region26: #{tudui_forward.1} parent=23 // pred_check_branch
          %201 = sbr.rel (%p199) target = $region28
        $region27: #{tudui_forward.1} parent=23 // pred_region
          %s202 = smul.u32 2, %s20
          %p203 = scmp.lt.s32.totalorder %s19, 1
          %s204 = scalar_select %p203, %s19, 1
          %p205 = scmp.lt.s32.totalorder %s202, 1
          %s206 = scalar_select %p205, %s202, 1
          %s207 = smul.addr %s204, 6
          %s208 = sadd.s32 %s206, %s207
          %s209 = smul.addr %s208, 8
          %s210 = scalar_lea.vmem %s0, %s209
          %s211 = smul.u32 2, %s20
        $region28: #{tudui_forward.1} parent=23 // pred_fallthru
          _
        // Predicated region
        $region29: #{tudui_forward.1} parent=23 // pred_check
          %p212 = pneg %p82
        $region30: #{tudui_forward.1} parent=23 // pred_check_branch
          %214 = sbr.rel (%p212) target = $region32
        $region31: #{tudui_forward.1} parent=23 // pred_region
          %s215 = sand.u32 %s72, 1
          %s216 = sand.u32 %s72, 1
          %s217 = smul.addr %s216, 24
          %s218 = scalar_lea.vmem [#allocation3], %s217
          %s219 = sadd.s32 %s20, 1
          %s220 = smul.u32 %s219, 2
          %p221 = scmp.lt.s32.totalorder %s220, 1
          %s222 = scalar_select %p221, %s220, 1
          %s223 = smul.addr %s19, 6
          %s224 = sadd.s32 %s222, %s223
          %s225 = smul.addr %s224, 8
          %s226 = scalar_lea.vmem %s1, %s225
          // Predicated region
          $region33: #{tudui_forward.1} parent=31 // pred_check
            _
          $region34: #{tudui_forward.1} parent=31 // pred_check_branch
            %228 = sbr.rel (0) target = $region36
          $region35: #{tudui_forward.1} parent=31 // pred_region
            // Predicated region
            $region37: #{tudui_forward.1} parent=35 // pred_check
              _
            $region38: #{tudui_forward.1} parent=35 // pred_check_branch
              %230 = sbr.rel (0) target = $region40
            $region39: #{tudui_forward.1} parent=35 // pred_region
              // Predicated region
              $region52: #{tudui_forward.1} parent=39 // pred_check
                _
              $region53: #{tudui_forward.1} parent=39 // pred_check_branch
                %249 = sbr.rel (0) target = $region55
              $region54: #{tudui_forward.1} parent=39 // pred_region
                loop: start=0, step=1, limit=1
                $region56: #{tudui_forward.1} parent=54 // loop_pre_header
                  _
                $region57: #{tudui_forward.1} parent=54 // loop_header
                  %s251 = sphi 0, %s255
                  %p252 = scmp.ge.s32.totalorder %s251, 1
                  %s256 = sphi %s226, %s226
                  %s257 = sphi %s218, %s218
                $region58: #{tudui_forward.1} parent=54 // loop_header_branch
                  %254 = sbr.rel (%p252) target = $region62
                $region59: #{tudui_forward.1} parent=54 // loop_body
                  %v258 = vld [vmem:[%s256] sm:$0xff]
                  %259 = vst [vmem:[%s257] sm:$0xff] %v258
                  %v260 = vld [vmem:[%s256 + $0x10] sm:$0xff]
                  %261 = vst [vmem:[%s257 + $0x8] sm:$0xff] %v260
                  %v262 = vld [vmem:[%s256 + $0x20] sm:$0xff]
                  %263 = vst [vmem:[%s257 + $0x10] sm:$0xff] %v262
                $region60: #{tudui_forward.1} parent=54 // loop_footer
                  %s255 = sadd.s32 1, %s251
                $region61: #{tudui_forward.1} parent=54 // loop_footer_branch
                  %250 = sbr.rel target = $region57
                $region62: #{tudui_forward.1} parent=54 // loop_exit
                  _
              $region55: #{tudui_forward.1} parent=39 // pred_fallthru
                _
              // Predicated region
              $region63: #{tudui_forward.1} parent=39 // pred_check
                _
              $region64: #{tudui_forward.1} parent=39 // pred_check_branch
                %265 = sbr.rel target = $region66
              $region65: #{tudui_forward.1} parent=39 // pred_region
                _
              $region66: #{tudui_forward.1} parent=39 // pred_fallthru
                _
            $region40: #{tudui_forward.1} parent=35 // pred_fallthru
              _
            // Predicated region
            $region41: #{tudui_forward.1} parent=35 // pred_check
              _
            $region42: #{tudui_forward.1} parent=35 // pred_check_branch
              %232 = sbr.rel target = $region44
            $region43: #{tudui_forward.1} parent=35 // pred_region
              loop: start=0, step=1, limit=1
              $region45: #{tudui_forward.1} parent=43 // loop_pre_header
                _
              $region46: #{tudui_forward.1} parent=43 // loop_header
                %s235 = sphi 0, %s239
                %p236 = scmp.ge.s32.totalorder %s235, 1
                %s240 = sphi %s226, %s226
                %s241 = sphi %s218, %s218
              $region47: #{tudui_forward.1} parent=43 // loop_header_branch
                %238 = sbr.rel (%p236) target = $region51
              $region48: #{tudui_forward.1} parent=43 // loop_body
                %v242 = vld [vmem:[%s240] sm:$0xff]
                %243 = vst [vmem:[%s241] sm:$0xff] %v242
                %v244 = vld [vmem:[%s240 + $0x10] sm:$0xff]
                %245 = vst [vmem:[%s241 + $0x8] sm:$0xff] %v244
                %v246 = vld [vmem:[%s240 + $0x20] sm:$0xff]
                %247 = vst [vmem:[%s241 + $0x10] sm:$0xff] %v246
              $region49: #{tudui_forward.1} parent=43 // loop_footer
                %s239 = sadd.s32 1, %s235
              $region50: #{tudui_forward.1} parent=43 // loop_footer_branch
                %234 = sbr.rel target = $region46
              $region51: #{tudui_forward.1} parent=43 // loop_exit
                _
            $region44: #{tudui_forward.1} parent=35 // pred_fallthru
              _
          $region36: #{tudui_forward.1} parent=31 // pred_fallthru
            _
          %266 = vnop
        $region32: #{tudui_forward.1} parent=23 // pred_fallthru
          _
      $region24: #{tudui_forward.1} parent=5 // pred_fallthru
        _
      %p267 = scmp.le.s32.totalorder 1, %s12
      %p268 = scmp.lt.s32.totalorder %s12, 3
      %p269 = pnand %p267, %p268
      %p270 = pneg %p269
      // Predicated region
      $region67: #{tudui_forward.1} parent=5 // pred_check
        _
      $region68: #{tudui_forward.1} parent=5 // pred_check_branch
        %272 = sbr.rel (%p269) target = $region70
      $region69: #{tudui_forward.1} parent=5 // pred_region
        %s273 = ssub.s32 %s12, 1
        %s274 = sand.u32 %s75, 1
        %s275 = sand.u32 %s75, 1
        %s276 = smul.addr %s275, 24
        %s277 = scalar_lea.vmem [#allocation3], %s276
        // Predicated region
        $region71: #{tudui_forward.1} parent=69 // pred_check
          %p278 = pneg %p88
        $region72: #{tudui_forward.1} parent=69 // pred_check_branch
          %280 = sbr.rel (%p278) target = $region74
        $region73: #{tudui_forward.1} parent=69 // pred_region
          _
        $region74: #{tudui_forward.1} parent=69 // pred_fallthru
          _
        // Predicated region
        $region75: #{tudui_forward.1} parent=69 // pred_check
          %p281 = pneg %p109
        $region76: #{tudui_forward.1} parent=69 // pred_check_branch
          %283 = sbr.rel (%p281) target = $region78
        $region77: #{tudui_forward.1} parent=69 // pred_region
          %284 = dma.done [#allocation5], 32
        $region78: #{tudui_forward.1} parent=69 // pred_fallthru
          _
        // Predicated region
        $region79: #{tudui_forward.1} parent=69 // pred_check
          %p285 = pneg %p130
        $region80: #{tudui_forward.1} parent=69 // pred_check_branch
          %287 = sbr.rel (%p285) target = $region82
        $region81: #{tudui_forward.1} parent=69 // pred_region
          %288 = dma.done [#allocation7], 16
        $region82: #{tudui_forward.1} parent=69 // pred_fallthru
          _
        %289 = sfence
        %s290 = smul.u32 2, %s22
        %p291 = scmp.lt.s32.totalorder %s21, 1
        %s292 = scalar_select %p291, %s21, 1
        %p293 = scmp.lt.s32.totalorder %s290, 1
        %s294 = scalar_select %p293, %s290, 1
        %s295 = smul.addr %s292, 6
        %s296 = sadd.s32 %s294, %s295
        %s297 = smul.addr %s296, 8
        %s298 = scalar_lea.vmem %s0, %s297
        %p299 = pneg %p52
        %p300 = pneg %p49
        %s301 = sand.u32 %s75, 1
        %s302 = sand.u32 %s75, 1
        %s303 = smul.addr %s302, 24
        %s304 = scalar_lea.vmem [#allocation3], %s303
        %p305 = pneg %p88
        %p306 = pneg %p85
        %p307 = pneg %p109
        %p308 = pneg %p106
        %p309 = pneg %p130
        %p310 = pneg %p127
        %p311 = pneg %p158
        %p312 = pneg %p155
        %s313 = smul.u32 2, %s22
        %p314 = scmp.lt.s32.totalorder %s21, 1
        %s315 = scalar_select %p314, %s21, 1
        %p316 = scmp.lt.s32.totalorder %s313, 1
        %s317 = scalar_select %p316, %s313, 1
        %s318 = smul.addr %s315, 12
        %s319 = sadd.s32 %s317, %s318
        %s320 = smul.addr %s319, 8
        %s321 = scalar_lea.vmem %s4, %s320
        %s322 = smul.u32 2, %s22
        %p323 = scmp.lt.s32.totalorder %s21, 1
        %s324 = scalar_select %p323, %s21, 1
        %p325 = scmp.lt.s32.totalorder %s322, 1
        %s326 = scalar_select %p325, %s322, 1
        %s327 = smul.addr %s324, 6
        %s328 = sadd.s32 %s326, %s327
        %s329 = smul.addr %s328, 8
        %s330 = scalar_lea.vmem %s0, %s329
        %s331 = smul.u32 2, %s22
        %s332 = sadd.s32 %s22, 1
        %s333 = smul.u32 %s332, 2
        %p334 = scmp.lt.s32.totalorder %s333, 1
        %s335 = scalar_select %p334, %s333, 1
        %s336 = smul.u32 2, %s22
        %p337 = scmp.lt.s32.totalorder %s21, 1
        %s338 = scalar_select %p337, %s21, 1
        %p339 = scmp.lt.s32.totalorder %s336, 1
        %s340 = scalar_select %p339, %s336, 1
        %s341 = smul.addr %s338, 12
        %s342 = sadd.s32 %s340, %s341
        %s343 = smul.addr %s342, 8
        %s344 = scalar_lea.vmem %s4, %s343
        %s345 = smul.u32 2, %s22
        %v346 = vld [vmem:[%s330 + $0x8] sm:$0xff]
        %v347 = vld [vmem:[%s330 + $0x18] sm:$0xff]
        %v348 = vld [vmem:[%s330 + $0x28] sm:$0xff]
        %vm349 = vcmask 130048
        %350 = vst.msk [vmem:[#allocation2] sm:$0xff] %vm349, %v346
        %351 = vst.msk [vmem:[#allocation2 + $0x10] sm:$0xff] %vm349, %v347
        %352 = vst.msk [vmem:[#allocation2 + $0x20] sm:$0xff] %vm349, %v348
        %v353 = vld [vmem:[%s277] sm:$0xff]
        %v354 = vld [vmem:[%s277 + $0x8] sm:$0xff]
        %v355 = vld [vmem:[%s277 + $0x10] sm:$0xff]
        %356 = vst.msk [vmem:[#allocation2 + $0x8] sm:$0xff] %vm349, %v353
        %357 = vst.msk [vmem:[#allocation2 + $0x18] sm:$0xff] %vm349, %v354
        %358 = vst.msk [vmem:[#allocation2 + $0x28] sm:$0xff] %vm349, %v355
        %s359 = sld [smem:[#allocation4]]
        %s360 = sld [smem:[#allocation4 + $0x1]]
        %s361 = sld [smem:[#allocation4 + $0x2]]
        %s362 = sld [smem:[#allocation4 + $0x3]]
        %s363 = sld [smem:[#allocation4 + $0x4]]
        %s364 = sld [smem:[#allocation4 + $0x5]]
        %s365 = sld [smem:[#allocation4 + $0x6]]
        %s366 = sld [smem:[#allocation4 + $0x7]]
        %s367 = sld [smem:[#allocation4 + $0x8]]
        %s368 = sld [smem:[#allocation4 + $0x9]]
        %s369 = sld [smem:[#allocation4 + $0xa]]
        %s370 = sld [smem:[#allocation4 + $0xb]]
        %s371 = sld [smem:[#allocation4 + $0xc]]
        %s372 = sld [smem:[#allocation4 + $0xd]]
        %s373 = sld [smem:[#allocation4 + $0xe]]
        %s374 = sld [smem:[#allocation4 + $0xf]]
        %s375 = sld [smem:[#allocation4 + $0x10]]
        %s376 = sld [smem:[#allocation4 + $0x11]]
        %s377 = sld [smem:[#allocation4 + $0x12]]
        %s378 = sld [smem:[#allocation4 + $0x13]]
        %s379 = sld [smem:[#allocation4 + $0x14]]
        %s380 = sld [smem:[#allocation4 + $0x15]]
        %s381 = sld [smem:[#allocation4 + $0x16]]
        %s382 = sld [smem:[#allocation4 + $0x17]]
        %s383 = sld [smem:[#allocation4 + $0x18]]
        %s384 = sld [smem:[#allocation4 + $0x19]]
        %s385 = sld [smem:[#allocation4 + $0x1a]]
        %s386 = sld [smem:[#allocation4 + $0x1b]]
        %s387 = sld [smem:[#allocation4 + $0x1c]]
        %s388 = sld [smem:[#allocation4 + $0x1d]]
        %s389 = sld [smem:[#allocation4 + $0x1e]]
        %s390 = sld [smem:[#allocation4 + $0x1f]]
        %s391 = sld [smem:[#allocation4 + $0x20]]
        %s392 = sld [smem:[#allocation4 + $0x21]]
        %s393 = sld [smem:[#allocation4 + $0x22]]
        %s394 = sld [smem:[#allocation4 + $0x23]]
        %s395 = sld [smem:[#allocation4 + $0x24]]
        %s396 = sld [smem:[#allocation4 + $0x25]]
        %s397 = sld [smem:[#allocation4 + $0x26]]
        %s398 = sld [smem:[#allocation4 + $0x27]]
        %s399 = sld [smem:[#allocation4 + $0x28]]
        %s400 = sld [smem:[#allocation4 + $0x29]]
        %s401 = sld [smem:[#allocation4 + $0x2a]]
        %s402 = sld [smem:[#allocation4 + $0x2b]]
        %s403 = sld [smem:[#allocation4 + $0x2c]]
        %s404 = sld [smem:[#allocation4 + $0x2d]]
        %s405 = sld [smem:[#allocation4 + $0x2e]]
        %s406 = sld [smem:[#allocation4 + $0x2f]]
        %s407 = sld [smem:[#allocation4 + $0x30]]
        %s408 = sld [smem:[#allocation4 + $0x31]]
        %s409 = sld [smem:[#allocation4 + $0x32]]
        %s410 = sld [smem:[#allocation4 + $0x33]]
        %s411 = sld [smem:[#allocation4 + $0x34]]
        %s412 = sld [smem:[#allocation4 + $0x35]]
        %s413 = sld [smem:[#allocation4 + $0x36]]
        %s414 = sld [smem:[#allocation4 + $0x37]]
        %s415 = sld [smem:[#allocation4 + $0x38]]
        %s416 = sld [smem:[#allocation4 + $0x39]]
        %s417 = sld [smem:[#allocation4 + $0x3a]]
        %s418 = sld [smem:[#allocation4 + $0x3b]]
        %s419 = sld [smem:[#allocation4 + $0x3c]]
        %s420 = sld [smem:[#allocation4 + $0x3d]]
        %s421 = sld [smem:[#allocation4 + $0x3e]]
        %s422 = sld [smem:[#allocation4 + $0x3f]]
        %s423 = sld [smem:[#allocation4 + $0x40]]
        %s424 = sld [smem:[#allocation4 + $0x41]]
        %s425 = sld [smem:[#allocation4 + $0x42]]
        %s426 = sld [smem:[#allocation4 + $0x43]]
        %s427 = sld [smem:[#allocation4 + $0x44]]
        %s428 = sld [smem:[#allocation4 + $0x45]]
        %s429 = sld [smem:[#allocation4 + $0x46]]
        %s430 = sld [smem:[#allocation4 + $0x47]]
        %s431 = sld [smem:[#allocation4 + $0x48]]
        %s432 = sld [smem:[#allocation4 + $0x49]]
        %s433 = sld [smem:[#allocation4 + $0x4a]]
        %s434 = sld [smem:[#allocation4 + $0x4b]]
        %s435 = sld [smem:[#allocation4 + $0x4c]]
        %s436 = sld [smem:[#allocation4 + $0x4d]]
        %s437 = sld [smem:[#allocation4 + $0x4e]]
        %s438 = sld [smem:[#allocation4 + $0x4f]]
        %s439 = sld [smem:[#allocation4 + $0x50]]
        %s440 = sld [smem:[#allocation4 + $0x51]]
        %s441 = sld [smem:[#allocation4 + $0x52]]
        %s442 = sld [smem:[#allocation4 + $0x53]]
        %s443 = sld [smem:[#allocation4 + $0x54]]
        %s444 = sld [smem:[#allocation4 + $0x55]]
        %s445 = sld [smem:[#allocation4 + $0x56]]
        %s446 = sld [smem:[#allocation4 + $0x57]]
        %s447 = sld [smem:[#allocation4 + $0x58]]
        %s448 = sld [smem:[#allocation4 + $0x59]]
        %s449 = sld [smem:[#allocation4 + $0x5a]]
        %s450 = sld [smem:[#allocation4 + $0x5b]]
        %s451 = sld [smem:[#allocation4 + $0x5c]]
        %s452 = sld [smem:[#allocation4 + $0x5d]]
        %s453 = sld [smem:[#allocation4 + $0x5e]]
        %s454 = sld [smem:[#allocation4 + $0x5f]]
        %s455 = sld [smem:[#allocation4 + $0x60]]
        %s456 = sld [smem:[#allocation4 + $0x61]]
        %s457 = sld [smem:[#allocation4 + $0x62]]
        %s458 = sld [smem:[#allocation4 + $0x63]]
        %s459 = sld [smem:[#allocation4 + $0x64]]
        %s460 = sld [smem:[#allocation4 + $0x65]]
        %s461 = sld [smem:[#allocation4 + $0x66]]
        %s462 = sld [smem:[#allocation4 + $0x67]]
        %s463 = sld [smem:[#allocation4 + $0x68]]
        %s464 = sld [smem:[#allocation4 + $0x69]]
        %s465 = sld [smem:[#allocation4 + $0x6a]]
        %s466 = sld [smem:[#allocation4 + $0x6b]]
        %s467 = sld [smem:[#allocation4 + $0x6c]]
        %s468 = sld [smem:[#allocation4 + $0x6d]]
        %s469 = sld [smem:[#allocation4 + $0x6e]]
        %s470 = sld [smem:[#allocation4 + $0x6f]]
        %s471 = sld [smem:[#allocation4 + $0x70]]
        %s472 = sld [smem:[#allocation4 + $0x71]]
        %s473 = sld [smem:[#allocation4 + $0x72]]
        %s474 = sld [smem:[#allocation4 + $0x73]]
        %s475 = sld [smem:[#allocation4 + $0x74]]
        %s476 = sld [smem:[#allocation4 + $0x75]]
        %s477 = sld [smem:[#allocation4 + $0x76]]
        %s478 = sld [smem:[#allocation4 + $0x77]]
        %s479 = sld [smem:[#allocation4 + $0x78]]
        %s480 = sld [smem:[#allocation4 + $0x79]]
        %s481 = sld [smem:[#allocation4 + $0x7a]]
        %s482 = sld [smem:[#allocation4 + $0x7b]]
        %s483 = sld [smem:[#allocation4 + $0x7c]]
        %s484 = sld [smem:[#allocation4 + $0x7d]]
        %s485 = sld [smem:[#allocation4 + $0x7e]]
        %s486 = sld [smem:[#allocation4 + $0x7f]]
        %s487 = sld [smem:[#allocation4 + $0x80]]
        %s488 = sld [smem:[#allocation4 + $0x81]]
        %s489 = sld [smem:[#allocation4 + $0x82]]
        %s490 = sld [smem:[#allocation4 + $0x83]]
        %s491 = sld [smem:[#allocation4 + $0x84]]
        %s492 = sld [smem:[#allocation4 + $0x85]]
        %s493 = sld [smem:[#allocation4 + $0x86]]
        %s494 = sld [smem:[#allocation4 + $0x87]]
        %s495 = sld [smem:[#allocation4 + $0x88]]
        %s496 = sld [smem:[#allocation4 + $0x89]]
        %s497 = sld [smem:[#allocation4 + $0x8a]]
        %s498 = sld [smem:[#allocation4 + $0x8b]]
        %s499 = sld [smem:[#allocation4 + $0x8c]]
        %s500 = sld [smem:[#allocation4 + $0x8d]]
        %s501 = sld [smem:[#allocation4 + $0x8e]]
        %s502 = sld [smem:[#allocation4 + $0x8f]]
        %s503 = sld [smem:[#allocation4 + $0x90]]
        %s504 = sld [smem:[#allocation4 + $0x91]]
        %s505 = sld [smem:[#allocation4 + $0x92]]
        %s506 = sld [smem:[#allocation4 + $0x93]]
        %s507 = sld [smem:[#allocation4 + $0x94]]
        %s508 = sld [smem:[#allocation4 + $0x95]]
        %s509 = sld [smem:[#allocation4 + $0x96]]
        %s510 = sld [smem:[#allocation4 + $0x97]]
        %s511 = sld [smem:[#allocation4 + $0x98]]
        %s512 = sld [smem:[#allocation4 + $0x99]]
        %s513 = sld [smem:[#allocation4 + $0x9a]]
        %s514 = sld [smem:[#allocation4 + $0x9b]]
        %s515 = sld [smem:[#allocation4 + $0x9c]]
        %s516 = sld [smem:[#allocation4 + $0x9d]]
        %s517 = sld [smem:[#allocation4 + $0x9e]]
        %s518 = sld [smem:[#allocation4 + $0x9f]]
        %s519 = sld [smem:[#allocation4 + $0xa0]]
        %s520 = sld [smem:[#allocation4 + $0xa1]]
        %s521 = sld [smem:[#allocation6]]
        %s522 = sld [smem:[#allocation6 + $0x1]]
        %s523 = sld [smem:[#allocation6 + $0x2]]
        %s524 = sld [smem:[#allocation6 + $0x3]]
        %s525 = sld [smem:[#allocation6 + $0x4]]
        %s526 = sld [smem:[#allocation6 + $0x5]]
        %v527 = vstv %s521
        %v528 = vstv %s522
        %v529 = vstv %s523
        %v530 = vstv %s524
        %v531 = vstv %s525
        %v532 = vstv %s526
        %v533 = vld [vmem:[%s330] sm:$0xff]
        %v534 = vstv %s359
        %v535 = vmul.f32 %v534, %v533
        %v536 = vadd.f32 %v527, %v535
        %v537 = vstv %s386
        %v538 = vmul.f32 %v537, %v533
        %v539 = vadd.f32 %v528, %v538
        %v540 = vstv %s413
        %v541 = vmul.f32 %v540, %v533
        %v542 = vadd.f32 %v529, %v541
        %v543 = vstv %s440
        %v544 = vmul.f32 %v543, %v533
        %v545 = vadd.f32 %v530, %v544
        %v546 = vstv %s467
        %v547 = vmul.f32 %v546, %v533
        %v548 = vadd.f32 %v531, %v547
        %v549 = vstv %s494
        %v550 = vmul.f32 %v549, %v533
        %v551 = vadd.f32 %v532, %v550
        %v552 = vstv %s360
        %v553 = vmul.f32 %v552, %v533
        %555 = vrot.lane.b32.xlu0 %v553, 127
        %v556 = vpop.permute.xlu0 %555
        %v558 = vadd.f32 %v536, %v556
        %v559 = vstv %s387
        %v560 = vmul.f32 %v559, %v533
        %562 = vrot.lane.b32.xlu0 %v560, 127
        %v563 = vpop.permute.xlu0 %562
        %v565 = vadd.f32 %v539, %v563
        %v566 = vstv %s414
        %v567 = vmul.f32 %v566, %v533
        %569 = vrot.lane.b32.xlu0 %v567, 127
        %v570 = vpop.permute.xlu0 %569
        %v572 = vadd.f32 %v542, %v570
        %v573 = vstv %s441
        %v574 = vmul.f32 %v573, %v533
        %576 = vrot.lane.b32.xlu0 %v574, 127
        %v577 = vpop.permute.xlu0 %576
        %v579 = vadd.f32 %v545, %v577
        %v580 = vstv %s468
        %v581 = vmul.f32 %v580, %v533
        %583 = vrot.lane.b32.xlu0 %v581, 127
        %v584 = vpop.permute.xlu0 %583
        %v586 = vadd.f32 %v548, %v584
        %v587 = vstv %s495
        %v588 = vmul.f32 %v587, %v533
        %590 = vrot.lane.b32.xlu0 %v588, 127
        %v591 = vpop.permute.xlu0 %590
        %v593 = vadd.f32 %v551, %v591
        %v594 = vstv %s361
        %v595 = vmul.f32 %v594, %v533
        %597 = vrot.lane.b32.xlu0 %v595, 126
        %v598 = vpop.permute.xlu0 %597
        %v600 = vadd.f32 %v558, %v598
        %v601 = vstv %s388
        %v602 = vmul.f32 %v601, %v533
        %604 = vrot.lane.b32.xlu0 %v602, 126
        %v605 = vpop.permute.xlu0 %604
        %v607 = vadd.f32 %v565, %v605
        %v608 = vstv %s415
        %v609 = vmul.f32 %v608, %v533
        %611 = vrot.lane.b32.xlu0 %v609, 126
        %v612 = vpop.permute.xlu0 %611
        %v614 = vadd.f32 %v572, %v612
        %v615 = vstv %s442
        %v616 = vmul.f32 %v615, %v533
        %618 = vrot.lane.b32.xlu0 %v616, 126
        %v619 = vpop.permute.xlu0 %618
        %v621 = vadd.f32 %v579, %v619
        %v622 = vstv %s469
        %v623 = vmul.f32 %v622, %v533
        %625 = vrot.lane.b32.xlu0 %v623, 126
        %v626 = vpop.permute.xlu0 %625
        %v628 = vadd.f32 %v586, %v626
        %v629 = vstv %s496
        %v630 = vmul.f32 %v629, %v533
        %632 = vrot.lane.b32.xlu0 %v630, 126
        %v633 = vpop.permute.xlu0 %632
        %v635 = vadd.f32 %v593, %v633
        %s636 = sadd.s32 0, 1
        %s637 = scalar_lea.vmem %s330, %s636
        %v638 = vld [vmem:[%s637] sm:$0xff]
        %v639 = vstv %s362
        %v640 = vmul.f32 %v639, %v638
        %v641 = vadd.f32 %v600, %v640
        %v642 = vstv %s389
        %v643 = vmul.f32 %v642, %v638
        %v644 = vadd.f32 %v607, %v643
        %v645 = vstv %s416
        %v646 = vmul.f32 %v645, %v638
        %v647 = vadd.f32 %v614, %v646
        %v648 = vstv %s443
        %v649 = vmul.f32 %v648, %v638
        %v650 = vadd.f32 %v621, %v649
        %v651 = vstv %s470
        %v652 = vmul.f32 %v651, %v638
        %v653 = vadd.f32 %v628, %v652
        %v654 = vstv %s497
        %v655 = vmul.f32 %v654, %v638
        %v656 = vadd.f32 %v635, %v655
        %v657 = vstv %s363
        %v658 = vmul.f32 %v657, %v638
        %660 = vrot.lane.b32.xlu0 %v658, 127
        %v661 = vpop.permute.xlu0 %660
        %v663 = vadd.f32 %v641, %v661
        %v664 = vstv %s390
        %v665 = vmul.f32 %v664, %v638
        %667 = vrot.lane.b32.xlu0 %v665, 127
        %v668 = vpop.permute.xlu0 %667
        %v670 = vadd.f32 %v644, %v668
        %v671 = vstv %s417
        %v672 = vmul.f32 %v671, %v638
        %674 = vrot.lane.b32.xlu0 %v672, 127
        %v675 = vpop.permute.xlu0 %674
        %v677 = vadd.f32 %v647, %v675
        %v678 = vstv %s444
        %v679 = vmul.f32 %v678, %v638
        %681 = vrot.lane.b32.xlu0 %v679, 127
        %v682 = vpop.permute.xlu0 %681
        %v684 = vadd.f32 %v650, %v682
        %v685 = vstv %s471
        %v686 = vmul.f32 %v685, %v638
        %688 = vrot.lane.b32.xlu0 %v686, 127
        %v689 = vpop.permute.xlu0 %688
        %v691 = vadd.f32 %v653, %v689
        %v692 = vstv %s498
        %v693 = vmul.f32 %v692, %v638
        %695 = vrot.lane.b32.xlu0 %v693, 127
        %v696 = vpop.permute.xlu0 %695
        %v698 = vadd.f32 %v656, %v696
        %v699 = vstv %s364
        %v700 = vmul.f32 %v699, %v638
        %702 = vrot.lane.b32.xlu0 %v700, 126
        %v703 = vpop.permute.xlu0 %702
        %v705 = vadd.f32 %v663, %v703
        %v706 = vstv %s391
        %v707 = vmul.f32 %v706, %v638
        %709 = vrot.lane.b32.xlu0 %v707, 126
        %v710 = vpop.permute.xlu0 %709
        %v712 = vadd.f32 %v670, %v710
        %v713 = vstv %s418
        %v714 = vmul.f32 %v713, %v638
        %716 = vrot.lane.b32.xlu0 %v714, 126
        %v717 = vpop.permute.xlu0 %716
        %v719 = vadd.f32 %v677, %v717
        %v720 = vstv %s445
        %v721 = vmul.f32 %v720, %v638
        %723 = vrot.lane.b32.xlu0 %v721, 126
        %v724 = vpop.permute.xlu0 %723
        %v726 = vadd.f32 %v684, %v724
        %v727 = vstv %s472
        %v728 = vmul.f32 %v727, %v638
        %730 = vrot.lane.b32.xlu0 %v728, 126
        %v731 = vpop.permute.xlu0 %730
        %v733 = vadd.f32 %v691, %v731
        %v734 = vstv %s499
        %v735 = vmul.f32 %v734, %v638
        %737 = vrot.lane.b32.xlu0 %v735, 126
        %v738 = vpop.permute.xlu0 %737
        %v740 = vadd.f32 %v698, %v738
        %s741 = sadd.s32 0, 2
        %s742 = scalar_lea.vmem %s330, %s741
        %v743 = vld [vmem:[%s742] sm:$0xff]
        %v744 = vstv %s365
        %v745 = vmul.f32 %v744, %v743
        %v746 = vadd.f32 %v705, %v745
        %v747 = vstv %s392
        %v748 = vmul.f32 %v747, %v743
        %v749 = vadd.f32 %v712, %v748
        %v750 = vstv %s419
        %v751 = vmul.f32 %v750, %v743
        %v752 = vadd.f32 %v719, %v751
        %v753 = vstv %s446
        %v754 = vmul.f32 %v753, %v743
        %v755 = vadd.f32 %v726, %v754
        %v756 = vstv %s473
        %v757 = vmul.f32 %v756, %v743
        %v758 = vadd.f32 %v733, %v757
        %v759 = vstv %s500
        %v760 = vmul.f32 %v759, %v743
        %v761 = vadd.f32 %v740, %v760
        %v762 = vstv %s366
        %v763 = vmul.f32 %v762, %v743
        %765 = vrot.lane.b32.xlu0 %v763, 127
        %v766 = vpop.permute.xlu0 %765
        %v768 = vadd.f32 %v746, %v766
        %v769 = vstv %s393
        %v770 = vmul.f32 %v769, %v743
        %772 = vrot.lane.b32.xlu0 %v770, 127
        %v773 = vpop.permute.xlu0 %772
        %v775 = vadd.f32 %v749, %v773
        %v776 = vstv %s420
        %v777 = vmul.f32 %v776, %v743
        %779 = vrot.lane.b32.xlu0 %v777, 127
        %v780 = vpop.permute.xlu0 %779
        %v782 = vadd.f32 %v752, %v780
        %v783 = vstv %s447
        %v784 = vmul.f32 %v783, %v743
        %786 = vrot.lane.b32.xlu0 %v784, 127
        %v787 = vpop.permute.xlu0 %786
        %v789 = vadd.f32 %v755, %v787
        %v790 = vstv %s474
        %v791 = vmul.f32 %v790, %v743
        %793 = vrot.lane.b32.xlu0 %v791, 127
        %v794 = vpop.permute.xlu0 %793
        %v796 = vadd.f32 %v758, %v794
        %v797 = vstv %s501
        %v798 = vmul.f32 %v797, %v743
        %800 = vrot.lane.b32.xlu0 %v798, 127
        %v801 = vpop.permute.xlu0 %800
        %v803 = vadd.f32 %v761, %v801
        %v804 = vstv %s367
        %v805 = vmul.f32 %v804, %v743
        %807 = vrot.lane.b32.xlu0 %v805, 126
        %v808 = vpop.permute.xlu0 %807
        %v810 = vadd.f32 %v768, %v808
        %v811 = vstv %s394
        %v812 = vmul.f32 %v811, %v743
        %814 = vrot.lane.b32.xlu0 %v812, 126
        %v815 = vpop.permute.xlu0 %814
        %v817 = vadd.f32 %v775, %v815
        %v818 = vstv %s421
        %v819 = vmul.f32 %v818, %v743
        %821 = vrot.lane.b32.xlu0 %v819, 126
        %v822 = vpop.permute.xlu0 %821
        %v824 = vadd.f32 %v782, %v822
        %v825 = vstv %s448
        %v826 = vmul.f32 %v825, %v743
        %828 = vrot.lane.b32.xlu0 %v826, 126
        %v829 = vpop.permute.xlu0 %828
        %v831 = vadd.f32 %v789, %v829
        %v832 = vstv %s475
        %v833 = vmul.f32 %v832, %v743
        %835 = vrot.lane.b32.xlu0 %v833, 126
        %v836 = vpop.permute.xlu0 %835
        %v838 = vadd.f32 %v796, %v836
        %v839 = vstv %s502
        %v840 = vmul.f32 %v839, %v743
        %842 = vrot.lane.b32.xlu0 %v840, 126
        %v843 = vpop.permute.xlu0 %842
        %v845 = vadd.f32 %v803, %v843
        %s846 = sadd.s32 0, 16
        %s847 = scalar_lea.vmem %s330, %s846
        %v848 = vld [vmem:[%s847] sm:$0xff]
        %v849 = vstv %s368
        %v850 = vmul.f32 %v849, %v848
        %v851 = vadd.f32 %v810, %v850
        %v852 = vstv %s395
        %v853 = vmul.f32 %v852, %v848
        %v854 = vadd.f32 %v817, %v853
        %v855 = vstv %s422
        %v856 = vmul.f32 %v855, %v848
        %v857 = vadd.f32 %v824, %v856
        %v858 = vstv %s449
        %v859 = vmul.f32 %v858, %v848
        %v860 = vadd.f32 %v831, %v859
        %v861 = vstv %s476
        %v862 = vmul.f32 %v861, %v848
        %v863 = vadd.f32 %v838, %v862
        %v864 = vstv %s503
        %v865 = vmul.f32 %v864, %v848
        %v866 = vadd.f32 %v845, %v865
        %v867 = vstv %s369
        %v868 = vmul.f32 %v867, %v848
        %870 = vrot.lane.b32.xlu0 %v868, 127
        %v871 = vpop.permute.xlu0 %870
        %v873 = vadd.f32 %v851, %v871
        %v874 = vstv %s396
        %v875 = vmul.f32 %v874, %v848
        %877 = vrot.lane.b32.xlu0 %v875, 127
        %v878 = vpop.permute.xlu0 %877
        %v880 = vadd.f32 %v854, %v878
        %v881 = vstv %s423
        %v882 = vmul.f32 %v881, %v848
        %884 = vrot.lane.b32.xlu0 %v882, 127
        %v885 = vpop.permute.xlu0 %884
        %v887 = vadd.f32 %v857, %v885
        %v888 = vstv %s450
        %v889 = vmul.f32 %v888, %v848
        %891 = vrot.lane.b32.xlu0 %v889, 127
        %v892 = vpop.permute.xlu0 %891
        %v894 = vadd.f32 %v860, %v892
        %v895 = vstv %s477
        %v896 = vmul.f32 %v895, %v848
        %898 = vrot.lane.b32.xlu0 %v896, 127
        %v899 = vpop.permute.xlu0 %898
        %v901 = vadd.f32 %v863, %v899
        %v902 = vstv %s504
        %v903 = vmul.f32 %v902, %v848
        %905 = vrot.lane.b32.xlu0 %v903, 127
        %v906 = vpop.permute.xlu0 %905
        %v908 = vadd.f32 %v866, %v906
        %v909 = vstv %s370
        %v910 = vmul.f32 %v909, %v848
        %912 = vrot.lane.b32.xlu0 %v910, 126
        %v913 = vpop.permute.xlu0 %912
        %v915 = vadd.f32 %v873, %v913
        %v916 = vstv %s397
        %v917 = vmul.f32 %v916, %v848
        %919 = vrot.lane.b32.xlu0 %v917, 126
        %v920 = vpop.permute.xlu0 %919
        %v922 = vadd.f32 %v880, %v920
        %v923 = vstv %s424
        %v924 = vmul.f32 %v923, %v848
        %926 = vrot.lane.b32.xlu0 %v924, 126
        %v927 = vpop.permute.xlu0 %926
        %v929 = vadd.f32 %v887, %v927
        %v930 = vstv %s451
        %v931 = vmul.f32 %v930, %v848
        %933 = vrot.lane.b32.xlu0 %v931, 126
        %v934 = vpop.permute.xlu0 %933
        %v936 = vadd.f32 %v894, %v934
        %v937 = vstv %s478
        %v938 = vmul.f32 %v937, %v848
        %940 = vrot.lane.b32.xlu0 %v938, 126
        %v941 = vpop.permute.xlu0 %940
        %v943 = vadd.f32 %v901, %v941
        %v944 = vstv %s505
        %v945 = vmul.f32 %v944, %v848
        %947 = vrot.lane.b32.xlu0 %v945, 126
        %v948 = vpop.permute.xlu0 %947
        %v950 = vadd.f32 %v908, %v948
        %s951 = sadd.s32 %s636, 16
        %s952 = scalar_lea.vmem %s330, %s951
        %v953 = vld [vmem:[%s952] sm:$0xff]
        %v954 = vstv %s371
        %v955 = vmul.f32 %v954, %v953
        %v956 = vadd.f32 %v915, %v955
        %v957 = vstv %s398
        %v958 = vmul.f32 %v957, %v953
        %v959 = vadd.f32 %v922, %v958
        %v960 = vstv %s425
        %v961 = vmul.f32 %v960, %v953
        %v962 = vadd.f32 %v929, %v961
        %v963 = vstv %s452
        %v964 = vmul.f32 %v963, %v953
        %v965 = vadd.f32 %v936, %v964
        %v966 = vstv %s479
        %v967 = vmul.f32 %v966, %v953
        %v968 = vadd.f32 %v943, %v967
        %v969 = vstv %s506
        %v970 = vmul.f32 %v969, %v953
        %v971 = vadd.f32 %v950, %v970
        %v972 = vstv %s372
        %v973 = vmul.f32 %v972, %v953
        %975 = vrot.lane.b32.xlu0 %v973, 127
        %v976 = vpop.permute.xlu0 %975
        %v978 = vadd.f32 %v956, %v976
        %v979 = vstv %s399
        %v980 = vmul.f32 %v979, %v953
        %982 = vrot.lane.b32.xlu0 %v980, 127
        %v983 = vpop.permute.xlu0 %982
        %v985 = vadd.f32 %v959, %v983
        %v986 = vstv %s426
        %v987 = vmul.f32 %v986, %v953
        %989 = vrot.lane.b32.xlu0 %v987, 127
        %v990 = vpop.permute.xlu0 %989
        %v992 = vadd.f32 %v962, %v990
        %v993 = vstv %s453
        %v994 = vmul.f32 %v993, %v953
        %996 = vrot.lane.b32.xlu0 %v994, 127
        %v997 = vpop.permute.xlu0 %996
        %v999 = vadd.f32 %v965, %v997
        %v1000 = vstv %s480
        %v1001 = vmul.f32 %v1000, %v953
        %1003 = vrot.lane.b32.xlu0 %v1001, 127
        %v1004 = vpop.permute.xlu0 %1003
        %v1006 = vadd.f32 %v968, %v1004
        %v1007 = vstv %s507
        %v1008 = vmul.f32 %v1007, %v953
        %1010 = vrot.lane.b32.xlu0 %v1008, 127
        %v1011 = vpop.permute.xlu0 %1010
        %v1013 = vadd.f32 %v971, %v1011
        %v1014 = vstv %s373
        %v1015 = vmul.f32 %v1014, %v953
        %1017 = vrot.lane.b32.xlu0 %v1015, 126
        %v1018 = vpop.permute.xlu0 %1017
        %v1020 = vadd.f32 %v978, %v1018
        %v1021 = vstv %s400
        %v1022 = vmul.f32 %v1021, %v953
        %1024 = vrot.lane.b32.xlu0 %v1022, 126
        %v1025 = vpop.permute.xlu0 %1024
        %v1027 = vadd.f32 %v985, %v1025
        %v1028 = vstv %s427
        %v1029 = vmul.f32 %v1028, %v953
        %1031 = vrot.lane.b32.xlu0 %v1029, 126
        %v1032 = vpop.permute.xlu0 %1031
        %v1034 = vadd.f32 %v992, %v1032
        %v1035 = vstv %s454
        %v1036 = vmul.f32 %v1035, %v953
        %1038 = vrot.lane.b32.xlu0 %v1036, 126
        %v1039 = vpop.permute.xlu0 %1038
        %v1041 = vadd.f32 %v999, %v1039
        %v1042 = vstv %s481
        %v1043 = vmul.f32 %v1042, %v953
        %1045 = vrot.lane.b32.xlu0 %v1043, 126
        %v1046 = vpop.permute.xlu0 %1045
        %v1048 = vadd.f32 %v1006, %v1046
        %v1049 = vstv %s508
        %v1050 = vmul.f32 %v1049, %v953
        %1052 = vrot.lane.b32.xlu0 %v1050, 126
        %v1053 = vpop.permute.xlu0 %1052
        %v1055 = vadd.f32 %v1013, %v1053
        %s1056 = sadd.s32 %s741, 16
        %s1057 = scalar_lea.vmem %s330, %s1056
        %v1058 = vld [vmem:[%s1057] sm:$0xff]
        %v1059 = vstv %s374
        %v1060 = vmul.f32 %v1059, %v1058
        %v1061 = vadd.f32 %v1020, %v1060
        %v1062 = vstv %s401
        %v1063 = vmul.f32 %v1062, %v1058
        %v1064 = vadd.f32 %v1027, %v1063
        %v1065 = vstv %s428
        %v1066 = vmul.f32 %v1065, %v1058
        %v1067 = vadd.f32 %v1034, %v1066
        %v1068 = vstv %s455
        %v1069 = vmul.f32 %v1068, %v1058
        %v1070 = vadd.f32 %v1041, %v1069
        %v1071 = vstv %s482
        %v1072 = vmul.f32 %v1071, %v1058
        %v1073 = vadd.f32 %v1048, %v1072
        %v1074 = vstv %s509
        %v1075 = vmul.f32 %v1074, %v1058
        %v1076 = vadd.f32 %v1055, %v1075
        %v1077 = vstv %s375
        %v1078 = vmul.f32 %v1077, %v1058
        %1080 = vrot.lane.b32.xlu0 %v1078, 127
        %v1081 = vpop.permute.xlu0 %1080
        %v1083 = vadd.f32 %v1061, %v1081
        %v1084 = vstv %s402
        %v1085 = vmul.f32 %v1084, %v1058
        %1087 = vrot.lane.b32.xlu0 %v1085, 127
        %v1088 = vpop.permute.xlu0 %1087
        %v1090 = vadd.f32 %v1064, %v1088
        %v1091 = vstv %s429
        %v1092 = vmul.f32 %v1091, %v1058
        %1094 = vrot.lane.b32.xlu0 %v1092, 127
        %v1095 = vpop.permute.xlu0 %1094
        %v1097 = vadd.f32 %v1067, %v1095
        %v1098 = vstv %s456
        %v1099 = vmul.f32 %v1098, %v1058
        %1101 = vrot.lane.b32.xlu0 %v1099, 127
        %v1102 = vpop.permute.xlu0 %1101
        %v1104 = vadd.f32 %v1070, %v1102
        %v1105 = vstv %s483
        %v1106 = vmul.f32 %v1105, %v1058
        %1108 = vrot.lane.b32.xlu0 %v1106, 127
        %v1109 = vpop.permute.xlu0 %1108
        %v1111 = vadd.f32 %v1073, %v1109
        %v1112 = vstv %s510
        %v1113 = vmul.f32 %v1112, %v1058
        %1115 = vrot.lane.b32.xlu0 %v1113, 127
        %v1116 = vpop.permute.xlu0 %1115
        %v1118 = vadd.f32 %v1076, %v1116
        %v1119 = vstv %s376
        %v1120 = vmul.f32 %v1119, %v1058
        %1122 = vrot.lane.b32.xlu0 %v1120, 126
        %v1123 = vpop.permute.xlu0 %1122
        %v1125 = vadd.f32 %v1083, %v1123
        %v1126 = vstv %s403
        %v1127 = vmul.f32 %v1126, %v1058
        %1129 = vrot.lane.b32.xlu0 %v1127, 126
        %v1130 = vpop.permute.xlu0 %1129
        %v1132 = vadd.f32 %v1090, %v1130
        %v1133 = vstv %s430
        %v1134 = vmul.f32 %v1133, %v1058
        %1136 = vrot.lane.b32.xlu0 %v1134, 126
        %v1137 = vpop.permute.xlu0 %1136
        %v1139 = vadd.f32 %v1097, %v1137
        %v1140 = vstv %s457
        %v1141 = vmul.f32 %v1140, %v1058
        %1143 = vrot.lane.b32.xlu0 %v1141, 126
        %v1144 = vpop.permute.xlu0 %1143
        %v1146 = vadd.f32 %v1104, %v1144
        %v1147 = vstv %s484
        %v1148 = vmul.f32 %v1147, %v1058
        %1150 = vrot.lane.b32.xlu0 %v1148, 126
        %v1151 = vpop.permute.xlu0 %1150
        %v1153 = vadd.f32 %v1111, %v1151
        %v1154 = vstv %s511
        %v1155 = vmul.f32 %v1154, %v1058
        %1157 = vrot.lane.b32.xlu0 %v1155, 126
        %v1158 = vpop.permute.xlu0 %1157
        %v1160 = vadd.f32 %v1118, %v1158
        %s1161 = sadd.s32 0, 32
        %s1162 = scalar_lea.vmem %s330, %s1161
        %v1163 = vld [vmem:[%s1162] sm:$0xff]
        %v1164 = vstv %s377
        %v1165 = vmul.f32 %v1164, %v1163
        %v1166 = vadd.f32 %v1125, %v1165
        %v1167 = vstv %s404
        %v1168 = vmul.f32 %v1167, %v1163
        %v1169 = vadd.f32 %v1132, %v1168
        %v1170 = vstv %s431
        %v1171 = vmul.f32 %v1170, %v1163
        %v1172 = vadd.f32 %v1139, %v1171
        %v1173 = vstv %s458
        %v1174 = vmul.f32 %v1173, %v1163
        %v1175 = vadd.f32 %v1146, %v1174
        %v1176 = vstv %s485
        %v1177 = vmul.f32 %v1176, %v1163
        %v1178 = vadd.f32 %v1153, %v1177
        %v1179 = vstv %s512
        %v1180 = vmul.f32 %v1179, %v1163
        %v1181 = vadd.f32 %v1160, %v1180
        %v1182 = vstv %s378
        %v1183 = vmul.f32 %v1182, %v1163
        %1185 = vrot.lane.b32.xlu0 %v1183, 127
        %v1186 = vpop.permute.xlu0 %1185
        %v1188 = vadd.f32 %v1166, %v1186
        %v1189 = vstv %s405
        %v1190 = vmul.f32 %v1189, %v1163
        %1192 = vrot.lane.b32.xlu0 %v1190, 127
        %v1193 = vpop.permute.xlu0 %1192
        %v1195 = vadd.f32 %v1169, %v1193
        %v1196 = vstv %s432
        %v1197 = vmul.f32 %v1196, %v1163
        %1199 = vrot.lane.b32.xlu0 %v1197, 127
        %v1200 = vpop.permute.xlu0 %1199
        %v1202 = vadd.f32 %v1172, %v1200
        %v1203 = vstv %s459
        %v1204 = vmul.f32 %v1203, %v1163
        %1206 = vrot.lane.b32.xlu0 %v1204, 127
        %v1207 = vpop.permute.xlu0 %1206
        %v1209 = vadd.f32 %v1175, %v1207
        %v1210 = vstv %s486
        %v1211 = vmul.f32 %v1210, %v1163
        %1213 = vrot.lane.b32.xlu0 %v1211, 127
        %v1214 = vpop.permute.xlu0 %1213
        %v1216 = vadd.f32 %v1178, %v1214
        %v1217 = vstv %s513
        %v1218 = vmul.f32 %v1217, %v1163
        %1220 = vrot.lane.b32.xlu0 %v1218, 127
        %v1221 = vpop.permute.xlu0 %1220
        %v1223 = vadd.f32 %v1181, %v1221
        %v1224 = vstv %s379
        %v1225 = vmul.f32 %v1224, %v1163
        %1227 = vrot.lane.b32.xlu0 %v1225, 126
        %v1228 = vpop.permute.xlu0 %1227
        %v1230 = vadd.f32 %v1188, %v1228
        %v1231 = vstv %s406
        %v1232 = vmul.f32 %v1231, %v1163
        %1234 = vrot.lane.b32.xlu0 %v1232, 126
        %v1235 = vpop.permute.xlu0 %1234
        %v1237 = vadd.f32 %v1195, %v1235
        %v1238 = vstv %s433
        %v1239 = vmul.f32 %v1238, %v1163
        %1241 = vrot.lane.b32.xlu0 %v1239, 126
        %v1242 = vpop.permute.xlu0 %1241
        %v1244 = vadd.f32 %v1202, %v1242
        %v1245 = vstv %s460
        %v1246 = vmul.f32 %v1245, %v1163
        %1248 = vrot.lane.b32.xlu0 %v1246, 126
        %v1249 = vpop.permute.xlu0 %1248
        %v1251 = vadd.f32 %v1209, %v1249
        %v1252 = vstv %s487
        %v1253 = vmul.f32 %v1252, %v1163
        %1255 = vrot.lane.b32.xlu0 %v1253, 126
        %v1256 = vpop.permute.xlu0 %1255
        %v1258 = vadd.f32 %v1216, %v1256
        %v1259 = vstv %s514
        %v1260 = vmul.f32 %v1259, %v1163
        %1262 = vrot.lane.b32.xlu0 %v1260, 126
        %v1263 = vpop.permute.xlu0 %1262
        %v1265 = vadd.f32 %v1223, %v1263
        %s1266 = sadd.s32 %s636, 32
        %s1267 = scalar_lea.vmem %s330, %s1266
        %v1268 = vld [vmem:[%s1267] sm:$0xff]
        %v1269 = vstv %s380
        %v1270 = vmul.f32 %v1269, %v1268
        %v1271 = vadd.f32 %v1230, %v1270
        %v1272 = vstv %s407
        %v1273 = vmul.f32 %v1272, %v1268
        %v1274 = vadd.f32 %v1237, %v1273
        %v1275 = vstv %s434
        %v1276 = vmul.f32 %v1275, %v1268
        %v1277 = vadd.f32 %v1244, %v1276
        %v1278 = vstv %s461
        %v1279 = vmul.f32 %v1278, %v1268
        %v1280 = vadd.f32 %v1251, %v1279
        %v1281 = vstv %s488
        %v1282 = vmul.f32 %v1281, %v1268
        %v1283 = vadd.f32 %v1258, %v1282
        %v1284 = vstv %s515
        %v1285 = vmul.f32 %v1284, %v1268
        %v1286 = vadd.f32 %v1265, %v1285
        %v1287 = vstv %s381
        %v1288 = vmul.f32 %v1287, %v1268
        %1290 = vrot.lane.b32.xlu0 %v1288, 127
        %v1291 = vpop.permute.xlu0 %1290
        %v1293 = vadd.f32 %v1271, %v1291
        %v1294 = vstv %s408
        %v1295 = vmul.f32 %v1294, %v1268
        %1297 = vrot.lane.b32.xlu0 %v1295, 127
        %v1298 = vpop.permute.xlu0 %1297
        %v1300 = vadd.f32 %v1274, %v1298
        %v1301 = vstv %s435
        %v1302 = vmul.f32 %v1301, %v1268
        %1304 = vrot.lane.b32.xlu0 %v1302, 127
        %v1305 = vpop.permute.xlu0 %1304
        %v1307 = vadd.f32 %v1277, %v1305
        %v1308 = vstv %s462
        %v1309 = vmul.f32 %v1308, %v1268
        %1311 = vrot.lane.b32.xlu0 %v1309, 127
        %v1312 = vpop.permute.xlu0 %1311
        %v1314 = vadd.f32 %v1280, %v1312
        %v1315 = vstv %s489
        %v1316 = vmul.f32 %v1315, %v1268
        %1318 = vrot.lane.b32.xlu0 %v1316, 127
        %v1319 = vpop.permute.xlu0 %1318
        %v1321 = vadd.f32 %v1283, %v1319
        %v1322 = vstv %s516
        %v1323 = vmul.f32 %v1322, %v1268
        %1325 = vrot.lane.b32.xlu0 %v1323, 127
        %v1326 = vpop.permute.xlu0 %1325
        %v1328 = vadd.f32 %v1286, %v1326
        %v1329 = vstv %s382
        %v1330 = vmul.f32 %v1329, %v1268
        %1332 = vrot.lane.b32.xlu0 %v1330, 126
        %v1333 = vpop.permute.xlu0 %1332
        %v1335 = vadd.f32 %v1293, %v1333
        %v1336 = vstv %s409
        %v1337 = vmul.f32 %v1336, %v1268
        %1339 = vrot.lane.b32.xlu0 %v1337, 126
        %v1340 = vpop.permute.xlu0 %1339
        %v1342 = vadd.f32 %v1300, %v1340
        %v1343 = vstv %s436
        %v1344 = vmul.f32 %v1343, %v1268
        %1346 = vrot.lane.b32.xlu0 %v1344, 126
        %v1347 = vpop.permute.xlu0 %1346
        %v1349 = vadd.f32 %v1307, %v1347
        %v1350 = vstv %s463
        %v1351 = vmul.f32 %v1350, %v1268
        %1353 = vrot.lane.b32.xlu0 %v1351, 126
        %v1354 = vpop.permute.xlu0 %1353
        %v1356 = vadd.f32 %v1314, %v1354
        %v1357 = vstv %s490
        %v1358 = vmul.f32 %v1357, %v1268
        %1360 = vrot.lane.b32.xlu0 %v1358, 126
        %v1361 = vpop.permute.xlu0 %1360
        %v1363 = vadd.f32 %v1321, %v1361
        %v1364 = vstv %s517
        %v1365 = vmul.f32 %v1364, %v1268
        %1367 = vrot.lane.b32.xlu0 %v1365, 126
        %v1368 = vpop.permute.xlu0 %1367
        %v1370 = vadd.f32 %v1328, %v1368
        %s1371 = sadd.s32 %s741, 32
        %s1372 = scalar_lea.vmem %s330, %s1371
        %v1373 = vld [vmem:[%s1372] sm:$0xff]
        %v1374 = vstv %s383
        %v1375 = vmul.f32 %v1374, %v1373
        %v1376 = vadd.f32 %v1335, %v1375
        %v1377 = vstv %s410
        %v1378 = vmul.f32 %v1377, %v1373
        %v1379 = vadd.f32 %v1342, %v1378
        %v1380 = vstv %s437
        %v1381 = vmul.f32 %v1380, %v1373
        %v1382 = vadd.f32 %v1349, %v1381
        %v1383 = vstv %s464
        %v1384 = vmul.f32 %v1383, %v1373
        %v1385 = vadd.f32 %v1356, %v1384
        %v1386 = vstv %s491
        %v1387 = vmul.f32 %v1386, %v1373
        %v1388 = vadd.f32 %v1363, %v1387
        %v1389 = vstv %s518
        %v1390 = vmul.f32 %v1389, %v1373
        %v1391 = vadd.f32 %v1370, %v1390
        %v1392 = vstv %s384
        %v1393 = vmul.f32 %v1392, %v1373
        %1395 = vrot.lane.b32.xlu0 %v1393, 127
        %v1396 = vpop.permute.xlu0 %1395
        %v1398 = vadd.f32 %v1376, %v1396
        %v1399 = vstv %s411
        %v1400 = vmul.f32 %v1399, %v1373
        %1402 = vrot.lane.b32.xlu0 %v1400, 127
        %v1403 = vpop.permute.xlu0 %1402
        %v1405 = vadd.f32 %v1379, %v1403
        %v1406 = vstv %s438
        %v1407 = vmul.f32 %v1406, %v1373
        %1409 = vrot.lane.b32.xlu0 %v1407, 127
        %v1410 = vpop.permute.xlu0 %1409
        %v1412 = vadd.f32 %v1382, %v1410
        %v1413 = vstv %s465
        %v1414 = vmul.f32 %v1413, %v1373
        %1416 = vrot.lane.b32.xlu0 %v1414, 127
        %v1417 = vpop.permute.xlu0 %1416
        %v1419 = vadd.f32 %v1385, %v1417
        %v1420 = vstv %s492
        %v1421 = vmul.f32 %v1420, %v1373
        %1423 = vrot.lane.b32.xlu0 %v1421, 127
        %v1424 = vpop.permute.xlu0 %1423
        %v1426 = vadd.f32 %v1388, %v1424
        %v1427 = vstv %s519
        %v1428 = vmul.f32 %v1427, %v1373
        %1430 = vrot.lane.b32.xlu0 %v1428, 127
        %v1431 = vpop.permute.xlu0 %1430
        %v1433 = vadd.f32 %v1391, %v1431
        %v1434 = vstv %s385
        %v1435 = vmul.f32 %v1434, %v1373
        %1437 = vrot.lane.b32.xlu0 %v1435, 126
        %v1438 = vpop.permute.xlu0 %1437
        %v1440 = vadd.f32 %v1398, %v1438
        %v1441 = vstv %s412
        %v1442 = vmul.f32 %v1441, %v1373
        %1444 = vrot.lane.b32.xlu0 %v1442, 126
        %v1445 = vpop.permute.xlu0 %1444
        %v1447 = vadd.f32 %v1405, %v1445
        %v1448 = vstv %s439
        %v1449 = vmul.f32 %v1448, %v1373
        %1451 = vrot.lane.b32.xlu0 %v1449, 126
        %v1452 = vpop.permute.xlu0 %1451
        %v1454 = vadd.f32 %v1412, %v1452
        %v1455 = vstv %s466
        %v1456 = vmul.f32 %v1455, %v1373
        %1458 = vrot.lane.b32.xlu0 %v1456, 126
        %v1459 = vpop.permute.xlu0 %1458
        %v1461 = vadd.f32 %v1419, %v1459
        %v1462 = vstv %s493
        %v1463 = vmul.f32 %v1462, %v1373
        %1465 = vrot.lane.b32.xlu0 %v1463, 126
        %v1466 = vpop.permute.xlu0 %1465
        %v1468 = vadd.f32 %v1426, %v1466
        %v1469 = vstv %s520
        %v1470 = vmul.f32 %v1469, %v1373
        %1472 = vrot.lane.b32.xlu0 %v1470, 126
        %v1473 = vpop.permute.xlu0 %1472
        %v1475 = vadd.f32 %v1433, %v1473
        %vm1476 = vcmask 113664
        %1477 = vst.msk [vmem:[%s344] sm:$0xff] %vm1476, %v1440
        %s1478 = scalar_lea.vmem %s344, %s846
        %1479 = vst.msk [vmem:[%s1478] sm:$0xff] %vm1476, %v1447
        %s1480 = scalar_lea.vmem %s344, %s1161
        %1481 = vst.msk [vmem:[%s1480] sm:$0xff] %vm1476, %v1454
        %s1482 = sadd.s32 0, 48
        %s1483 = scalar_lea.vmem %s344, %s1482
        %1484 = vst.msk [vmem:[%s1483] sm:$0xff] %vm1476, %v1461
        %s1485 = sadd.s32 0, 64
        %s1486 = scalar_lea.vmem %s344, %s1485
        %1487 = vst.msk [vmem:[%s1486] sm:$0xff] %vm1476, %v1468
        %s1488 = sadd.s32 0, 80
        %s1489 = scalar_lea.vmem %s344, %s1488
        %1490 = vst.msk [vmem:[%s1489] sm:$0xff] %vm1476, %v1475
        %v1491 = vld [vmem:[#allocation2] sm:$0xff]
        %v1492 = vmul.f32 %v534, %v1491
        %v1493 = vadd.f32 %v527, %v1492
        %v1494 = vmul.f32 %v537, %v1491
        %v1495 = vadd.f32 %v528, %v1494
        %v1496 = vmul.f32 %v540, %v1491
        %v1497 = vadd.f32 %v529, %v1496
        %v1498 = vmul.f32 %v543, %v1491
        %v1499 = vadd.f32 %v530, %v1498
        %v1500 = vmul.f32 %v546, %v1491
        %v1501 = vadd.f32 %v531, %v1500
        %v1502 = vmul.f32 %v549, %v1491
        %v1503 = vadd.f32 %v532, %v1502
        %v1504 = vmul.f32 %v552, %v1491
        %1506 = vrot.lane.b32.xlu0 %v1504, 127
        %v1507 = vpop.permute.xlu0 %1506
        %v1509 = vadd.f32 %v1493, %v1507
        %v1510 = vmul.f32 %v559, %v1491
        %1512 = vrot.lane.b32.xlu0 %v1510, 127
        %v1513 = vpop.permute.xlu0 %1512
        %v1515 = vadd.f32 %v1495, %v1513
        %v1516 = vmul.f32 %v566, %v1491
        %1518 = vrot.lane.b32.xlu0 %v1516, 127
        %v1519 = vpop.permute.xlu0 %1518
        %v1521 = vadd.f32 %v1497, %v1519
        %v1522 = vmul.f32 %v573, %v1491
        %1524 = vrot.lane.b32.xlu0 %v1522, 127
        %v1525 = vpop.permute.xlu0 %1524
        %v1527 = vadd.f32 %v1499, %v1525
        %v1528 = vmul.f32 %v580, %v1491
        %1530 = vrot.lane.b32.xlu0 %v1528, 127
        %v1531 = vpop.permute.xlu0 %1530
        %v1533 = vadd.f32 %v1501, %v1531
        %v1534 = vmul.f32 %v587, %v1491
        %1536 = vrot.lane.b32.xlu0 %v1534, 127
        %v1537 = vpop.permute.xlu0 %1536
        %v1539 = vadd.f32 %v1503, %v1537
        %v1540 = vmul.f32 %v594, %v1491
        %1542 = vrot.lane.b32.xlu0 %v1540, 126
        %v1543 = vpop.permute.xlu0 %1542
        %v1545 = vadd.f32 %v1509, %v1543
        %v1546 = vmul.f32 %v601, %v1491
        %1548 = vrot.lane.b32.xlu0 %v1546, 126
        %v1549 = vpop.permute.xlu0 %1548
        %v1551 = vadd.f32 %v1515, %v1549
        %v1552 = vmul.f32 %v608, %v1491
        %1554 = vrot.lane.b32.xlu0 %v1552, 126
        %v1555 = vpop.permute.xlu0 %1554
        %v1557 = vadd.f32 %v1521, %v1555
        %v1558 = vmul.f32 %v615, %v1491
        %1560 = vrot.lane.b32.xlu0 %v1558, 126
        %v1561 = vpop.permute.xlu0 %1560
        %v1563 = vadd.f32 %v1527, %v1561
        %v1564 = vmul.f32 %v622, %v1491
        %1566 = vrot.lane.b32.xlu0 %v1564, 126
        %v1567 = vpop.permute.xlu0 %1566
        %v1569 = vadd.f32 %v1533, %v1567
        %v1570 = vmul.f32 %v629, %v1491
        %1572 = vrot.lane.b32.xlu0 %v1570, 126
        %v1573 = vpop.permute.xlu0 %1572
        %v1575 = vadd.f32 %v1539, %v1573
        %v1576 = vld [vmem:[#allocation2 + $0x1] sm:$0xff]
        %v1577 = vmul.f32 %v639, %v1576
        %v1578 = vadd.f32 %v1545, %v1577
        %v1579 = vmul.f32 %v642, %v1576
        %v1580 = vadd.f32 %v1551, %v1579
        %v1581 = vmul.f32 %v645, %v1576
        %v1582 = vadd.f32 %v1557, %v1581
        %v1583 = vmul.f32 %v648, %v1576
        %v1584 = vadd.f32 %v1563, %v1583
        %v1585 = vmul.f32 %v651, %v1576
        %v1586 = vadd.f32 %v1569, %v1585
        %v1587 = vmul.f32 %v654, %v1576
        %v1588 = vadd.f32 %v1575, %v1587
        %v1589 = vmul.f32 %v657, %v1576
        %1591 = vrot.lane.b32.xlu0 %v1589, 127
        %v1592 = vpop.permute.xlu0 %1591
        %v1594 = vadd.f32 %v1578, %v1592
        %v1595 = vmul.f32 %v664, %v1576
        %1597 = vrot.lane.b32.xlu0 %v1595, 127
        %v1598 = vpop.permute.xlu0 %1597
        %v1600 = vadd.f32 %v1580, %v1598
        %v1601 = vmul.f32 %v671, %v1576
        %1603 = vrot.lane.b32.xlu0 %v1601, 127
        %v1604 = vpop.permute.xlu0 %1603
        %v1606 = vadd.f32 %v1582, %v1604
        %v1607 = vmul.f32 %v678, %v1576
        %1609 = vrot.lane.b32.xlu0 %v1607, 127
        %v1610 = vpop.permute.xlu0 %1609
        %v1612 = vadd.f32 %v1584, %v1610
        %v1613 = vmul.f32 %v685, %v1576
        %1615 = vrot.lane.b32.xlu0 %v1613, 127
        %v1616 = vpop.permute.xlu0 %1615
        %v1618 = vadd.f32 %v1586, %v1616
        %v1619 = vmul.f32 %v692, %v1576
        %1621 = vrot.lane.b32.xlu0 %v1619, 127
        %v1622 = vpop.permute.xlu0 %1621
        %v1624 = vadd.f32 %v1588, %v1622
        %v1625 = vmul.f32 %v699, %v1576
        %1627 = vrot.lane.b32.xlu0 %v1625, 126
        %v1628 = vpop.permute.xlu0 %1627
        %v1630 = vadd.f32 %v1594, %v1628
        %v1631 = vmul.f32 %v706, %v1576
        %1633 = vrot.lane.b32.xlu0 %v1631, 126
        %v1634 = vpop.permute.xlu0 %1633
        %v1636 = vadd.f32 %v1600, %v1634
        %v1637 = vmul.f32 %v713, %v1576
        %1639 = vrot.lane.b32.xlu0 %v1637, 126
        %v1640 = vpop.permute.xlu0 %1639
        %v1642 = vadd.f32 %v1606, %v1640
        %v1643 = vmul.f32 %v720, %v1576
        %1645 = vrot.lane.b32.xlu0 %v1643, 126
        %v1646 = vpop.permute.xlu0 %1645
        %v1648 = vadd.f32 %v1612, %v1646
        %v1649 = vmul.f32 %v727, %v1576
        %1651 = vrot.lane.b32.xlu0 %v1649, 126
        %v1652 = vpop.permute.xlu0 %1651
        %v1654 = vadd.f32 %v1618, %v1652
        %v1655 = vmul.f32 %v734, %v1576
        %1657 = vrot.lane.b32.xlu0 %v1655, 126
        %v1658 = vpop.permute.xlu0 %1657
        %v1660 = vadd.f32 %v1624, %v1658
        %v1661 = vld [vmem:[#allocation2 + $0x2] sm:$0xff]
        %v1662 = vmul.f32 %v744, %v1661
        %v1663 = vadd.f32 %v1630, %v1662
        %v1664 = vmul.f32 %v747, %v1661
        %v1665 = vadd.f32 %v1636, %v1664
        %v1666 = vmul.f32 %v750, %v1661
        %v1667 = vadd.f32 %v1642, %v1666
        %v1668 = vmul.f32 %v753, %v1661
        %v1669 = vadd.f32 %v1648, %v1668
        %v1670 = vmul.f32 %v756, %v1661
        %v1671 = vadd.f32 %v1654, %v1670
        %v1672 = vmul.f32 %v759, %v1661
        %v1673 = vadd.f32 %v1660, %v1672
        %v1674 = vmul.f32 %v762, %v1661
        %1676 = vrot.lane.b32.xlu0 %v1674, 127
        %v1677 = vpop.permute.xlu0 %1676
        %v1679 = vadd.f32 %v1663, %v1677
        %v1680 = vmul.f32 %v769, %v1661
        %1682 = vrot.lane.b32.xlu0 %v1680, 127
        %v1683 = vpop.permute.xlu0 %1682
        %v1685 = vadd.f32 %v1665, %v1683
        %v1686 = vmul.f32 %v776, %v1661
        %1688 = vrot.lane.b32.xlu0 %v1686, 127
        %v1689 = vpop.permute.xlu0 %1688
        %v1691 = vadd.f32 %v1667, %v1689
        %v1692 = vmul.f32 %v783, %v1661
        %1694 = vrot.lane.b32.xlu0 %v1692, 127
        %v1695 = vpop.permute.xlu0 %1694
        %v1697 = vadd.f32 %v1669, %v1695
        %v1698 = vmul.f32 %v790, %v1661
        %1700 = vrot.lane.b32.xlu0 %v1698, 127
        %v1701 = vpop.permute.xlu0 %1700
        %v1703 = vadd.f32 %v1671, %v1701
        %v1704 = vmul.f32 %v797, %v1661
        %1706 = vrot.lane.b32.xlu0 %v1704, 127
        %v1707 = vpop.permute.xlu0 %1706
        %v1709 = vadd.f32 %v1673, %v1707
        %v1710 = vmul.f32 %v804, %v1661
        %1712 = vrot.lane.b32.xlu0 %v1710, 126
        %v1713 = vpop.permute.xlu0 %1712
        %v1715 = vadd.f32 %v1679, %v1713
        %v1716 = vmul.f32 %v811, %v1661
        %1718 = vrot.lane.b32.xlu0 %v1716, 126
        %v1719 = vpop.permute.xlu0 %1718
        %v1721 = vadd.f32 %v1685, %v1719
        %v1722 = vmul.f32 %v818, %v1661
        %1724 = vrot.lane.b32.xlu0 %v1722, 126
        %v1725 = vpop.permute.xlu0 %1724
        %v1727 = vadd.f32 %v1691, %v1725
        %v1728 = vmul.f32 %v825, %v1661
        %1730 = vrot.lane.b32.xlu0 %v1728, 126
        %v1731 = vpop.permute.xlu0 %1730
        %v1733 = vadd.f32 %v1697, %v1731
        %v1734 = vmul.f32 %v832, %v1661
        %1736 = vrot.lane.b32.xlu0 %v1734, 126
        %v1737 = vpop.permute.xlu0 %1736
        %v1739 = vadd.f32 %v1703, %v1737
        %v1740 = vmul.f32 %v839, %v1661
        %1742 = vrot.lane.b32.xlu0 %v1740, 126
        %v1743 = vpop.permute.xlu0 %1742
        %v1745 = vadd.f32 %v1709, %v1743
        %s1746 = scalar_lea.vmem [#allocation2], 16
        %v1747 = vld [vmem:[%s1746] sm:$0xff]
        %v1748 = vmul.f32 %v849, %v1747
        %v1749 = vadd.f32 %v1715, %v1748
        %v1750 = vmul.f32 %v852, %v1747
        %v1751 = vadd.f32 %v1721, %v1750
        %v1752 = vmul.f32 %v855, %v1747
        %v1753 = vadd.f32 %v1727, %v1752
        %v1754 = vmul.f32 %v858, %v1747
        %v1755 = vadd.f32 %v1733, %v1754
        %v1756 = vmul.f32 %v861, %v1747
        %v1757 = vadd.f32 %v1739, %v1756
        %v1758 = vmul.f32 %v864, %v1747
        %v1759 = vadd.f32 %v1745, %v1758
        %v1760 = vmul.f32 %v867, %v1747
        %1762 = vrot.lane.b32.xlu0 %v1760, 127
        %v1763 = vpop.permute.xlu0 %1762
        %v1765 = vadd.f32 %v1749, %v1763
        %v1766 = vmul.f32 %v874, %v1747
        %1768 = vrot.lane.b32.xlu0 %v1766, 127
        %v1769 = vpop.permute.xlu0 %1768
        %v1771 = vadd.f32 %v1751, %v1769
        %v1772 = vmul.f32 %v881, %v1747
        %1774 = vrot.lane.b32.xlu0 %v1772, 127
        %v1775 = vpop.permute.xlu0 %1774
        %v1777 = vadd.f32 %v1753, %v1775
        %v1778 = vmul.f32 %v888, %v1747
        %1780 = vrot.lane.b32.xlu0 %v1778, 127
        %v1781 = vpop.permute.xlu0 %1780
        %v1783 = vadd.f32 %v1755, %v1781
        %v1784 = vmul.f32 %v895, %v1747
        %1786 = vrot.lane.b32.xlu0 %v1784, 127
        %v1787 = vpop.permute.xlu0 %1786
        %v1789 = vadd.f32 %v1757, %v1787
        %v1790 = vmul.f32 %v902, %v1747
        %1792 = vrot.lane.b32.xlu0 %v1790, 127
        %v1793 = vpop.permute.xlu0 %1792
        %v1795 = vadd.f32 %v1759, %v1793
        %v1796 = vmul.f32 %v909, %v1747
        %1798 = vrot.lane.b32.xlu0 %v1796, 126
        %v1799 = vpop.permute.xlu0 %1798
        %v1801 = vadd.f32 %v1765, %v1799
        %v1802 = vmul.f32 %v916, %v1747
        %1804 = vrot.lane.b32.xlu0 %v1802, 126
        %v1805 = vpop.permute.xlu0 %1804
        %v1807 = vadd.f32 %v1771, %v1805
        %v1808 = vmul.f32 %v923, %v1747
        %1810 = vrot.lane.b32.xlu0 %v1808, 126
        %v1811 = vpop.permute.xlu0 %1810
        %v1813 = vadd.f32 %v1777, %v1811
        %v1814 = vmul.f32 %v930, %v1747
        %1816 = vrot.lane.b32.xlu0 %v1814, 126
        %v1817 = vpop.permute.xlu0 %1816
        %v1819 = vadd.f32 %v1783, %v1817
        %v1820 = vmul.f32 %v937, %v1747
        %1822 = vrot.lane.b32.xlu0 %v1820, 126
        %v1823 = vpop.permute.xlu0 %1822
        %v1825 = vadd.f32 %v1789, %v1823
        %v1826 = vmul.f32 %v944, %v1747
        %1828 = vrot.lane.b32.xlu0 %v1826, 126
        %v1829 = vpop.permute.xlu0 %1828
        %v1831 = vadd.f32 %v1795, %v1829
        %v1832 = vld [vmem:[%s1746 + $0x1] sm:$0xff]
        %v1833 = vmul.f32 %v954, %v1832
        %v1834 = vadd.f32 %v1801, %v1833
        %v1835 = vmul.f32 %v957, %v1832
        %v1836 = vadd.f32 %v1807, %v1835
        %v1837 = vmul.f32 %v960, %v1832
        %v1838 = vadd.f32 %v1813, %v1837
        %v1839 = vmul.f32 %v963, %v1832
        %v1840 = vadd.f32 %v1819, %v1839
        %v1841 = vmul.f32 %v966, %v1832
        %v1842 = vadd.f32 %v1825, %v1841
        %v1843 = vmul.f32 %v969, %v1832
        %v1844 = vadd.f32 %v1831, %v1843
        %v1845 = vmul.f32 %v972, %v1832
        %1847 = vrot.lane.b32.xlu0 %v1845, 127
        %v1848 = vpop.permute.xlu0 %1847
        %v1850 = vadd.f32 %v1834, %v1848
        %v1851 = vmul.f32 %v979, %v1832
        %1853 = vrot.lane.b32.xlu0 %v1851, 127
        %v1854 = vpop.permute.xlu0 %1853
        %v1856 = vadd.f32 %v1836, %v1854
        %v1857 = vmul.f32 %v986, %v1832
        %1859 = vrot.lane.b32.xlu0 %v1857, 127
        %v1860 = vpop.permute.xlu0 %1859
        %v1862 = vadd.f32 %v1838, %v1860
        %v1863 = vmul.f32 %v993, %v1832
        %1865 = vrot.lane.b32.xlu0 %v1863, 127
        %v1866 = vpop.permute.xlu0 %1865
        %v1868 = vadd.f32 %v1840, %v1866
        %v1869 = vmul.f32 %v1000, %v1832
        %1871 = vrot.lane.b32.xlu0 %v1869, 127
        %v1872 = vpop.permute.xlu0 %1871
        %v1874 = vadd.f32 %v1842, %v1872
        %v1875 = vmul.f32 %v1007, %v1832
        %1877 = vrot.lane.b32.xlu0 %v1875, 127
        %v1878 = vpop.permute.xlu0 %1877
        %v1880 = vadd.f32 %v1844, %v1878
        %v1881 = vmul.f32 %v1014, %v1832
        %1883 = vrot.lane.b32.xlu0 %v1881, 126
        %v1884 = vpop.permute.xlu0 %1883
        %v1886 = vadd.f32 %v1850, %v1884
        %v1887 = vmul.f32 %v1021, %v1832
        %1889 = vrot.lane.b32.xlu0 %v1887, 126
        %v1890 = vpop.permute.xlu0 %1889
        %v1892 = vadd.f32 %v1856, %v1890
        %v1893 = vmul.f32 %v1028, %v1832
        %1895 = vrot.lane.b32.xlu0 %v1893, 126
        %v1896 = vpop.permute.xlu0 %1895
        %v1898 = vadd.f32 %v1862, %v1896
        %v1899 = vmul.f32 %v1035, %v1832
        %1901 = vrot.lane.b32.xlu0 %v1899, 126
        %v1902 = vpop.permute.xlu0 %1901
        %v1904 = vadd.f32 %v1868, %v1902
        %v1905 = vmul.f32 %v1042, %v1832
        %1907 = vrot.lane.b32.xlu0 %v1905, 126
        %v1908 = vpop.permute.xlu0 %1907
        %v1910 = vadd.f32 %v1874, %v1908
        %v1911 = vmul.f32 %v1049, %v1832
        %1913 = vrot.lane.b32.xlu0 %v1911, 126
        %v1914 = vpop.permute.xlu0 %1913
        %v1916 = vadd.f32 %v1880, %v1914
        %v1917 = vld [vmem:[%s1746 + $0x2] sm:$0xff]
        %v1918 = vmul.f32 %v1059, %v1917
        %v1919 = vadd.f32 %v1886, %v1918
        %v1920 = vmul.f32 %v1062, %v1917
        %v1921 = vadd.f32 %v1892, %v1920
        %v1922 = vmul.f32 %v1065, %v1917
        %v1923 = vadd.f32 %v1898, %v1922
        %v1924 = vmul.f32 %v1068, %v1917
        %v1925 = vadd.f32 %v1904, %v1924
        %v1926 = vmul.f32 %v1071, %v1917
        %v1927 = vadd.f32 %v1910, %v1926
        %v1928 = vmul.f32 %v1074, %v1917
        %v1929 = vadd.f32 %v1916, %v1928
        %v1930 = vmul.f32 %v1077, %v1917
        %1932 = vrot.lane.b32.xlu0 %v1930, 127
        %v1933 = vpop.permute.xlu0 %1932
        %v1935 = vadd.f32 %v1919, %v1933
        %v1936 = vmul.f32 %v1084, %v1917
        %1938 = vrot.lane.b32.xlu0 %v1936, 127
        %v1939 = vpop.permute.xlu0 %1938
        %v1941 = vadd.f32 %v1921, %v1939
        %v1942 = vmul.f32 %v1091, %v1917
        %1944 = vrot.lane.b32.xlu0 %v1942, 127
        %v1945 = vpop.permute.xlu0 %1944
        %v1947 = vadd.f32 %v1923, %v1945
        %v1948 = vmul.f32 %v1098, %v1917
        %1950 = vrot.lane.b32.xlu0 %v1948, 127
        %v1951 = vpop.permute.xlu0 %1950
        %v1953 = vadd.f32 %v1925, %v1951
        %v1954 = vmul.f32 %v1105, %v1917
        %1956 = vrot.lane.b32.xlu0 %v1954, 127
        %v1957 = vpop.permute.xlu0 %1956
        %v1959 = vadd.f32 %v1927, %v1957
        %v1960 = vmul.f32 %v1112, %v1917
        %1962 = vrot.lane.b32.xlu0 %v1960, 127
        %v1963 = vpop.permute.xlu0 %1962
        %v1965 = vadd.f32 %v1929, %v1963
        %v1966 = vmul.f32 %v1119, %v1917
        %1968 = vrot.lane.b32.xlu0 %v1966, 126
        %v1969 = vpop.permute.xlu0 %1968
        %v1971 = vadd.f32 %v1935, %v1969
        %v1972 = vmul.f32 %v1126, %v1917
        %1974 = vrot.lane.b32.xlu0 %v1972, 126
        %v1975 = vpop.permute.xlu0 %1974
        %v1977 = vadd.f32 %v1941, %v1975
        %v1978 = vmul.f32 %v1133, %v1917
        %1980 = vrot.lane.b32.xlu0 %v1978, 126
        %v1981 = vpop.permute.xlu0 %1980
        %v1983 = vadd.f32 %v1947, %v1981
        %v1984 = vmul.f32 %v1140, %v1917
        %1986 = vrot.lane.b32.xlu0 %v1984, 126
        %v1987 = vpop.permute.xlu0 %1986
        %v1989 = vadd.f32 %v1953, %v1987
        %v1990 = vmul.f32 %v1147, %v1917
        %1992 = vrot.lane.b32.xlu0 %v1990, 126
        %v1993 = vpop.permute.xlu0 %1992
        %v1995 = vadd.f32 %v1959, %v1993
        %v1996 = vmul.f32 %v1154, %v1917
        %1998 = vrot.lane.b32.xlu0 %v1996, 126
        %v1999 = vpop.permute.xlu0 %1998
        %v2001 = vadd.f32 %v1965, %v1999
        %s2002 = scalar_lea.vmem [#allocation2], 32
        %v2003 = vld [vmem:[%s2002] sm:$0xff]
        %v2004 = vmul.f32 %v1164, %v2003
        %v2005 = vadd.f32 %v1971, %v2004
        %v2006 = vmul.f32 %v1167, %v2003
        %v2007 = vadd.f32 %v1977, %v2006
        %v2008 = vmul.f32 %v1170, %v2003
        %v2009 = vadd.f32 %v1983, %v2008
        %v2010 = vmul.f32 %v1173, %v2003
        %v2011 = vadd.f32 %v1989, %v2010
        %v2012 = vmul.f32 %v1176, %v2003
        %v2013 = vadd.f32 %v1995, %v2012
        %v2014 = vmul.f32 %v1179, %v2003
        %v2015 = vadd.f32 %v2001, %v2014
        %v2016 = vmul.f32 %v1182, %v2003
        %2018 = vrot.lane.b32.xlu0 %v2016, 127
        %v2019 = vpop.permute.xlu0 %2018
        %v2021 = vadd.f32 %v2005, %v2019
        %v2022 = vmul.f32 %v1189, %v2003
        %2024 = vrot.lane.b32.xlu0 %v2022, 127
        %v2025 = vpop.permute.xlu0 %2024
        %v2027 = vadd.f32 %v2007, %v2025
        %v2028 = vmul.f32 %v1196, %v2003
        %2030 = vrot.lane.b32.xlu0 %v2028, 127
        %v2031 = vpop.permute.xlu0 %2030
        %v2033 = vadd.f32 %v2009, %v2031
        %v2034 = vmul.f32 %v1203, %v2003
        %2036 = vrot.lane.b32.xlu0 %v2034, 127
        %v2037 = vpop.permute.xlu0 %2036
        %v2039 = vadd.f32 %v2011, %v2037
        %v2040 = vmul.f32 %v1210, %v2003
        %2042 = vrot.lane.b32.xlu0 %v2040, 127
        %v2043 = vpop.permute.xlu0 %2042
        %v2045 = vadd.f32 %v2013, %v2043
        %v2046 = vmul.f32 %v1217, %v2003
        %2048 = vrot.lane.b32.xlu0 %v2046, 127
        %v2049 = vpop.permute.xlu0 %2048
        %v2051 = vadd.f32 %v2015, %v2049
        %v2052 = vmul.f32 %v1224, %v2003
        %2054 = vrot.lane.b32.xlu0 %v2052, 126
        %v2055 = vpop.permute.xlu0 %2054
        %v2057 = vadd.f32 %v2021, %v2055
        %v2058 = vmul.f32 %v1231, %v2003
        %2060 = vrot.lane.b32.xlu0 %v2058, 126
        %v2061 = vpop.permute.xlu0 %2060
        %v2063 = vadd.f32 %v2027, %v2061
        %v2064 = vmul.f32 %v1238, %v2003
        %2066 = vrot.lane.b32.xlu0 %v2064, 126
        %v2067 = vpop.permute.xlu0 %2066
        %v2069 = vadd.f32 %v2033, %v2067
        %v2070 = vmul.f32 %v1245, %v2003
        %2072 = vrot.lane.b32.xlu0 %v2070, 126
        %v2073 = vpop.permute.xlu0 %2072
        %v2075 = vadd.f32 %v2039, %v2073
        %v2076 = vmul.f32 %v1252, %v2003
        %2078 = vrot.lane.b32.xlu0 %v2076, 126
        %v2079 = vpop.permute.xlu0 %2078
        %v2081 = vadd.f32 %v2045, %v2079
        %v2082 = vmul.f32 %v1259, %v2003
        %2084 = vrot.lane.b32.xlu0 %v2082, 126
        %v2085 = vpop.permute.xlu0 %2084
        %v2087 = vadd.f32 %v2051, %v2085
        %v2088 = vld [vmem:[%s2002 + $0x1] sm:$0xff]
        %v2089 = vmul.f32 %v1269, %v2088
        %v2090 = vadd.f32 %v2057, %v2089
        %v2091 = vmul.f32 %v1272, %v2088
        %v2092 = vadd.f32 %v2063, %v2091
        %v2093 = vmul.f32 %v1275, %v2088
        %v2094 = vadd.f32 %v2069, %v2093
        %v2095 = vmul.f32 %v1278, %v2088
        %v2096 = vadd.f32 %v2075, %v2095
        %v2097 = vmul.f32 %v1281, %v2088
        %v2098 = vadd.f32 %v2081, %v2097
        %v2099 = vmul.f32 %v1284, %v2088
        %v2100 = vadd.f32 %v2087, %v2099
        %v2101 = vmul.f32 %v1287, %v2088
        %2103 = vrot.lane.b32.xlu0 %v2101, 127
        %v2104 = vpop.permute.xlu0 %2103
        %v2106 = vadd.f32 %v2090, %v2104
        %v2107 = vmul.f32 %v1294, %v2088
        %2109 = vrot.lane.b32.xlu0 %v2107, 127
        %v2110 = vpop.permute.xlu0 %2109
        %v2112 = vadd.f32 %v2092, %v2110
        %v2113 = vmul.f32 %v1301, %v2088
        %2115 = vrot.lane.b32.xlu0 %v2113, 127
        %v2116 = vpop.permute.xlu0 %2115
        %v2118 = vadd.f32 %v2094, %v2116
        %v2119 = vmul.f32 %v1308, %v2088
        %2121 = vrot.lane.b32.xlu0 %v2119, 127
        %v2122 = vpop.permute.xlu0 %2121
        %v2124 = vadd.f32 %v2096, %v2122
        %v2125 = vmul.f32 %v1315, %v2088
        %2127 = vrot.lane.b32.xlu0 %v2125, 127
        %v2128 = vpop.permute.xlu0 %2127
        %v2130 = vadd.f32 %v2098, %v2128
        %v2131 = vmul.f32 %v1322, %v2088
        %2133 = vrot.lane.b32.xlu0 %v2131, 127
        %v2134 = vpop.permute.xlu0 %2133
        %v2136 = vadd.f32 %v2100, %v2134
        %v2137 = vmul.f32 %v1329, %v2088
        %2139 = vrot.lane.b32.xlu0 %v2137, 126
        %v2140 = vpop.permute.xlu0 %2139
        %v2142 = vadd.f32 %v2106, %v2140
        %v2143 = vmul.f32 %v1336, %v2088
        %2145 = vrot.lane.b32.xlu0 %v2143, 126
        %v2146 = vpop.permute.xlu0 %2145
        %v2148 = vadd.f32 %v2112, %v2146
        %v2149 = vmul.f32 %v1343, %v2088
        %2151 = vrot.lane.b32.xlu0 %v2149, 126
        %v2152 = vpop.permute.xlu0 %2151
        %v2154 = vadd.f32 %v2118, %v2152
        %v2155 = vmul.f32 %v1350, %v2088
        %2157 = vrot.lane.b32.xlu0 %v2155, 126
        %v2158 = vpop.permute.xlu0 %2157
        %v2160 = vadd.f32 %v2124, %v2158
        %v2161 = vmul.f32 %v1357, %v2088
        %2163 = vrot.lane.b32.xlu0 %v2161, 126
        %v2164 = vpop.permute.xlu0 %2163
        %v2166 = vadd.f32 %v2130, %v2164
        %v2167 = vmul.f32 %v1364, %v2088
        %2169 = vrot.lane.b32.xlu0 %v2167, 126
        %v2170 = vpop.permute.xlu0 %2169
        %v2172 = vadd.f32 %v2136, %v2170
        %v2173 = vld [vmem:[%s2002 + $0x2] sm:$0xff]
        %v2174 = vmul.f32 %v1374, %v2173
        %v2175 = vadd.f32 %v2142, %v2174
        %v2176 = vmul.f32 %v1377, %v2173
        %v2177 = vadd.f32 %v2148, %v2176
        %v2178 = vmul.f32 %v1380, %v2173
        %v2179 = vadd.f32 %v2154, %v2178
        %v2180 = vmul.f32 %v1383, %v2173
        %v2181 = vadd.f32 %v2160, %v2180
        %v2182 = vmul.f32 %v1386, %v2173
        %v2183 = vadd.f32 %v2166, %v2182
        %v2184 = vmul.f32 %v1389, %v2173
        %v2185 = vadd.f32 %v2172, %v2184
        %v2186 = vmul.f32 %v1392, %v2173
        %2188 = vrot.lane.b32.xlu0 %v2186, 127
        %v2189 = vpop.permute.xlu0 %2188
        %v2191 = vadd.f32 %v2175, %v2189
        %v2192 = vmul.f32 %v1399, %v2173
        %2194 = vrot.lane.b32.xlu0 %v2192, 127
        %v2195 = vpop.permute.xlu0 %2194
        %v2197 = vadd.f32 %v2177, %v2195
        %v2198 = vmul.f32 %v1406, %v2173
        %2200 = vrot.lane.b32.xlu0 %v2198, 127
        %v2201 = vpop.permute.xlu0 %2200
        %v2203 = vadd.f32 %v2179, %v2201
        %v2204 = vmul.f32 %v1413, %v2173
        %2206 = vrot.lane.b32.xlu0 %v2204, 127
        %v2207 = vpop.permute.xlu0 %2206
        %v2209 = vadd.f32 %v2181, %v2207
        %v2210 = vmul.f32 %v1420, %v2173
        %2212 = vrot.lane.b32.xlu0 %v2210, 127
        %v2213 = vpop.permute.xlu0 %2212
        %v2215 = vadd.f32 %v2183, %v2213
        %v2216 = vmul.f32 %v1427, %v2173
        %2218 = vrot.lane.b32.xlu0 %v2216, 127
        %v2219 = vpop.permute.xlu0 %2218
        %v2221 = vadd.f32 %v2185, %v2219
        %v2222 = vmul.f32 %v1434, %v2173
        %2224 = vrot.lane.b32.xlu0 %v2222, 126
        %v2225 = vpop.permute.xlu0 %2224
        %v2227 = vadd.f32 %v2191, %v2225
        %v2228 = vmul.f32 %v1441, %v2173
        %2230 = vrot.lane.b32.xlu0 %v2228, 126
        %v2231 = vpop.permute.xlu0 %2230
        %v2233 = vadd.f32 %v2197, %v2231
        %v2234 = vmul.f32 %v1448, %v2173
        %2236 = vrot.lane.b32.xlu0 %v2234, 126
        %v2237 = vpop.permute.xlu0 %2236
        %v2239 = vadd.f32 %v2203, %v2237
        %v2240 = vmul.f32 %v1455, %v2173
        %2242 = vrot.lane.b32.xlu0 %v2240, 126
        %v2243 = vpop.permute.xlu0 %2242
        %v2245 = vadd.f32 %v2209, %v2243
        %v2246 = vmul.f32 %v1462, %v2173
        %2248 = vrot.lane.b32.xlu0 %v2246, 126
        %v2249 = vpop.permute.xlu0 %2248
        %v2251 = vadd.f32 %v2215, %v2249
        %v2252 = vmul.f32 %v1469, %v2173
        %2254 = vrot.lane.b32.xlu0 %v2252, 126
        %v2255 = vpop.permute.xlu0 %2254
        %v2257 = vadd.f32 %v2221, %v2255
        %2258 = vst.msk [vmem:[%s344 + $0x8] sm:$0xff] %vm1476, %v2227
        %s2259 = scalar_lea.vmem %s344, 16
        %2260 = vst.msk [vmem:[%s2259 + $0x8] sm:$0xff] %vm1476, %v2233
        %s2261 = scalar_lea.vmem %s344, 32
        %2262 = vst.msk [vmem:[%s2261 + $0x8] sm:$0xff] %vm1476, %v2239
        %s2263 = scalar_lea.vmem %s344, 48
        %2264 = vst.msk [vmem:[%s2263 + $0x8] sm:$0xff] %vm1476, %v2245
        %s2265 = scalar_lea.vmem %s344, 64
        %2266 = vst.msk [vmem:[%s2265 + $0x8] sm:$0xff] %vm1476, %v2251
        %s2267 = scalar_lea.vmem %s344, 80
        %2268 = vst.msk [vmem:[%s2267 + $0x8] sm:$0xff] %vm1476, %v2257
        %s2269 = smul.u32 2, %s22
        %p2270 = scmp.lt.s32.totalorder %s21, 1
        %s2271 = scalar_select %p2270, %s21, 1
        %p2272 = scmp.lt.s32.totalorder %s2269, 1
        %s2273 = scalar_select %p2272, %s2269, 1
        %s2274 = smul.addr %s2271, 12
        %s2275 = sadd.s32 %s2273, %s2274
        %s2276 = smul.addr %s2275, 8
        %s2277 = scalar_lea.vmem %s4, %s2276
        // Predicated region
        $region83: #{tudui_forward.1} parent=69 // pred_check
          %p2278 = pneg %p155
        $region84: #{tudui_forward.1} parent=69 // pred_check_branch
          %2280 = sbr.rel (%p2278) target = $region86
        $region85: #{tudui_forward.1} parent=69 // pred_region
          %s2281 = smul.u32 2, %s22
        $region86: #{tudui_forward.1} parent=69 // pred_fallthru
          _
      $region70: #{tudui_forward.1} parent=5 // pred_fallthru
        _
      %p2282 = scmp.le.s32.totalorder 2, %s12
      // Predicated region
      $region87: #{tudui_forward.1} parent=5 // pred_check
        %p2283 = pneg %p2282
      $region88: #{tudui_forward.1} parent=5 // pred_check_branch
        %2285 = sbr.rel (%p2283) target = $region90
      $region89: #{tudui_forward.1} parent=5 // pred_region
        %s2286 = ssub.s32 %s12, 2
        // Predicated region
        $region91: #{tudui_forward.1} parent=89 // pred_check
          %p2287 = pneg %p161
        $region92: #{tudui_forward.1} parent=89 // pred_check_branch
          %2289 = sbr.rel (%p2287) target = $region94
        $region93: #{tudui_forward.1} parent=89 // pred_region
          %s2290 = smul.u32 2, %s24
          %p2291 = scmp.lt.s32.totalorder %s23, 1
          %s2292 = scalar_select %p2291, %s23, 1
          %p2293 = scmp.lt.s32.totalorder %s2290, 1
          %s2294 = scalar_select %p2293, %s2290, 1
          %s2295 = smul.addr %s2292, 12
          %s2296 = sadd.s32 %s2294, %s2295
          %s2297 = smul.addr %s2296, 8
          %s2298 = scalar_lea.vmem %s4, %s2297
        $region94: #{tudui_forward.1} parent=89 // pred_fallthru
          _
      $region90: #{tudui_forward.1} parent=5 // pred_fallthru
        _
    $region6: #{tudui_forward.1} parent=1 // loop_footer
      %s16 = sadd.s32 1, %s12
    $region7: #{tudui_forward.1} parent=1 // loop_footer_branch
      %11 = sbr.rel target = $region3
    $region8: #{tudui_forward.1} parent=1 // loop_exit
      _
    %2299 = vsyncpa [#allocation5], 1
    %s2300 = scalar_lea.sflag [#allocation5], 1
    %2301 = vsyncpa %s2300, 1
    %2302 = vsyncpa [#allocation7], 1

</llo_original>
